<compile_context>
chip_gen: v6e
topology: v6e:2x2x1
jax: 0.10.0
libtpu: 0.0.40
codegen_flags: <defaults>
</compile_context>

<pallas_src>
import functools

import numpy as np
import jax
import jax.numpy as jnp
from jax.experimental import pallas as pl
from jax.experimental.pallas import tpu as pltpu


def _refs_per_layer(num_sublayers):
    # w0, b0, (wl, bl) for l in 1..L-1, expand, collapse, gate_add
    return 2 * num_sublayers + 3


# ----------------------------------------------------------------------------
# Pallas kernel: full AdaTT extraction stack (all layers fused)
# ----------------------------------------------------------------------------
def _adatt_stack_kernel(x_ref, *refs, num_tasks, num_experts, layer_dims,
                        out_lanes):
    T, E = num_tasks, num_experts
    TE = T * E
    f32 = jnp.float32

    n_w = sum(_refs_per_layer(len(dims)) for dims in layer_dims)
    w_refs = refs[:n_w]
    out_ref = refs[n_w]

    act = x_ref[...].astype(f32)           # layer 0: [Bt, D_in], shared by all tasks

    ridx = 0
    for li, dims in enumerate(layer_dims):
        L = len(dims)
        d_out = dims[-1]
        lrefs = w_refs[ridx:ridx + _refs_per_layer(L)]
        ridx += _refs_per_layer(L)

        w0 = lrefs[0][...]
        mm_dtype = w0.dtype                 # bf16 (MXU-native) or f32
        b0 = lrefs[1][...]                  # f32
        expand = lrefs[2 * L][...]          # [T*TE, T*TE*d_out]   0/1 block-diag
        collapse = lrefs[2 * L + 1][...]    # [T*TE*d_out, T*d_out] 0/1 block-diag
        gate_add = lrefs[2 * L + 2][...]    # [1, T*TE] residual scalars (f32)

        n_exp0 = TE * dims[0]

        # ---- sublayer 0 of all T*E experts + all T gates: ONE wide matmul ----
        z = jnp.dot(act.astype(mm_dtype), w0, preferred_element_type=f32) + b0
        he = jnp.maximum(z[:, :n_exp0], 0.0)        # [Bt, T*E*d0] lane-packed
        logits = z[:, n_exp0:]                      # [Bt, T*TE]

        # ---- deeper expert sublayers: ONE block-diag matmul over all experts ----
        for l in range(1, L):
            he = jnp.dot(he.astype(mm_dtype), lrefs[2 * l][...],
                         preferred_element_type=f32) + lrefs[2 * l + 1][...]
            he = jnp.maximum(he, 0.0)               # [Bt, T*E*d_l]

        # ---- per-task gate softmax (tiny: T*TE lanes, f32, EUP reciprocal) ----
        gate_parts = []
        for t in range(T):
            lg = logits[:, t * TE:(t + 1) * TE]
            m = jnp.max(lg, axis=-1, keepdims=True)
            p = jnp.exp(lg - m)
            inv = pl.reciprocal(jnp.sum(p, axis=-1, keepdims=True), approx=True)
            gate_parts.append(p * inv)
        # Residual scalars folded into the gates -> residual absorbed by the
        # fusion matmuls below at zero extra cost.
        gates = jnp.concatenate(gate_parts, axis=-1) + gate_add    # [Bt, T*TE]

        # ---- gated fusion for ALL tasks: expand matmul, VPU mul, collapse ----
        gexp = jnp.dot(gates.astype(mm_dtype), expand,
                       preferred_element_type=f32)                 # [Bt, T*TE*d_out]
        prod = gexp * jnp.concatenate([he] * T, axis=-1)           # [Bt, T*TE*d_out]
        act = jnp.dot(prod.astype(mm_dtype), collapse,
                      preferred_element_type=f32)                  # [Bt, T*d_out]

    # Lane-dense (128-multiple) zero-padded output slab -> unmasked stores.
    pad = out_lanes - act.shape[-1]
    if pad:
        act = jnp.concatenate([act, jnp.zeros((act.shape[0], pad), f32)], axis=-1)
    out_ref[...] = act


# ----------------------------------------------------------------------------
# Weight packing (wrapper side, done once per call — hoist/cache in production)
# ----------------------------------------------------------------------------
def _pack_layer_params(lp, d_prev, T, E, first_layer, res_connect, mm_dtype):
    """Returns [w0, b0, (wl, bl)..., expand, collapse, gate_add] (all 2-D)."""
    ws, bs = lp['ws'], lp['bs']            # ws[l]: [T*E, d_{l-1}, d_l], bs[l]: [T*E, 1, d_l]
    wg, bg = lp['wg'], lp['bg']            # [T, d_prev, T*E], [T, 1, T*E]
    TE = T * E
    dims = [w.shape[2] for w in ws]
    d0, d_out = dims[0], dims[-1]

    # --- sublayer 0 of every expert + every task gate -> one wide weight ---
    if first_layer:
        # Shared [Bt, d_prev] input: dense pack along N only -> [d_prev, TE*d0 + T*TE]
        w_exp0 = jnp.transpose(ws[0], (1, 0, 2)).reshape(d_prev, TE * d0)
        w_gate = jnp.transpose(wg, (1, 0, 2)).reshape(d_prev, T * TE)
        w0 = jnp.concatenate([w_exp0, w_gate], axis=-1)
    else:
        # Lane-packed per-task input [Bt, T*d_prev]: block-structured pack.
        w0 = jnp.zeros((T * d_prev, TE * d0 + T * TE), ws[0].dtype)
        for t in range(T):
            rows = slice(t * d_prev, (t + 1) * d_prev)
            wt = jnp.transpose(ws[0][t * E:(t + 1) * E], (1, 0, 2)).reshape(d_prev, E * d0)
            w0 = w0.at[rows, t * E * d0:(t + 1) * E * d0].set(wt)
            w0 = w0.at[rows, TE * d0 + t * TE:TE * d0 + (t + 1) * TE].set(wg[t])
    b_exp0 = jnp.transpose(bs[0], (1, 0, 2)).reshape(1, TE * d0)
    b_gate = jnp.transpose(bg, (1, 0, 2)).reshape(1, T * TE)
    b0 = jnp.concatenate([b_exp0, b_gate], axis=-1)

    packed = [w0.astype(mm_dtype), b0.astype(jnp.float32)]

    # --- deeper expert sublayers: block-diag over all T*E experts ---
    for l in range(1, len(ws)):
        dp, d = dims[l - 1], dims[l]
        blk = jnp.zeros((TE * dp, TE * d), ws[l].dtype)
        for g in range(TE):
            blk = blk.at[g * dp:(g + 1) * dp, g * d:(g + 1) * d].set(ws[l][g])
        bl = jnp.transpose(bs[l], (1, 0, 2)).reshape(1, TE * d)
        packed.append(blk.astype(mm_dtype))
        packed.append(bl.astype(jnp.float32))

    # --- constant 0/1 matrices: gate-weighted fusion across ALL tasks at once ---
    expand = np.kron(np.eye(T * TE, dtype=np.float32),
                     np.ones((1, d_out), np.float32))              # [T*TE, T*TE*d_out]
    collapse = np.kron(np.eye(T, dtype=np.float32),
                       np.kron(np.ones((TE, 1), np.float32),
                               np.eye(d_out, dtype=np.float32)))   # [T*TE*d_out, T*d_out]
    packed.append(jnp.asarray(expand, dtype=mm_dtype))
    packed.append(jnp.asarray(collapse, dtype=mm_dtype))

    # --- expert residual scalars folded into a constant gate offset ---
    gadd = np.zeros((T, TE), np.float32)
    if res_connect:
        sw = (np.asarray(lp['sw'], np.float32) if E > 1
              else np.ones((T, E), np.float32))
        for t in range(T):
            gadd[t, t * E:(t + 1) * E] = sw[t]
    packed.append(jnp.asarray(gadd.reshape(1, T * TE)))
    return packed


# ----------------------------------------------------------------------------
# Wrapper: one fused pallas_call for the whole extraction stack
# ----------------------------------------------------------------------------
_SINGLE_BUFFER_OK = None   # cached: does this jax accept pl.Buffered(1) weight specs?


def adatt_forward(inputs, params, conf, matmul_dtype=jnp.bfloat16):
    global _SINGLE_BUFFER_OK
    T, E = conf['num_tasks'], conf['num_experts']
    TE = T * E
    res = bool(conf['exp_res_connect'])
    layer_dims = tuple(tuple(d) for d in conf['output_units'])
    d_last = layer_dims[-1][-1]
    out_dim = T * d_last
    out_lanes = ((out_dim + 127) // 128) * 128       # lane-dense output slab

    x = inputs.astype(jnp.float32)
    B, d_in = x.shape

    # ---- pack weights ----
    flat_w = []
    d_prev = d_in
    for li, lp in enumerate(params):
        flat_w.extend(_pack_layer_params(lp, d_prev, T, E, li == 0, res, matmul_dtype))
        d_prev = layer_dims[li][-1]

    # ---- batch tiling: bounded padding, >=2 grid steps when B >= 16 (v7x) ----
    n_blk = max(-(-B // 512), 2 if B >= 16 else 1)
    Bt = ((-(-B // n_blk) + 7) // 8) * 8
    n_blk = -(-B // Bt)
    B_pad = n_blk * Bt
    if B_pad != B:
        x = jnp.pad(x, ((0, B_pad - B), (0, 0)))

    kernel = functools.partial(
        _adatt_stack_kernel, num_tasks=T, num_experts=E,
        layer_dims=layer_dims, out_lanes=out_lanes)

    x_spec = pl.BlockSpec((Bt, d_in), lambda i: (i, 0))
    out_spec = pl.BlockSpec((Bt, out_lanes), lambda i: (i, 0))

    def weight_specs(single_buffer):
        specs = []
        for w in flat_w:
            kw = {}
            if single_buffer:
                kw['pipeline_mode'] = pl.Buffered(1)   # weights never change across steps
            specs.append(pl.BlockSpec(w.shape, lambda i: (0, 0), **kw))
        return specs

    # ---- cost / VMEM hints ----
    weight_bytes = sum(int(w.size) * w.dtype.itemsize for w in flat_w)
    flops, trans, max_lanes = 0, 0, out_lanes
    d_prev = d_in
    for li, dims in enumerate(layer_dims):
        d0, d_out = dims[0], dims[-1]
        k0 = d_prev if li == 0 else T * d_prev
        n0 = TE * d0 + T * TE
        flops += 2 * B_pad * k0 * n0
        max_lanes = max(max_lanes, n0)
        for l in range(1, len(dims)):
            flops += 2 * B_pad * (TE * dims[l - 1]) * (TE * dims[l])
            max_lanes = max(max_lanes, TE * dims[l])
        flops += 2 * B_pad * (T * TE) * (T * TE * d_out)        # expand
        flops += 2 * B_pad * (T * TE * d_out) * (T * d_out)     # collapse
        max_lanes = max(max_lanes, T * TE * d_out)
        trans += B_pad * (T * TE + T)                           # exp + reciprocal
        d_prev = d_out
    io_bytes = (B_pad * d_in + B_pad * out_lanes) * 4
    cost = pl.CostEstimate(flops=int(flops), transcendentals=int(trans),
                           bytes_accessed=int(weight_bytes + io_bytes))

    def vmem_limit(single_buffer):
        w_res = weight_bytes * (1 if single_buffer else 2)
        blocks = 2 * (Bt * d_in + Bt * out_lanes) * 4           # double-buffered in/out
        scratch = 16 * Bt * max_lanes * 4                       # temporaries headroom
        return int(min(48 << 20, w_res + blocks + scratch + (8 << 20)))

    def run(single_buffer):
        return pl.pallas_call(
            kernel,
            out_shape=jax.ShapeDtypeStruct((B_pad, out_lanes), jnp.float32),
            grid=(n_blk,),
            in_specs=[x_spec] + weight_specs(single_buffer),
            out_specs=out_spec,
            compiler_params=pltpu.CompilerParams(
                dimension_semantics=("parallel",),
                vmem_limit_bytes=vmem_limit(single_buffer)),
            cost_estimate=cost,
        )(x, *flat_w)

    if _SINGLE_BUFFER_OK is None:
        try:
            out = run(True)
            _SINGLE_BUFFER_OK = True
        except Exception:
            _SINGLE_BUFFER_OK = False
            out = run(False)
    else:
        out = run(_SINGLE_BUFFER_OK)

    out = out[:B, :out_dim]
    return [out[:, t * d_last:(t + 1) * d_last] for t in range(T)]


# ----------------------------------------------------------------------------
# Parameter init (deterministic, mirrors PyTorch default Linear init bounds)
# ----------------------------------------------------------------------------
def init_params(key, conf):
    T, E = conf['num_tasks'], conf['num_experts']
    TE = T * E
    layer_in = conf['input_units']
    params = []
    for dims in conf['output_units']:
        lp = {'ws': [], 'bs': []}
        d_prev = layer_in
        for d in dims:
            key, k1, k2 = jax.random.split(key, 3)
            bound = 1.0 / (d_prev ** 0.5)
            lp['ws'].append(jax.random.uniform(k1, (TE, d_prev, d), jnp.float32, -bound, bound))
            lp['bs'].append(jax.random.uniform(k2, (TE, 1, d), jnp.float32, -bound, bound))
            d_prev = d
        key, k1, k2, k3 = jax.random.split(key, 4)
        bound = 1.0 / (layer_in ** 0.5)
        lp['wg'] = jax.random.uniform(k1, (T, layer_in, TE), jnp.float32, -bound, bound)
        lp['bg'] = jax.random.uniform(k2, (T, 1, TE), jnp.float32, -bound, bound)
        scale = (1.0 / E) ** 0.5
        lp['sw'] = jax.random.uniform(k3, (T, E), jnp.float32, -scale, scale)
        params.append(lp)
        layer_in = dims[-1]
    return params


# ----------------------------------------------------------------------------
# Pure-JAX reference (mirrors the PyTorch module, f32 throughout)
# ----------------------------------------------------------------------------
def adatt_forward_ref(inputs, params, conf):
    T, E = conf['num_tasks'], conf['num_experts']
    res = conf['exp_res_connect']
    x = inputs.astype(jnp.float32)
    B, D = x.shape
    x = jnp.broadcast_to(x[:, None, :], (B, T, D))
    for lp in params:
        experts = []
        for e_i in range(T * E):
            h = x[:, e_i // E, :]
            for w, b in zip(lp['ws'], lp['bs']):
                h = jnp.maximum(h @ w[e_i] + b[e_i][0], 0.0)
            experts.append(h)
        experts_out = jnp.stack(experts, axis=1)                               # [B, TE, Do]
        gates = jnp.stack(
            [jax.nn.softmax(x[:, t, :] @ lp['wg'][t] + lp['bg'][t][0], axis=-1)
             for t in range(T)], axis=1)                                       # [B, T, TE]
        fused = jnp.einsum('bte,bed->btd', gates, experts_out)
        if res:
            if E > 1:
                fused = fused + jnp.einsum(
                    'te,bted->btd', lp['sw'],
                    experts_out.reshape(B, T, E, experts_out.shape[-1]))
            else:
                fused = fused + experts_out
        x = fused
    return [x[:, i, :] for i in range(T)]


if __name__ == "__main__":
    conf = {
        'num_tasks': 3,
        'num_experts': 2,
        'output_units': [[32, 16], [16, 16]],   # 2 extraction layers, 2-layer expert MLPs
        'exp_res_connect': True,
        'input_units': 32,
        'dropout': 0.0,
        'use_bn': False,
    }
    B = 8

    key = jax.random.PRNGKey(0)
    key, k_in = jax.random.split(key)
    inputs = jax.random.normal(k_in, (B, conf['input_units']), jnp.float32)
    params = init_params(key, conf)

    refs = adatt_forward_ref(inputs, params, conf)

    # f32 matmul path: only divergence from the reference is the approximate
    # (EUP) reciprocal inside the gate softmax.
    outs32 = adatt_forward(inputs, params, conf, matmul_dtype=jnp.float32)
    outs32 = [jax.block_until_ready(o) for o in outs32]
    for o, r in zip(outs32, refs):
        assert o.shape == r.shape, (o.shape, r.shape)
        err = float(jnp.max(jnp.abs(o - r)))
        assert jnp.allclose(o, r, atol=5e-3, rtol=5e-3), err

    # bf16 matmul operands (MXU-native on v5e/v6e/v7x), f32 accumulation;
    # softmax / residual / output stay f32 -> looser tolerance.
    outs_bf16 = adatt_forward(inputs, params, conf, matmul_dtype=jnp.bfloat16)
    outs_bf16 = [jax.block_until_ready(o) for o in outs_bf16]
    for o, r in zip(outs_bf16, refs):
        assert o.shape == r.shape, (o.shape, r.shape)
        err = float(jnp.max(jnp.abs(o - r)))
        assert jnp.allclose(o, r, atol=5e-2, rtol=5e-2), err

    print("KERNEL_OK")
</pallas_src>

<mosaic_0001>
module attributes {stable_mosaic.version = 11 : i64} {
  func.func @_adatt_stack_kernel(%arg0: i32, %arg1: memref<8x32xf32, #tpu.memory_space<vmem>>, %arg2: memref<32x210xf32, #tpu.memory_space<vmem>>, %arg3: memref<1x210xf32, #tpu.memory_space<vmem>>, %arg4: memref<192x96xf32, #tpu.memory_space<vmem>>, %arg5: memref<1x96xf32, #tpu.memory_space<vmem>>, %arg6: memref<18x288xf32, #tpu.memory_space<vmem>>, %arg7: memref<288x48xf32, #tpu.memory_space<vmem>>, %arg8: memref<1x18xf32, #tpu.memory_space<vmem>>, %arg9: memref<48x114xf32, #tpu.memory_space<vmem>>, %arg10: memref<1x114xf32, #tpu.memory_space<vmem>>, %arg11: memref<96x96xf32, #tpu.memory_space<vmem>>, %arg12: memref<1x96xf32, #tpu.memory_space<vmem>>, %arg13: memref<18x288xf32, #tpu.memory_space<vmem>>, %arg14: memref<288x48xf32, #tpu.memory_space<vmem>>, %arg15: memref<1x18xf32, #tpu.memory_space<vmem>>, %arg16: memref<8x128xf32, #tpu.memory_space<vmem>>) attributes {dimension_semantics = [#tpu.dimension_semantics<parallel>], iteration_bounds = array<i64: 1>, scalar_prefetch = 0 : i64, scratch_operands = 0 : i64, tpu.core_type = #tpu.core_type<tc>, window_params = [{transform_indices = @transform_0, window_bounds = array<i64: 8, 32>}, {pipeline_mode = #tpu.pipeline_mode<synchronous>, transform_indices = @transform_1, window_bounds = array<i64: 32, 210>}, {pipeline_mode = #tpu.pipeline_mode<synchronous>, transform_indices = @transform_2, window_bounds = array<i64: 1, 210>}, {pipeline_mode = #tpu.pipeline_mode<synchronous>, transform_indices = @transform_3, window_bounds = array<i64: 192, 96>}, {pipeline_mode = #tpu.pipeline_mode<synchronous>, transform_indices = @transform_4, window_bounds = array<i64: 1, 96>}, {pipeline_mode = #tpu.pipeline_mode<synchronous>, transform_indices = @transform_5, window_bounds = array<i64: 18, 288>}, {pipeline_mode = #tpu.pipeline_mode<synchronous>, transform_indices = @transform_6, window_bounds = array<i64: 288, 48>}, {pipeline_mode = #tpu.pipeline_mode<synchronous>, transform_indices = @transform_7, window_bounds = array<i64: 1, 18>}, {pipeline_mode = #tpu.pipeline_mode<synchronous>, transform_indices = @transform_8, window_bounds = array<i64: 48, 114>}, {pipeline_mode = #tpu.pipeline_mode<synchronous>, transform_indices = @transform_9, window_bounds = array<i64: 1, 114>}, {pipeline_mode = #tpu.pipeline_mode<synchronous>, transform_indices = @transform_10, window_bounds = array<i64: 96, 96>}, {pipeline_mode = #tpu.pipeline_mode<synchronous>, transform_indices = @transform_11, window_bounds = array<i64: 1, 96>}, {pipeline_mode = #tpu.pipeline_mode<synchronous>, transform_indices = @transform_12, window_bounds = array<i64: 18, 288>}, {pipeline_mode = #tpu.pipeline_mode<synchronous>, transform_indices = @transform_13, window_bounds = array<i64: 288, 48>}, {pipeline_mode = #tpu.pipeline_mode<synchronous>, transform_indices = @transform_14, window_bounds = array<i64: 1, 18>}, {transform_indices = @transform_15, window_bounds = array<i64: 8, 128>}]} {
    %c0 = arith.constant 0 : index
    %c0_0 = arith.constant 0 : index
    %0 = vector.load %arg1[%c0, %c0_0] : memref<8x32xf32, #tpu.memory_space<vmem>>, vector<8x32xf32>
    %c0_1 = arith.constant 0 : index
    %c0_2 = arith.constant 0 : index
    %1 = vector.load %arg2[%c0_1, %c0_2] : memref<32x210xf32, #tpu.memory_space<vmem>>, vector<32x210xf32>
    %c0_3 = arith.constant 0 : index
    %c0_4 = arith.constant 0 : index
    %2 = vector.load %arg3[%c0_3, %c0_4] : memref<1x210xf32, #tpu.memory_space<vmem>>, vector<1x210xf32>
    %c0_5 = arith.constant 0 : index
    %c0_6 = arith.constant 0 : index
    %3 = vector.load %arg6[%c0_5, %c0_6] : memref<18x288xf32, #tpu.memory_space<vmem>>, vector<18x288xf32>
    %c0_7 = arith.constant 0 : index
    %c0_8 = arith.constant 0 : index
    %4 = vector.load %arg7[%c0_7, %c0_8] : memref<288x48xf32, #tpu.memory_space<vmem>>, vector<288x48xf32>
    %c0_9 = arith.constant 0 : index
    %c0_10 = arith.constant 0 : index
    %5 = vector.load %arg8[%c0_9, %c0_10] : memref<1x18xf32, #tpu.memory_space<vmem>>, vector<1x18xf32>
    %cst = arith.constant dense<0.000000e+00> : vector<8x210xf32>
    %6 = tpu.matmul %0, %1, %cst {dimension_numbers = #tpu.dot_dimension_numbers<[1], [0], [0], [1], [0, 0, 1, 1], [], []>} : vector<8x32xf32>, vector<32x210xf32>, vector<8x210xf32> -> vector<8x210xf32>
    %7 = vector.broadcast %2 : vector<1x210xf32> to vector<8x210xf32>
    %8 = arith.addf %6, %7 : vector<8x210xf32>
    %9 = vector.extract_strided_slice %8 {offsets = [0, 0], sizes = [8, 192], strides = [1, 1]} : vector<8x210xf32> to vector<8x192xf32>
    %cst_11 = arith.constant 0.000000e+00 : f32
    %10 = vector.broadcast %cst_11 : f32 to vector<8x192xf32>
    %11 = arith.maximumf %9, %10 : vector<8x192xf32>
    %12 = vector.extract_strided_slice %8 {offsets = [0, 192], sizes = [8, 18], strides = [1, 1]} : vector<8x210xf32> to vector<8x18xf32>
    %c0_12 = arith.constant 0 : index
    %c0_13 = arith.constant 0 : index
    %13 = vector.load %arg4[%c0_12, %c0_13] : memref<192x96xf32, #tpu.memory_space<vmem>>, vector<192x96xf32>
    %cst_14 = arith.constant dense<0.000000e+00> : vector<8x96xf32>
    %14 = tpu.matmul %11, %13, %cst_14 {dimension_numbers = #tpu.dot_dimension_numbers<[1], [0], [0], [1], [0, 0, 1, 1], [], []>} : vector<8x192xf32>, vector<192x96xf32>, vector<8x96xf32> -> vector<8x96xf32>
    %c0_15 = arith.constant 0 : index
    %c0_16 = arith.constant 0 : index
    %15 = vector.load %arg5[%c0_15, %c0_16] : memref<1x96xf32, #tpu.memory_space<vmem>>, vector<1x96xf32>
    %16 = vector.broadcast %15 : vector<1x96xf32> to vector<8x96xf32>
    %17 = arith.addf %14, %16 : vector<8x96xf32>
    %cst_17 = arith.constant 0.000000e+00 : f32
    %18 = vector.broadcast %cst_17 : f32 to vector<8x96xf32>
    %19 = arith.maximumf %17, %18 : vector<8x96xf32>
    %20 = vector.extract_strided_slice %12 {offsets = [0, 0], sizes = [8, 6], strides = [1, 1]} : vector<8x18xf32> to vector<8x6xf32>
    %cst_18 = arith.constant dense<0xFF800000> : vector<8xf32>
    %21 = vector.multi_reduction <maximumf>, %20, %cst_18 [1] : vector<8x6xf32> to vector<8xf32>
    %22 = vector.shape_cast %21 : vector<8xf32> to vector<8x1xf32>
    %23 = vector.broadcast %22 : vector<8x1xf32> to vector<8x6xf32>
    %24 = arith.subf %20, %23 : vector<8x6xf32>
    %25 = math.exp %24 : vector<8x6xf32>
    %cst_19 = arith.constant dense<0.000000e+00> : vector<8xf32>
    %26 = vector.multi_reduction <add>, %25, %cst_19 [1] : vector<8x6xf32> to vector<8xf32>
    %27 = vector.shape_cast %26 : vector<8xf32> to vector<8x1xf32>
    %28 = tpu.reciprocal %27 {approx = true} : vector<8x1xf32> -> vector<8x1xf32>
    %29 = vector.broadcast %28 : vector<8x1xf32> to vector<8x6xf32>
    %30 = arith.mulf %25, %29 : vector<8x6xf32>
    %31 = vector.extract_strided_slice %12 {offsets = [0, 6], sizes = [8, 6], strides = [1, 1]} : vector<8x18xf32> to vector<8x6xf32>
    %cst_20 = arith.constant dense<0xFF800000> : vector<8xf32>
    %32 = vector.multi_reduction <maximumf>, %31, %cst_20 [1] : vector<8x6xf32> to vector<8xf32>
    %33 = vector.shape_cast %32 : vector<8xf32> to vector<8x1xf32>
    %34 = vector.broadcast %33 : vector<8x1xf32> to vector<8x6xf32>
    %35 = arith.subf %31, %34 : vector<8x6xf32>
    %36 = math.exp %35 : vector<8x6xf32>
    %cst_21 = arith.constant dense<0.000000e+00> : vector<8xf32>
    %37 = vector.multi_reduction <add>, %36, %cst_21 [1] : vector<8x6xf32> to vector<8xf32>
    %38 = vector.shape_cast %37 : vector<8xf32> to vector<8x1xf32>
    %39 = tpu.reciprocal %38 {approx = true} : vector<8x1xf32> -> vector<8x1xf32>
    %40 = vector.broadcast %39 : vector<8x1xf32> to vector<8x6xf32>
    %41 = arith.mulf %36, %40 : vector<8x6xf32>
    %42 = vector.extract_strided_slice %12 {offsets = [0, 12], sizes = [8, 6], strides = [1, 1]} : vector<8x18xf32> to vector<8x6xf32>
    %cst_22 = arith.constant dense<0xFF800000> : vector<8xf32>
    %43 = vector.multi_reduction <maximumf>, %42, %cst_22 [1] : vector<8x6xf32> to vector<8xf32>
    %44 = vector.shape_cast %43 : vector<8xf32> to vector<8x1xf32>
    %45 = vector.broadcast %44 : vector<8x1xf32> to vector<8x6xf32>
    %46 = arith.subf %42, %45 : vector<8x6xf32>
    %47 = math.exp %46 : vector<8x6xf32>
    %cst_23 = arith.constant dense<0.000000e+00> : vector<8xf32>
    %48 = vector.multi_reduction <add>, %47, %cst_23 [1] : vector<8x6xf32> to vector<8xf32>
    %49 = vector.shape_cast %48 : vector<8xf32> to vector<8x1xf32>
    %50 = tpu.reciprocal %49 {approx = true} : vector<8x1xf32> -> vector<8x1xf32>
    %51 = vector.broadcast %50 : vector<8x1xf32> to vector<8x6xf32>
    %52 = arith.mulf %47, %51 : vector<8x6xf32>
    %53 = tpu.concatenate %30, %41, %52 in 1 : vector<8x6xf32>, vector<8x6xf32>, vector<8x6xf32> -> vector<8x18xf32>
    %54 = vector.broadcast %5 : vector<1x18xf32> to vector<8x18xf32>
    %55 = arith.addf %53, %54 : vector<8x18xf32>
    %cst_24 = arith.constant dense<0.000000e+00> : vector<8x288xf32>
    %56 = tpu.matmul %55, %3, %cst_24 {dimension_numbers = #tpu.dot_dimension_numbers<[1], [0], [0], [1], [0, 0, 1, 1], [], []>} : vector<8x18xf32>, vector<18x288xf32>, vector<8x288xf32> -> vector<8x288xf32>
    %57 = tpu.concatenate %19, %19, %19 in 1 : vector<8x96xf32>, vector<8x96xf32>, vector<8x96xf32> -> vector<8x288xf32>
    %58 = arith.mulf %56, %57 : vector<8x288xf32>
    %cst_25 = arith.constant dense<0.000000e+00> : vector<8x48xf32>
    %59 = tpu.matmul %58, %4, %cst_25 {dimension_numbers = #tpu.dot_dimension_numbers<[1], [0], [0], [1], [0, 0, 1, 1], [], []>} : vector<8x288xf32>, vector<288x48xf32>, vector<8x48xf32> -> vector<8x48xf32>
    %c0_26 = arith.constant 0 : index
    %c0_27 = arith.constant 0 : index
    %60 = vector.load %arg9[%c0_26, %c0_27] : memref<48x114xf32, #tpu.memory_space<vmem>>, vector<48x114xf32>
    %c0_28 = arith.constant 0 : index
    %c0_29 = arith.constant 0 : index
    %61 = vector.load %arg10[%c0_28, %c0_29] : memref<1x114xf32, #tpu.memory_space<vmem>>, vector<1x114xf32>
    %c0_30 = arith.constant 0 : index
    %c0_31 = arith.constant 0 : index
    %62 = vector.load %arg13[%c0_30, %c0_31] : memref<18x288xf32, #tpu.memory_space<vmem>>, vector<18x288xf32>
    %c0_32 = arith.constant 0 : index
    %c0_33 = arith.constant 0 : index
    %63 = vector.load %arg14[%c0_32, %c0_33] : memref<288x48xf32, #tpu.memory_space<vmem>>, vector<288x48xf32>
    %c0_34 = arith.constant 0 : index
    %c0_35 = arith.constant 0 : index
    %64 = vector.load %arg15[%c0_34, %c0_35] : memref<1x18xf32, #tpu.memory_space<vmem>>, vector<1x18xf32>
    %cst_36 = arith.constant dense<0.000000e+00> : vector<8x114xf32>
    %65 = tpu.matmul %59, %60, %cst_36 {dimension_numbers = #tpu.dot_dimension_numbers<[1], [0], [0], [1], [0, 0, 1, 1], [], []>} : vector<8x48xf32>, vector<48x114xf32>, vector<8x114xf32> -> vector<8x114xf32>
    %66 = vector.broadcast %61 : vector<1x114xf32> to vector<8x114xf32>
    %67 = arith.addf %65, %66 : vector<8x114xf32>
    %68 = vector.extract_strided_slice %67 {offsets = [0, 0], sizes = [8, 96], strides = [1, 1]} : vector<8x114xf32> to vector<8x96xf32>
    %cst_37 = arith.constant 0.000000e+00 : f32
    %69 = vector.broadcast %cst_37 : f32 to vector<8x96xf32>
    %70 = arith.maximumf %68, %69 : vector<8x96xf32>
    %71 = vector.extract_strided_slice %67 {offsets = [0, 96], sizes = [8, 18], strides = [1, 1]} : vector<8x114xf32> to vector<8x18xf32>
    %c0_38 = arith.constant 0 : index
    %c0_39 = arith.constant 0 : index
    %72 = vector.load %arg11[%c0_38, %c0_39] : memref<96x96xf32, #tpu.memory_space<vmem>>, vector<96x96xf32>
    %cst_40 = arith.constant dense<0.000000e+00> : vector<8x96xf32>
    %73 = tpu.matmul %70, %72, %cst_40 {dimension_numbers = #tpu.dot_dimension_numbers<[1], [0], [0], [1], [0, 0, 1, 1], [], []>} : vector<8x96xf32>, vector<96x96xf32>, vector<8x96xf32> -> vector<8x96xf32>
    %c0_41 = arith.constant 0 : index
    %c0_42 = arith.constant 0 : index
    %74 = vector.load %arg12[%c0_41, %c0_42] : memref<1x96xf32, #tpu.memory_space<vmem>>, vector<1x96xf32>
    %75 = vector.broadcast %74 : vector<1x96xf32> to vector<8x96xf32>
    %76 = arith.addf %73, %75 : vector<8x96xf32>
    %cst_43 = arith.constant 0.000000e+00 : f32
    %77 = vector.broadcast %cst_43 : f32 to vector<8x96xf32>
    %78 = arith.maximumf %76, %77 : vector<8x96xf32>
    %79 = vector.extract_strided_slice %71 {offsets = [0, 0], sizes = [8, 6], strides = [1, 1]} : vector<8x18xf32> to vector<8x6xf32>
    %cst_44 = arith.constant dense<0xFF800000> : vector<8xf32>
    %80 = vector.multi_reduction <maximumf>, %79, %cst_44 [1] : vector<8x6xf32> to vector<8xf32>
    %81 = vector.shape_cast %80 : vector<8xf32> to vector<8x1xf32>
    %82 = vector.broadcast %81 : vector<8x1xf32> to vector<8x6xf32>
    %83 = arith.subf %79, %82 : vector<8x6xf32>
    %84 = math.exp %83 : vector<8x6xf32>
    %cst_45 = arith.constant dense<0.000000e+00> : vector<8xf32>
    %85 = vector.multi_reduction <add>, %84, %cst_45 [1] : vector<8x6xf32> to vector<8xf32>
    %86 = vector.shape_cast %85 : vector<8xf32> to vector<8x1xf32>
    %87 = tpu.reciprocal %86 {approx = true} : vector<8x1xf32> -> vector<8x1xf32>
    %88 = vector.broadcast %87 : vector<8x1xf32> to vector<8x6xf32>
    %89 = arith.mulf %84, %88 : vector<8x6xf32>
    %90 = vector.extract_strided_slice %71 {offsets = [0, 6], sizes = [8, 6], strides = [1, 1]} : vector<8x18xf32> to vector<8x6xf32>
    %cst_46 = arith.constant dense<0xFF800000> : vector<8xf32>
    %91 = vector.multi_reduction <maximumf>, %90, %cst_46 [1] : vector<8x6xf32> to vector<8xf32>
    %92 = vector.shape_cast %91 : vector<8xf32> to vector<8x1xf32>
    %93 = vector.broadcast %92 : vector<8x1xf32> to vector<8x6xf32>
    %94 = arith.subf %90, %93 : vector<8x6xf32>
    %95 = math.exp %94 : vector<8x6xf32>
    %cst_47 = arith.constant dense<0.000000e+00> : vector<8xf32>
    %96 = vector.multi_reduction <add>, %95, %cst_47 [1] : vector<8x6xf32> to vector<8xf32>
    %97 = vector.shape_cast %96 : vector<8xf32> to vector<8x1xf32>
    %98 = tpu.reciprocal %97 {approx = true} : vector<8x1xf32> -> vector<8x1xf32>
    %99 = vector.broadcast %98 : vector<8x1xf32> to vector<8x6xf32>
    %100 = arith.mulf %95, %99 : vector<8x6xf32>
    %101 = vector.extract_strided_slice %71 {offsets = [0, 12], sizes = [8, 6], strides = [1, 1]} : vector<8x18xf32> to vector<8x6xf32>
    %cst_48 = arith.constant dense<0xFF800000> : vector<8xf32>
    %102 = vector.multi_reduction <maximumf>, %101, %cst_48 [1] : vector<8x6xf32> to vector<8xf32>
    %103 = vector.shape_cast %102 : vector<8xf32> to vector<8x1xf32>
    %104 = vector.broadcast %103 : vector<8x1xf32> to vector<8x6xf32>
    %105 = arith.subf %101, %104 : vector<8x6xf32>
    %106 = math.exp %105 : vector<8x6xf32>
    %cst_49 = arith.constant dense<0.000000e+00> : vector<8xf32>
    %107 = vector.multi_reduction <add>, %106, %cst_49 [1] : vector<8x6xf32> to vector<8xf32>
    %108 = vector.shape_cast %107 : vector<8xf32> to vector<8x1xf32>
    %109 = tpu.reciprocal %108 {approx = true} : vector<8x1xf32> -> vector<8x1xf32>
    %110 = vector.broadcast %109 : vector<8x1xf32> to vector<8x6xf32>
    %111 = arith.mulf %106, %110 : vector<8x6xf32>
    %112 = tpu.concatenate %89, %100, %111 in 1 : vector<8x6xf32>, vector<8x6xf32>, vector<8x6xf32> -> vector<8x18xf32>
    %113 = vector.broadcast %64 : vector<1x18xf32> to vector<8x18xf32>
    %114 = arith.addf %112, %113 : vector<8x18xf32>
    %cst_50 = arith.constant dense<0.000000e+00> : vector<8x288xf32>
    %115 = tpu.matmul %114, %62, %cst_50 {dimension_numbers = #tpu.dot_dimension_numbers<[1], [0], [0], [1], [0, 0, 1, 1], [], []>} : vector<8x18xf32>, vector<18x288xf32>, vector<8x288xf32> -> vector<8x288xf32>
    %116 = tpu.concatenate %78, %78, %78 in 1 : vector<8x96xf32>, vector<8x96xf32>, vector<8x96xf32> -> vector<8x288xf32>
    %117 = arith.mulf %115, %116 : vector<8x288xf32>
    %cst_51 = arith.constant dense<0.000000e+00> : vector<8x48xf32>
    %118 = tpu.matmul %117, %63, %cst_51 {dimension_numbers = #tpu.dot_dimension_numbers<[1], [0], [0], [1], [0, 0, 1, 1], [], []>} : vector<8x288xf32>, vector<288x48xf32>, vector<8x48xf32> -> vector<8x48xf32>
    %cst_52 = arith.constant 0.000000e+00 : f32
    %119 = vector.broadcast %cst_52 : f32 to vector<8x80xf32>
    %120 = tpu.concatenate %118, %119 in 1 : vector<8x48xf32>, vector<8x80xf32> -> vector<8x128xf32>
    %c0_53 = arith.constant 0 : index
    %c0_54 = arith.constant 0 : index
    %121 = vector.load %arg16[%c0_53, %c0_54] : memref<8x128xf32, #tpu.memory_space<vmem>>, vector<8x128xf32>
    tpu.vector_store %arg16[%c0_53, %c0_54], %120 {strides = array<i32>} : memref<8x128xf32, #tpu.memory_space<vmem>>, vector<8x128xf32>,
    return
  }
  func.func @transform_0(%arg0: i32) -> (i32, i32) {
    %c0_i32 = arith.constant 0 : i32
    %c0_i32_0 = arith.constant 0 : i32
    return %arg0, %c0_i32 : i32, i32
  }
  func.func @transform_1(%arg0: i32) -> (i32, i32) {
    %c0_i32 = arith.constant 0 : i32
    %c0_i32_0 = arith.constant 0 : i32
    %c0_i32_1 = arith.constant 0 : i32
    return %c0_i32, %c0_i32_0 : i32, i32
  }
  func.func @transform_2(%arg0: i32) -> (i32, i32) {
    %c0_i32 = arith.constant 0 : i32
    %c0_i32_0 = arith.constant 0 : i32
    %c0_i32_1 = arith.constant 0 : i32
    return %c0_i32, %c0_i32_0 : i32, i32
  }
  func.func @transform_3(%arg0: i32) -> (i32, i32) {
    %c0_i32 = arith.constant 0 : i32
    %c0_i32_0 = arith.constant 0 : i32
    %c0_i32_1 = arith.constant 0 : i32
    return %c0_i32, %c0_i32_0 : i32, i32
  }
  func.func @transform_4(%arg0: i32) -> (i32, i32) {
    %c0_i32 = arith.constant 0 : i32
    %c0_i32_0 = arith.constant 0 : i32
    %c0_i32_1 = arith.constant 0 : i32
    return %c0_i32, %c0_i32_0 : i32, i32
  }
  func.func @transform_5(%arg0: i32) -> (i32, i32) {
    %c0_i32 = arith.constant 0 : i32
    %c0_i32_0 = arith.constant 0 : i32
    %c0_i32_1 = arith.constant 0 : i32
    return %c0_i32, %c0_i32_0 : i32, i32
  }
  func.func @transform_6(%arg0: i32) -> (i32, i32) {
    %c0_i32 = arith.constant 0 : i32
    %c0_i32_0 = arith.constant 0 : i32
    %c0_i32_1 = arith.constant 0 : i32
    return %c0_i32, %c0_i32_0 : i32, i32
  }
  func.func @transform_7(%arg0: i32) -> (i32, i32) {
    %c0_i32 = arith.constant 0 : i32
    %c0_i32_0 = arith.constant 0 : i32
    %c0_i32_1 = arith.constant 0 : i32
    return %c0_i32, %c0_i32_0 : i32, i32
  }
  func.func @transform_8(%arg0: i32) -> (i32, i32) {
    %c0_i32 = arith.constant 0 : i32
    %c0_i32_0 = arith.constant 0 : i32
    %c0_i32_1 = arith.constant 0 : i32
    return %c0_i32, %c0_i32_0 : i32, i32
  }
  func.func @transform_9(%arg0: i32) -> (i32, i32) {
    %c0_i32 = arith.constant 0 : i32
    %c0_i32_0 = arith.constant 0 : i32
    %c0_i32_1 = arith.constant 0 : i32
    return %c0_i32, %c0_i32_0 : i32, i32
  }
  func.func @transform_10(%arg0: i32) -> (i32, i32) {
    %c0_i32 = arith.constant 0 : i32
    %c0_i32_0 = arith.constant 0 : i32
    %c0_i32_1 = arith.constant 0 : i32
    return %c0_i32, %c0_i32_0 : i32, i32
  }
  func.func @transform_11(%arg0: i32) -> (i32, i32) {
    %c0_i32 = arith.constant 0 : i32
    %c0_i32_0 = arith.constant 0 : i32
    %c0_i32_1 = arith.constant 0 : i32
    return %c0_i32, %c0_i32_0 : i32, i32
  }
  func.func @transform_12(%arg0: i32) -> (i32, i32) {
    %c0_i32 = arith.constant 0 : i32
    %c0_i32_0 = arith.constant 0 : i32
    %c0_i32_1 = arith.constant 0 : i32
    return %c0_i32, %c0_i32_0 : i32, i32
  }
  func.func @transform_13(%arg0: i32) -> (i32, i32) {
    %c0_i32 = arith.constant 0 : i32
    %c0_i32_0 = arith.constant 0 : i32
    %c0_i32_1 = arith.constant 0 : i32
    return %c0_i32, %c0_i32_0 : i32, i32
  }
  func.func @transform_14(%arg0: i32) -> (i32, i32) {
    %c0_i32 = arith.constant 0 : i32
    %c0_i32_0 = arith.constant 0 : i32
    %c0_i32_1 = arith.constant 0 : i32
    return %c0_i32, %c0_i32_0 : i32, i32
  }
  func.func @transform_15(%arg0: i32) -> (i32, i32) {
    %c0_i32 = arith.constant 0 : i32
    %c0_i32_0 = arith.constant 0 : i32
    return %arg0, %c0_i32 : i32, i32
  }
}

module attributes {stable_mosaic.version = 11 : i64} {
  func.func @_adatt_stack_kernel(%arg0: i32, %arg1: memref<8x32xf32, #tpu.memory_space<vmem>>, %arg2: memref<32x210xf32, #tpu.memory_space<vmem>>, %arg3: memref<1x210xf32, #tpu.memory_space<vmem>>, %arg4: memref<192x96xf32, #tpu.memory_space<vmem>>, %arg5: memref<1x96xf32, #tpu.memory_space<vmem>>, %arg6: memref<18x288xf32, #tpu.memory_space<vmem>>, %arg7: memref<288x48xf32, #tpu.memory_space<vmem>>, %arg8: memref<1x18xf32, #tpu.memory_space<vmem>>, %arg9: memref<48x114xf32, #tpu.memory_space<vmem>>, %arg10: memref<1x114xf32, #tpu.memory_space<vmem>>, %arg11: memref<96x96xf32, #tpu.memory_space<vmem>>, %arg12: memref<1x96xf32, #tpu.memory_space<vmem>>, %arg13: memref<18x288xf32, #tpu.memory_space<vmem>>, %arg14: memref<288x48xf32, #tpu.memory_space<vmem>>, %arg15: memref<1x18xf32, #tpu.memory_space<vmem>>, %arg16: memref<8x128xf32, #tpu.memory_space<vmem>>) attributes {dimension_semantics = [#tpu.dimension_semantics<parallel>], iteration_bounds = array<i64: 1>, scalar_prefetch = 0 : i64, scratch_operands = 0 : i64, tpu.core_type = #tpu.core_type<tc>, window_params = [{transform_indices = @transform_0, window_bounds = array<i64: 8, 32>}, {pipeline_mode = #tpu.pipeline_mode<synchronous>, transform_indices = @transform_1, window_bounds = array<i64: 32, 210>}, {pipeline_mode = #tpu.pipeline_mode<synchronous>, transform_indices = @transform_2, window_bounds = array<i64: 1, 210>}, {pipeline_mode = #tpu.pipeline_mode<synchronous>, transform_indices = @transform_3, window_bounds = array<i64: 192, 96>}, {pipeline_mode = #tpu.pipeline_mode<synchronous>, transform_indices = @transform_4, window_bounds = array<i64: 1, 96>}, {pipeline_mode = #tpu.pipeline_mode<synchronous>, transform_indices = @transform_5, window_bounds = array<i64: 18, 288>}, {pipeline_mode = #tpu.pipeline_mode<synchronous>, transform_indices = @transform_6, window_bounds = array<i64: 288, 48>}, {pipeline_mode = #tpu.pipeline_mode<synchronous>, transform_indices = @transform_7, window_bounds = array<i64: 1, 18>}, {pipeline_mode = #tpu.pipeline_mode<synchronous>, transform_indices = @transform_8, window_bounds = array<i64: 48, 114>}, {pipeline_mode = #tpu.pipeline_mode<synchronous>, transform_indices = @transform_9, window_bounds = array<i64: 1, 114>}, {pipeline_mode = #tpu.pipeline_mode<synchronous>, transform_indices = @transform_10, window_bounds = array<i64: 96, 96>}, {pipeline_mode = #tpu.pipeline_mode<synchronous>, transform_indices = @transform_11, window_bounds = array<i64: 1, 96>}, {pipeline_mode = #tpu.pipeline_mode<synchronous>, transform_indices = @transform_12, window_bounds = array<i64: 18, 288>}, {pipeline_mode = #tpu.pipeline_mode<synchronous>, transform_indices = @transform_13, window_bounds = array<i64: 288, 48>}, {pipeline_mode = #tpu.pipeline_mode<synchronous>, transform_indices = @transform_14, window_bounds = array<i64: 1, 18>}, {transform_indices = @transform_15, window_bounds = array<i64: 8, 128>}]} {
    %c0 = arith.constant 0 : index
    %c0_0 = arith.constant 0 : index
    %0 = vector.load %arg1[%c0, %c0_0] : memref<8x32xf32, #tpu.memory_space<vmem>>, vector<8x32xf32>
    %c0_1 = arith.constant 0 : index
    %c0_2 = arith.constant 0 : index
    %1 = vector.load %arg2[%c0_1, %c0_2] : memref<32x210xf32, #tpu.memory_space<vmem>>, vector<32x210xf32>
    %c0_3 = arith.constant 0 : index
    %c0_4 = arith.constant 0 : index
    %2 = vector.load %arg3[%c0_3, %c0_4] : memref<1x210xf32, #tpu.memory_space<vmem>>, vector<1x210xf32>
    %c0_5 = arith.constant 0 : index
    %c0_6 = arith.constant 0 : index
    %3 = vector.load %arg6[%c0_5, %c0_6] : memref<18x288xf32, #tpu.memory_space<vmem>>, vector<18x288xf32>
    %c0_7 = arith.constant 0 : index
    %c0_8 = arith.constant 0 : index
    %4 = vector.load %arg7[%c0_7, %c0_8] : memref<288x48xf32, #tpu.memory_space<vmem>>, vector<288x48xf32>
    %c0_9 = arith.constant 0 : index
    %c0_10 = arith.constant 0 : index
    %5 = vector.load %arg8[%c0_9, %c0_10] : memref<1x18xf32, #tpu.memory_space<vmem>>, vector<1x18xf32>
    %cst = arith.constant dense<0.000000e+00> : vector<8x210xf32>
    %6 = tpu.matmul %0, %1, %cst {dimension_numbers = #tpu.dot_dimension_numbers<[1], [0], [0], [1], [0, 0, 1, 1], [], []>} : vector<8x32xf32>, vector<32x210xf32>, vector<8x210xf32> -> vector<8x210xf32>
    %7 = vector.broadcast %2 : vector<1x210xf32> to vector<8x210xf32>
    %8 = arith.addf %6, %7 : vector<8x210xf32>
    %9 = vector.extract_strided_slice %8 {offsets = [0, 0], sizes = [8, 192], strides = [1, 1]} : vector<8x210xf32> to vector<8x192xf32>
    %cst_11 = arith.constant 0.000000e+00 : f32
    %10 = vector.broadcast %cst_11 : f32 to vector<8x192xf32>
    %11 = arith.maximumf %9, %10 : vector<8x192xf32>
    %12 = vector.extract_strided_slice %8 {offsets = [0, 192], sizes = [8, 18], strides = [1, 1]} : vector<8x210xf32> to vector<8x18xf32>
    %c0_12 = arith.constant 0 : index
    %c0_13 = arith.constant 0 : index
    %13 = vector.load %arg4[%c0_12, %c0_13] : memref<192x96xf32, #tpu.memory_space<vmem>>, vector<192x96xf32>
    %cst_14 = arith.constant dense<0.000000e+00> : vector<8x96xf32>
    %14 = tpu.matmul %11, %13, %cst_14 {dimension_numbers = #tpu.dot_dimension_numbers<[1], [0], [0], [1], [0, 0, 1, 1], [], []>} : vector<8x192xf32>, vector<192x96xf32>, vector<8x96xf32> -> vector<8x96xf32>
    %c0_15 = arith.constant 0 : index
    %c0_16 = arith.constant 0 : index
    %15 = vector.load %arg5[%c0_15, %c0_16] : memref<1x96xf32, #tpu.memory_space<vmem>>, vector<1x96xf32>
    %16 = vector.broadcast %15 : vector<1x96xf32> to vector<8x96xf32>
    %17 = arith.addf %14, %16 : vector<8x96xf32>
    %cst_17 = arith.constant 0.000000e+00 : f32
    %18 = vector.broadcast %cst_17 : f32 to vector<8x96xf32>
    %19 = arith.maximumf %17, %18 : vector<8x96xf32>
    %20 = vector.extract_strided_slice %12 {offsets = [0, 0], sizes = [8, 6], strides = [1, 1]} : vector<8x18xf32> to vector<8x6xf32>
    %cst_18 = arith.constant dense<0xFF800000> : vector<8xf32>
    %21 = vector.multi_reduction <maximumf>, %20, %cst_18 [1] : vector<8x6xf32> to vector<8xf32>
    %22 = vector.shape_cast %21 : vector<8xf32> to vector<8x1xf32>
    %23 = vector.broadcast %22 : vector<8x1xf32> to vector<8x6xf32>
    %24 = arith.subf %20, %23 : vector<8x6xf32>
    %25 = math.exp %24 : vector<8x6xf32>
    %cst_19 = arith.constant dense<0.000000e+00> : vector<8xf32>
    %26 = vector.multi_reduction <add>, %25, %cst_19 [1] : vector<8x6xf32> to vector<8xf32>
    %27 = vector.shape_cast %26 : vector<8xf32> to vector<8x1xf32>
    %28 = tpu.reciprocal %27 {approx = true} : vector<8x1xf32> -> vector<8x1xf32>
    %29 = vector.broadcast %28 : vector<8x1xf32> to vector<8x6xf32>
    %30 = arith.mulf %25, %29 : vector<8x6xf32>
    %31 = vector.extract_strided_slice %12 {offsets = [0, 6], sizes = [8, 6], strides = [1, 1]} : vector<8x18xf32> to vector<8x6xf32>
    %cst_20 = arith.constant dense<0xFF800000> : vector<8xf32>
    %32 = vector.multi_reduction <maximumf>, %31, %cst_20 [1] : vector<8x6xf32> to vector<8xf32>
    %33 = vector.shape_cast %32 : vector<8xf32> to vector<8x1xf32>
    %34 = vector.broadcast %33 : vector<8x1xf32> to vector<8x6xf32>
    %35 = arith.subf %31, %34 : vector<8x6xf32>
    %36 = math.exp %35 : vector<8x6xf32>
    %cst_21 = arith.constant dense<0.000000e+00> : vector<8xf32>
    %37 = vector.multi_reduction <add>, %36, %cst_21 [1] : vector<8x6xf32> to vector<8xf32>
    %38 = vector.shape_cast %37 : vector<8xf32> to vector<8x1xf32>
    %39 = tpu.reciprocal %38 {approx = true} : vector<8x1xf32> -> vector<8x1xf32>
    %40 = vector.broadcast %39 : vector<8x1xf32> to vector<8x6xf32>
    %41 = arith.mulf %36, %40 : vector<8x6xf32>
    %42 = vector.extract_strided_slice %12 {offsets = [0, 12], sizes = [8, 6], strides = [1, 1]} : vector<8x18xf32> to vector<8x6xf32>
    %cst_22 = arith.constant dense<0xFF800000> : vector<8xf32>
    %43 = vector.multi_reduction <maximumf>, %42, %cst_22 [1] : vector<8x6xf32> to vector<8xf32>
    %44 = vector.shape_cast %43 : vector<8xf32> to vector<8x1xf32>
    %45 = vector.broadcast %44 : vector<8x1xf32> to vector<8x6xf32>
    %46 = arith.subf %42, %45 : vector<8x6xf32>
    %47 = math.exp %46 : vector<8x6xf32>
    %cst_23 = arith.constant dense<0.000000e+00> : vector<8xf32>
    %48 = vector.multi_reduction <add>, %47, %cst_23 [1] : vector<8x6xf32> to vector<8xf32>
    %49 = vector.shape_cast %48 : vector<8xf32> to vector<8x1xf32>
    %50 = tpu.reciprocal %49 {approx = true} : vector<8x1xf32> -> vector<8x1xf32>
    %51 = vector.broadcast %50 : vector<8x1xf32> to vector<8x6xf32>
    %52 = arith.mulf %47, %51 : vector<8x6xf32>
    %53 = tpu.concatenate %30, %41, %52 in 1 : vector<8x6xf32>, vector<8x6xf32>, vector<8x6xf32> -> vector<8x18xf32>
    %54 = vector.broadcast %5 : vector<1x18xf32> to vector<8x18xf32>
    %55 = arith.addf %53, %54 : vector<8x18xf32>
    %cst_24 = arith.constant dense<0.000000e+00> : vector<8x288xf32>
    %56 = tpu.matmul %55, %3, %cst_24 {dimension_numbers = #tpu.dot_dimension_numbers<[1], [0], [0], [1], [0, 0, 1, 1], [], []>} : vector<8x18xf32>, vector<18x288xf32>, vector<8x288xf32> -> vector<8x288xf32>
    %57 = tpu.concatenate %19, %19, %19 in 1 : vector<8x96xf32>, vector<8x96xf32>, vector<8x96xf32> -> vector<8x288xf32>
    %58 = arith.mulf %56, %57 : vector<8x288xf32>
    %cst_25 = arith.constant dense<0.000000e+00> : vector<8x48xf32>
    %59 = tpu.matmul %58, %4, %cst_25 {dimension_numbers = #tpu.dot_dimension_numbers<[1], [0], [0], [1], [0, 0, 1, 1], [], []>} : vector<8x288xf32>, vector<288x48xf32>, vector<8x48xf32> -> vector<8x48xf32>
    %c0_26 = arith.constant 0 : index
    %c0_27 = arith.constant 0 : index
    %60 = vector.load %arg9[%c0_26, %c0_27] : memref<48x114xf32, #tpu.memory_space<vmem>>, vector<48x114xf32>
    %c0_28 = arith.constant 0 : index
    %c0_29 = arith.constant 0 : index
    %61 = vector.load %arg10[%c0_28, %c0_29] : memref<1x114xf32, #tpu.memory_space<vmem>>, vector<1x114xf32>
    %c0_30 = arith.constant 0 : index
    %c0_31 = arith.constant 0 : index
    %62 = vector.load %arg13[%c0_30, %c0_31] : memref<18x288xf32, #tpu.memory_space<vmem>>, vector<18x288xf32>
    %c0_32 = arith.constant 0 : index
    %c0_33 = arith.constant 0 : index
    %63 = vector.load %arg14[%c0_32, %c0_33] : memref<288x48xf32, #tpu.memory_space<vmem>>, vector<288x48xf32>
    %c0_34 = arith.constant 0 : index
    %c0_35 = arith.constant 0 : index
    %64 = vector.load %arg15[%c0_34, %c0_35] : memref<1x18xf32, #tpu.memory_space<vmem>>, vector<1x18xf32>
    %cst_36 = arith.constant dense<0.000000e+00> : vector<8x114xf32>
    %65 = tpu.matmul %59, %60, %cst_36 {dimension_numbers = #tpu.dot_dimension_numbers<[1], [0], [0], [1], [0, 0, 1, 1], [], []>} : vector<8x48xf32>, vector<48x114xf32>, vector<8x114xf32> -> vector<8x114xf32>
    %66 = vector.broadcast %61 : vector<1x114xf32> to vector<8x114xf32>
    %67 = arith.addf %65, %66 : vector<8x114xf32>
    %68 = vector.extract_strided_slice %67 {offsets = [0, 0], sizes = [8, 96], strides = [1, 1]} : vector<8x114xf32> to vector<8x96xf32>
    %cst_37 = arith.constant 0.000000e+00 : f32
    %69 = vector.broadcast %cst_37 : f32 to vector<8x96xf32>
    %70 = arith.maximumf %68, %69 : vector<8x96xf32>
    %71 = vector.extract_strided_slice %67 {offsets = [0, 96], sizes = [8, 18], strides = [1, 1]} : vector<8x114xf32> to vector<8x18xf32>
    %c0_38 = arith.constant 0 : index
    %c0_39 = arith.constant 0 : index
    %72 = vector.load %arg11[%c0_38, %c0_39] : memref<96x96xf32, #tpu.memory_space<vmem>>, vector<96x96xf32>
    %cst_40 = arith.constant dense<0.000000e+00> : vector<8x96xf32>
    %73 = tpu.matmul %70, %72, %cst_40 {dimension_numbers = #tpu.dot_dimension_numbers<[1], [0], [0], [1], [0, 0, 1, 1], [], []>} : vector<8x96xf32>, vector<96x96xf32>, vector<8x96xf32> -> vector<8x96xf32>
    %c0_41 = arith.constant 0 : index
    %c0_42 = arith.constant 0 : index
    %74 = vector.load %arg12[%c0_41, %c0_42] : memref<1x96xf32, #tpu.memory_space<vmem>>, vector<1x96xf32>
    %75 = vector.broadcast %74 : vector<1x96xf32> to vector<8x96xf32>
    %76 = arith.addf %73, %75 : vector<8x96xf32>
    %cst_43 = arith.constant 0.000000e+00 : f32
    %77 = vector.broadcast %cst_43 : f32 to vector<8x96xf32>
    %78 = arith.maximumf %76, %77 : vector<8x96xf32>
    %79 = vector.extract_strided_slice %71 {offsets = [0, 0], sizes = [8, 6], strides = [1, 1]} : vector<8x18xf32> to vector<8x6xf32>
    %cst_44 = arith.constant dense<0xFF800000> : vector<8xf32>
    %80 = vector.multi_reduction <maximumf>, %79, %cst_44 [1] : vector<8x6xf32> to vector<8xf32>
    %81 = vector.shape_cast %80 : vector<8xf32> to vector<8x1xf32>
    %82 = vector.broadcast %81 : vector<8x1xf32> to vector<8x6xf32>
    %83 = arith.subf %79, %82 : vector<8x6xf32>
    %84 = math.exp %83 : vector<8x6xf32>
    %cst_45 = arith.constant dense<0.000000e+00> : vector<8xf32>
    %85 = vector.multi_reduction <add>, %84, %cst_45 [1] : vector<8x6xf32> to vector<8xf32>
    %86 = vector.shape_cast %85 : vector<8xf32> to vector<8x1xf32>
    %87 = tpu.reciprocal %86 {approx = true} : vector<8x1xf32> -> vector<8x1xf32>
    %88 = vector.broadcast %87 : vector<8x1xf32> to vector<8x6xf32>
    %89 = arith.mulf %84, %88 : vector<8x6xf32>
    %90 = vector.extract_strided_slice %71 {offsets = [0, 6], sizes = [8, 6], strides = [1, 1]} : vector<8x18xf32> to vector<8x6xf32>
    %cst_46 = arith.constant dense<0xFF800000> : vector<8xf32>
    %91 = vector.multi_reduction <maximumf>, %90, %cst_46 [1] : vector<8x6xf32> to vector<8xf32>
    %92 = vector.shape_cast %91 : vector<8xf32> to vector<8x1xf32>
    %93 = vector.broadcast %92 : vector<8x1xf32> to vector<8x6xf32>
    %94 = arith.subf %90, %93 : vector<8x6xf32>
    %95 = math.exp %94 : vector<8x6xf32>
    %cst_47 = arith.constant dense<0.000000e+00> : vector<8xf32>
    %96 = vector.multi_reduction <add>, %95, %cst_47 [1] : vector<8x6xf32> to vector<8xf32>
    %97 = vector.shape_cast %96 : vector<8xf32> to vector<8x1xf32>
    %98 = tpu.reciprocal %97 {approx = true} : vector<8x1xf32> -> vector<8x1xf32>
    %99 = vector.broadcast %98 : vector<8x1xf32> to vector<8x6xf32>
    %100 = arith.mulf %95, %99 : vector<8x6xf32>
    %101 = vector.extract_strided_slice %71 {offsets = [0, 12], sizes = [8, 6], strides = [1, 1]} : vector<8x18xf32> to vector<8x6xf32>
    %cst_48 = arith.constant dense<0xFF800000> : vector<8xf32>
    %102 = vector.multi_reduction <maximumf>, %101, %cst_48 [1] : vector<8x6xf32> to vector<8xf32>
    %103 = vector.shape_cast %102 : vector<8xf32> to vector<8x1xf32>
    %104 = vector.broadcast %103 : vector<8x1xf32> to vector<8x6xf32>
    %105 = arith.subf %101, %104 : vector<8x6xf32>
    %106 = math.exp %105 : vector<8x6xf32>
    %cst_49 = arith.constant dense<0.000000e+00> : vector<8xf32>
    %107 = vector.multi_reduction <add>, %106, %cst_49 [1] : vector<8x6xf32> to vector<8xf32>
    %108 = vector.shape_cast %107 : vector<8xf32> to vector<8x1xf32>
    %109 = tpu.reciprocal %108 {approx = true} : vector<8x1xf32> -> vector<8x1xf32>
    %110 = vector.broadcast %109 : vector<8x1xf32> to vector<8x6xf32>
    %111 = arith.mulf %106, %110 : vector<8x6xf32>
    %112 = tpu.concatenate %89, %100, %111 in 1 : vector<8x6xf32>, vector<8x6xf32>, vector<8x6xf32> -> vector<8x18xf32>
    %113 = vector.broadcast %64 : vector<1x18xf32> to vector<8x18xf32>
    %114 = arith.addf %112, %113 : vector<8x18xf32>
    %cst_50 = arith.constant dense<0.000000e+00> : vector<8x288xf32>
    %115 = tpu.matmul %114, %62, %cst_50 {dimension_numbers = #tpu.dot_dimension_numbers<[1], [0], [0], [1], [0, 0, 1, 1], [], []>} : vector<8x18xf32>, vector<18x288xf32>, vector<8x288xf32> -> vector<8x288xf32>
    %116 = tpu.concatenate %78, %78, %78 in 1 : vector<8x96xf32>, vector<8x96xf32>, vector<8x96xf32> -> vector<8x288xf32>
    %117 = arith.mulf %115, %116 : vector<8x288xf32>
    %cst_51 = arith.constant dense<0.000000e+00> : vector<8x48xf32>
    %118 = tpu.matmul %117, %63, %cst_51 {dimension_numbers = #tpu.dot_dimension_numbers<[1], [0], [0], [1], [0, 0, 1, 1], [], []>} : vector<8x288xf32>, vector<288x48xf32>, vector<8x48xf32> -> vector<8x48xf32>
    %cst_52 = arith.constant 0.000000e+00 : f32
    %119 = vector.broadcast %cst_52 : f32 to vector<8x80xf32>
    %120 = tpu.concatenate %118, %119 in 1 : vector<8x48xf32>, vector<8x80xf32> -> vector<8x128xf32>
    %c0_53 = arith.constant 0 : index
    %c0_54 = arith.constant 0 : index
    %121 = vector.load %arg16[%c0_53, %c0_54] : memref<8x128xf32, #tpu.memory_space<vmem>>, vector<8x128xf32>
    tpu.vector_store %arg16[%c0_53, %c0_54], %120 {strides = array<i32>} : memref<8x128xf32, #tpu.memory_space<vmem>>, vector<8x128xf32>,
    return
  }
  func.func @transform_0(%arg0: i32) -> (i32, i32) {
    %c0_i32 = arith.constant 0 : i32
    %c0_i32_0 = arith.constant 0 : i32
    return %arg0, %c0_i32 : i32, i32
  }
  func.func @transform_1(%arg0: i32) -> (i32, i32) {
    %c0_i32 = arith.constant 0 : i32
    %c0_i32_0 = arith.constant 0 : i32
    %c0_i32_1 = arith.constant 0 : i32
    return %c0_i32, %c0_i32_0 : i32, i32
  }
  func.func @transform_2(%arg0: i32) -> (i32, i32) {
    %c0_i32 = arith.constant 0 : i32
    %c0_i32_0 = arith.constant 0 : i32
    %c0_i32_1 = arith.constant 0 : i32
    return %c0_i32, %c0_i32_0 : i32, i32
  }
  func.func @transform_3(%arg0: i32) -> (i32, i32) {
    %c0_i32 = arith.constant 0 : i32
    %c0_i32_0 = arith.constant 0 : i32
    %c0_i32_1 = arith.constant 0 : i32
    return %c0_i32, %c0_i32_0 : i32, i32
  }
  func.func @transform_4(%arg0: i32) -> (i32, i32) {
    %c0_i32 = arith.constant 0 : i32
    %c0_i32_0 = arith.constant 0 : i32
    %c0_i32_1 = arith.constant 0 : i32
    return %c0_i32, %c0_i32_0 : i32, i32
  }
  func.func @transform_5(%arg0: i32) -> (i32, i32) {
    %c0_i32 = arith.constant 0 : i32
    %c0_i32_0 = arith.constant 0 : i32
    %c0_i32_1 = arith.constant 0 : i32
    return %c0_i32, %c0_i32_0 : i32, i32
  }
  func.func @transform_6(%arg0: i32) -> (i32, i32) {
    %c0_i32 = arith.constant 0 : i32
    %c0_i32_0 = arith.constant 0 : i32
    %c0_i32_1 = arith.constant 0 : i32
    return %c0_i32, %c0_i32_0 : i32, i32
  }
  func.func @transform_7(%arg0: i32) -> (i32, i32) {
    %c0_i32 = arith.constant 0 : i32
    %c0_i32_0 = arith.constant 0 : i32
    %c0_i32_1 = arith.constant 0 : i32
    return %c0_i32, %c0_i32_0 : i32, i32
  }
  func.func @transform_8(%arg0: i32) -> (i32, i32) {
    %c0_i32 = arith.constant 0 : i32
    %c0_i32_0 = arith.constant 0 : i32
    %c0_i32_1 = arith.constant 0 : i32
    return %c0_i32, %c0_i32_0 : i32, i32
  }
  func.func @transform_9(%arg0: i32) -> (i32, i32) {
    %c0_i32 = arith.constant 0 : i32
    %c0_i32_0 = arith.constant 0 : i32
    %c0_i32_1 = arith.constant 0 : i32
    return %c0_i32, %c0_i32_0 : i32, i32
  }
  func.func @transform_10(%arg0: i32) -> (i32, i32) {
    %c0_i32 = arith.constant 0 : i32
    %c0_i32_0 = arith.constant 0 : i32
    %c0_i32_1 = arith.constant 0 : i32
    return %c0_i32, %c0_i32_0 : i32, i32
  }
  func.func @transform_11(%arg0: i32) -> (i32, i32) {
    %c0_i32 = arith.constant 0 : i32
    %c0_i32_0 = arith.constant 0 : i32
    %c0_i32_1 = arith.constant 0 : i32
    return %c0_i32, %c0_i32_0 : i32, i32
  }
  func.func @transform_12(%arg0: i32) -> (i32, i32) {
    %c0_i32 = arith.constant 0 : i32
    %c0_i32_0 = arith.constant 0 : i32
    %c0_i32_1 = arith.constant 0 : i32
    return %c0_i32, %c0_i32_0 : i32, i32
  }
  func.func @transform_13(%arg0: i32) -> (i32, i32) {
    %c0_i32 = arith.constant 0 : i32
    %c0_i32_0 = arith.constant 0 : i32
    %c0_i32_1 = arith.constant 0 : i32
    return %c0_i32, %c0_i32_0 : i32, i32
  }
  func.func @transform_14(%arg0: i32) -> (i32, i32) {
    %c0_i32 = arith.constant 0 : i32
    %c0_i32_0 = arith.constant 0 : i32
    %c0_i32_1 = arith.constant 0 : i32
    return %c0_i32, %c0_i32_0 : i32, i32
  }
  func.func @transform_15(%arg0: i32) -> (i32, i32) {
    %c0_i32 = arith.constant 0 : i32
    %c0_i32_0 = arith.constant 0 : i32
    return %arg0, %c0_i32 : i32, i32
  }
}

</mosaic_0001>

<llo_original>
// kernel: tpu_custom_call.1
$region0: #{tpu_custom_call.1}
  #allocation0 [shape = 'u32[]', space=smem, size = 0x4, offset = 0x4, fixed_abs, tag = 'smem constant byte address 0x4 - core index']
  #allocation1 [shape = 'u32[144,128]{1,0:T(1,128)}', space=vmem, size = 0x12000, scoped, tag = 'internal scratch']
  %s0 = inlined_call_operand.vmem [shape: f32[8,32], index: 0, kind: input, shape index: {}]
  %s1 = inlined_call_operand.vmem [shape: f32[32,210], index: 1, kind: input, shape index: {}]
  %s2 = inlined_call_operand.vmem [shape: f32[1,210], index: 2, kind: input, shape index: {}]
  %s3 = inlined_call_operand.vmem [shape: f32[192,96], index: 3, kind: input, shape index: {}]
  %s4 = inlined_call_operand.vmem [shape: f32[1,96], index: 4, kind: input, shape index: {}]
  %s5 = inlined_call_operand.vmem [shape: f32[18,288], index: 5, kind: input, shape index: {}]
  %s6 = inlined_call_operand.vmem [shape: f32[288,48], index: 6, kind: input, shape index: {}]
  %s7 = inlined_call_operand.vmem [shape: f32[1,18], index: 7, kind: input, shape index: {}]
  %s8 = inlined_call_operand.vmem [shape: f32[48,114], index: 8, kind: input, shape index: {}]
  %s9 = inlined_call_operand.vmem [shape: f32[1,114], index: 9, kind: input, shape index: {}]
  %s10 = inlined_call_operand.vmem [shape: f32[96,96], index: 10, kind: input, shape index: {}]
  %s11 = inlined_call_operand.vmem [shape: f32[1,96], index: 11, kind: input, shape index: {}]
  %s12 = inlined_call_operand.vmem [shape: f32[18,288], index: 12, kind: input, shape index: {}]
  %s13 = inlined_call_operand.vmem [shape: f32[288,48], index: 13, kind: input, shape index: {}]
  %s14 = inlined_call_operand.vmem [shape: f32[1,18], index: 14, kind: input, shape index: {}]
  %s15 = inlined_call_operand.hbm [shape: f32[8,128], index: 15, kind: output, shape index: {}]
  %s16 = sld [smem:[#allocation0]]
  $region70: #{tpu_custom_call.1} parent=0
    _
  %s18 = ssub.s32 1, %s16
  %s19 = scalar_select 0, %s18, %s16
  $region1: #{tpu_custom_call.1} parent=0
    #allocation2 [shape = 'u8[4096]{0}', space=vmem, size = 0x1000, scoped, tag = 'output window, operand 0, single buffered']
    #allocation3 [shape = 's32[1]{0}', space=sflag, size = 0x4, scoped, tag = 'scoped memory for tpu_custom_call.1']
    %20 = vsyncpa [#allocation3], 0
    // Predicated region
    $region2: #{tpu_custom_call.1} parent=1 // pred_check
      _
    $region3: #{tpu_custom_call.1} parent=1 // pred_check_branch
      %22 = sbr.rel (0) target = $region5
    $region4: #{tpu_custom_call.1} parent=1 // pred_region
      _
    $region5: #{tpu_custom_call.1} parent=1 // pred_fallthru
      _
    // Predicated region
    $region6: #{tpu_custom_call.1} parent=1 // pred_check
      _
    $region7: #{tpu_custom_call.1} parent=1 // pred_check_branch
      %24 = sbr.rel (0) target = $region9
    $region8: #{tpu_custom_call.1} parent=1 // pred_region
      _
    $region9: #{tpu_custom_call.1} parent=1 // pred_fallthru
      _
    // Predicated region
    $region10: #{tpu_custom_call.1} parent=1 // pred_check
      _
    $region11: #{tpu_custom_call.1} parent=1 // pred_check_branch
      %26 = sbr.rel (0) target = $region13
    $region12: #{tpu_custom_call.1} parent=1 // pred_region
      _
    $region13: #{tpu_custom_call.1} parent=1 // pred_fallthru
      _
    // Predicated region
    $region14: #{tpu_custom_call.1} parent=1 // pred_check
      _
    $region15: #{tpu_custom_call.1} parent=1 // pred_check_branch
      %28 = sbr.rel (0) target = $region17
    $region16: #{tpu_custom_call.1} parent=1 // pred_region
      _
    $region17: #{tpu_custom_call.1} parent=1 // pred_fallthru
      _
    // Predicated region
    $region18: #{tpu_custom_call.1} parent=1 // pred_check
      _
    $region19: #{tpu_custom_call.1} parent=1 // pred_check_branch
      %30 = sbr.rel (0) target = $region21
    $region20: #{tpu_custom_call.1} parent=1 // pred_region
      _
    $region21: #{tpu_custom_call.1} parent=1 // pred_fallthru
      _
    // Predicated region
    $region22: #{tpu_custom_call.1} parent=1 // pred_check
      _
    $region23: #{tpu_custom_call.1} parent=1 // pred_check_branch
      %32 = sbr.rel (0) target = $region25
    $region24: #{tpu_custom_call.1} parent=1 // pred_region
      _
    $region25: #{tpu_custom_call.1} parent=1 // pred_fallthru
      _
    // Predicated region
    $region26: #{tpu_custom_call.1} parent=1 // pred_check
      _
    $region27: #{tpu_custom_call.1} parent=1 // pred_check_branch
      %34 = sbr.rel (0) target = $region29
    $region28: #{tpu_custom_call.1} parent=1 // pred_region
      _
    $region29: #{tpu_custom_call.1} parent=1 // pred_fallthru
      _
    // Predicated region
    $region30: #{tpu_custom_call.1} parent=1 // pred_check
      _
    $region31: #{tpu_custom_call.1} parent=1 // pred_check_branch
      %36 = sbr.rel (0) target = $region33
    $region32: #{tpu_custom_call.1} parent=1 // pred_region
      _
    $region33: #{tpu_custom_call.1} parent=1 // pred_fallthru
      _
    // Predicated region
    $region34: #{tpu_custom_call.1} parent=1 // pred_check
      _
    $region35: #{tpu_custom_call.1} parent=1 // pred_check_branch
      %38 = sbr.rel (0) target = $region37
    $region36: #{tpu_custom_call.1} parent=1 // pred_region
      _
    $region37: #{tpu_custom_call.1} parent=1 // pred_fallthru
      _
    // Predicated region
    $region38: #{tpu_custom_call.1} parent=1 // pred_check
      _
    $region39: #{tpu_custom_call.1} parent=1 // pred_check_branch
      %40 = sbr.rel (0) target = $region41
    $region40: #{tpu_custom_call.1} parent=1 // pred_region
      _
    $region41: #{tpu_custom_call.1} parent=1 // pred_fallthru
      _
    // Predicated region
    $region42: #{tpu_custom_call.1} parent=1 // pred_check
      _
    $region43: #{tpu_custom_call.1} parent=1 // pred_check_branch
      %42 = sbr.rel (0) target = $region45
    $region44: #{tpu_custom_call.1} parent=1 // pred_region
      _
    $region45: #{tpu_custom_call.1} parent=1 // pred_fallthru
      _
    // Predicated region
    $region46: #{tpu_custom_call.1} parent=1 // pred_check
      _
    $region47: #{tpu_custom_call.1} parent=1 // pred_check_branch
      %44 = sbr.rel (0) target = $region49
    $region48: #{tpu_custom_call.1} parent=1 // pred_region
      _
    $region49: #{tpu_custom_call.1} parent=1 // pred_fallthru
      _
    // Predicated region
    $region50: #{tpu_custom_call.1} parent=1 // pred_check
      _
    $region51: #{tpu_custom_call.1} parent=1 // pred_check_branch
      %46 = sbr.rel (0) target = $region53
    $region52: #{tpu_custom_call.1} parent=1 // pred_region
      _
    $region53: #{tpu_custom_call.1} parent=1 // pred_fallthru
      _
    // Predicated region
    $region54: #{tpu_custom_call.1} parent=1 // pred_check
      _
    $region55: #{tpu_custom_call.1} parent=1 // pred_check_branch
      %48 = sbr.rel (0) target = $region57
    $region56: #{tpu_custom_call.1} parent=1 // pred_region
      _
    $region57: #{tpu_custom_call.1} parent=1 // pred_fallthru
      _
    // Predicated region
    $region58: #{tpu_custom_call.1} parent=1 // pred_check
      _
    $region59: #{tpu_custom_call.1} parent=1 // pred_check_branch
      %50 = sbr.rel (0) target = $region61
    $region60: #{tpu_custom_call.1} parent=1 // pred_region
      _
    $region61: #{tpu_custom_call.1} parent=1 // pred_fallthru
      _
    %v51 = vld [vmem:[%s0] sm:$0xff]
    %v52 = vld [vmem:[%s1] sm:$0xff]
    %v53 = vld [vmem:[%s1 + $0x8] sm:$0xff]
    %v54 = vld [vmem:[%s1 + $0x10] sm:$0xff]
    %v55 = vld [vmem:[%s1 + $0x18] sm:$0xff]
    %v56 = vld [vmem:[%s1 + $0x20] sm:$0xff]
    %v57 = vld [vmem:[%s1 + $0x28] sm:$0xff]
    %v58 = vld [vmem:[%s1 + $0x30] sm:$0xff]
    %v59 = vld [vmem:[%s1 + $0x38] sm:$0xff]
    %v60 = vld [vmem:[%s2] sm:$0x3]
    %v61 = vld [vmem:[%s5] sm:$0xff]
    %v62 = vld [vmem:[%s5 + $0x8] sm:$0xff]
    %v63 = vld [vmem:[%s5 + $0x10] sm:$0xff]
    %v64 = vld [vmem:[%s5 + $0x18] sm:$0xff]
    %v65 = vld [vmem:[%s5 + $0x20] sm:$0xff]
    %v66 = vld [vmem:[%s5 + $0x28] sm:$0xff]
    %v67 = vld [vmem:[%s5 + $0x30] sm:$0x3]
    %v68 = vld [vmem:[%s5 + $0x38] sm:$0x3]
    %v69 = vld [vmem:[%s5 + $0x40] sm:$0x3]
    %v70 = vld [vmem:[%s6] sm:$0xff]
    %v71 = vld [vmem:[%s6 + $0x8] sm:$0xff]
    %v72 = vld [vmem:[%s6 + $0x10] sm:$0xff]
    %v73 = vld [vmem:[%s6 + $0x18] sm:$0xff]
    %v74 = vld [vmem:[%s6 + $0x20] sm:$0xff]
    %v75 = vld [vmem:[%s6 + $0x28] sm:$0xff]
    %v76 = vld [vmem:[%s6 + $0x30] sm:$0xff]
    %v77 = vld [vmem:[%s6 + $0x38] sm:$0xff]
    %v78 = vld [vmem:[%s6 + $0x40] sm:$0xff]
    %v79 = vld [vmem:[%s6 + $0x48] sm:$0xff]
    %v80 = vld [vmem:[%s6 + $0x50] sm:$0xff]
    %v81 = vld [vmem:[%s6 + $0x58] sm:$0xff]
    %v82 = vld [vmem:[%s6 + $0x60] sm:$0xff]
    %v83 = vld [vmem:[%s6 + $0x68] sm:$0xff]
    %v84 = vld [vmem:[%s6 + $0x70] sm:$0xff]
    %v85 = vld [vmem:[%s6 + $0x78] sm:$0xff]
    %v86 = vld [vmem:[%s6 + $0x80] sm:$0xff]
    %v87 = vld [vmem:[%s6 + $0x88] sm:$0xff]
    %v88 = vld [vmem:[%s6 + $0x90] sm:$0xff]
    %v89 = vld [vmem:[%s6 + $0x98] sm:$0xff]
    %v90 = vld [vmem:[%s6 + $0xa0] sm:$0xff]
    %v91 = vld [vmem:[%s6 + $0xa8] sm:$0xff]
    %v92 = vld [vmem:[%s6 + $0xb0] sm:$0xff]
    %v93 = vld [vmem:[%s6 + $0xb8] sm:$0xff]
    %v94 = vld [vmem:[%s6 + $0xc0] sm:$0xff]
    %v95 = vld [vmem:[%s6 + $0xc8] sm:$0xff]
    %v96 = vld [vmem:[%s6 + $0xd0] sm:$0xff]
    %v97 = vld [vmem:[%s6 + $0xd8] sm:$0xff]
    %v98 = vld [vmem:[%s6 + $0xe0] sm:$0xff]
    %v99 = vld [vmem:[%s6 + $0xe8] sm:$0xff]
    %v100 = vld [vmem:[%s6 + $0xf0] sm:$0xff]
    %v101 = vld [vmem:[%s6 + $0xf8] sm:$0xff]
    %v102 = vld [vmem:[%s6 + $0x100] sm:$0xff]
    %v103 = vld [vmem:[%s6 + $0x108] sm:$0xff]
    %v104 = vld [vmem:[%s6 + $0x110] sm:$0xff]
    %v105 = vld [vmem:[%s6 + $0x118] sm:$0xff]
    %v106 = vld [vmem:[%s7] sm:$0x1]
    %v108 = vlaneseq
    %v109 = vshrl.u32 %v108, 7
    %v110 = vsub.s32 0, %v109
    %v111 = vrot.slane %v60, %v110
    %v112 = vlaneseq
    %v113 = vshrl.u32 %v112, 7
    %v114 = vsub.s32 1, %v113
    %v115 = vrot.slane %v60, %v114
    %vm118 = vcmask 261120
    %v120 = vsel %vm118, %v51, 0
    %122 = vmatprep.subr.mxu0 0.0
    %123 = vmatpush1.msra.mxu0 0.0
    %124 = vmatprep.subr.mxu0 0.0
    %125 = vmatpush1.msra.mxu0 0.0
    %126 = vmatprep.subr.mxu0 0.0
    %127 = vmatpush1.msra.mxu0 0.0
    %128 = vmatprep.subr.mxu0 0.0
    %129 = vmatpush1.msra.mxu0 0.0
    %130 = vmatprep.subr.mxu0 0.0
    %131 = vmatpush1.msra.mxu0 0.0
    %132 = vmatprep.subr.mxu0 0.0
    %133 = vmatpush1.msra.mxu0 0.0
    %134 = vmatprep.subr.mxu0 0.0
    %135 = vmatpush1.msra.mxu0 0.0
    %136 = vmatprep.subr.mxu0 0.0
    %137 = vmatpush1.msra.mxu0 0.0
    %138 = vmatprep.subr.mxu0 0.0
    %139 = vmatpush1.msra.mxu0 0.0
    %140 = vmatprep.subr.mxu0 0.0
    %141 = vmatpush1.msra.mxu0 0.0
    %142 = vmatprep.subr.mxu0 0.0
    %143 = vmatpush1.msra.mxu0 0.0
    %144 = vmatprep.subr.mxu0 0.0
    %145 = vmatpush1.msra.mxu0 0.0
    %146 = vmatprep.subr.mxu0 %v59
    %147 = vmatpush1.msra.mxu0 %v58
    %148 = vmatprep.subr.mxu0 %v57
    %149 = vmatpush1.msra.mxu0 %v56
    %150 = vmatprep.subr.mxu0 %v55
    %151 = vmatpush1.msra.mxu0 %v54
    %152 = vmatprep.subr.mxu0 %v53
    %153 = vmatpush1.msra.mxu0 %v52
    %154 = vmatprep.subr.mxu0 0.0
    %155 = vmatpush2.msra.mxu0 0.0
    %156 = vmatprep.subr.mxu0 0.0
    %157 = vmatpush2.msra.mxu0 0.0
    %158 = vmatprep.subr.mxu0 0.0
    %159 = vmatpush2.msra.mxu0 0.0
    %160 = vmatprep.subr.mxu0 0.0
    %161 = vmatpush2.msra.mxu0 0.0
    %162 = vmatprep.subr.mxu0 0.0
    %163 = vmatpush2.msra.mxu0 0.0
    %164 = vmatprep.subr.mxu0 0.0
    %165 = vmatpush2.msra.mxu0 0.0
    %166 = vmatprep.subr.mxu0 0.0
    %167 = vmatpush2.msra.mxu0 0.0
    %168 = vmatprep.subr.mxu0 0.0
    %169 = vmatpush2.msra.mxu0 0.0
    %170 = vmatprep.subr.mxu0 0.0
    %171 = vmatpush2.msra.mxu0 0.0
    %172 = vmatprep.subr.mxu0 0.0
    %173 = vmatpush2.msra.mxu0 0.0
    %174 = vmatprep.subr.mxu0 0.0
    %175 = vmatpush2.msra.mxu0 0.0
    %176 = vmatprep.subr.mxu0 0.0
    %177 = vmatpush2.msra.mxu0 0.0
    %178 = vmatprep.subr.mxu0 0.0
    %179 = vmatpush2.msra.mxu0 0.0
    %180 = vmatprep.subr.mxu0 0.0
    %181 = vmatpush2.msra.mxu0 0.0
    %182 = vmatprep.subr.mxu0 0.0
    %183 = vmatpush2.msra.mxu0 0.0
    %184 = vmatprep.subr.mxu0 0.0
    %185 = vmatpush2.msra.mxu0 0.0
    %186 = vmatprep.mubr.f32.mxu0 0.0
    %187 = vmatmul.mubr.f32.gmra.mxu0 %v120
    %v188 = vpop.f32.mrf.mxu0
    %v189 = vadd.f32 %v111, %v188
    %v190 = vpop.f32.mrf.mxu0
    %v191 = vadd.f32 %v115, %v190
    %192 = vdwg.mxu0
    %v193 = vmax.f32 %v189, 0.0
    %v194 = vmax.f32 %v191, 0.0
    %v195 = vld [vmem:[%s3] sm:$0xff]
    %v196 = vld [vmem:[%s3 + $0x8] sm:$0xff]
    %v197 = vld [vmem:[%s3 + $0x10] sm:$0xff]
    %v198 = vld [vmem:[%s3 + $0x18] sm:$0xff]
    %v199 = vld [vmem:[%s3 + $0x20] sm:$0xff]
    %v200 = vld [vmem:[%s3 + $0x28] sm:$0xff]
    %v201 = vld [vmem:[%s3 + $0x30] sm:$0xff]
    %v202 = vld [vmem:[%s3 + $0x38] sm:$0xff]
    %v203 = vld [vmem:[%s3 + $0x40] sm:$0xff]
    %v204 = vld [vmem:[%s3 + $0x48] sm:$0xff]
    %v205 = vld [vmem:[%s3 + $0x50] sm:$0xff]
    %v206 = vld [vmem:[%s3 + $0x58] sm:$0xff]
    %v207 = vld [vmem:[%s3 + $0x60] sm:$0xff]
    %v208 = vld [vmem:[%s3 + $0x68] sm:$0xff]
    %v209 = vld [vmem:[%s3 + $0x70] sm:$0xff]
    %v210 = vld [vmem:[%s3 + $0x78] sm:$0xff]
    %v211 = vld [vmem:[%s3 + $0x80] sm:$0xff]
    %v212 = vld [vmem:[%s3 + $0x88] sm:$0xff]
    %v213 = vld [vmem:[%s3 + $0x90] sm:$0xff]
    %v214 = vld [vmem:[%s3 + $0x98] sm:$0xff]
    %v215 = vld [vmem:[%s3 + $0xa0] sm:$0xff]
    %v216 = vld [vmem:[%s3 + $0xa8] sm:$0xff]
    %v217 = vld [vmem:[%s3 + $0xb0] sm:$0xff]
    %v218 = vld [vmem:[%s3 + $0xb8] sm:$0xff]
    %v219 = vld [vmem:[%s4] sm:$0x1]
    %v221 = vlaneseq
    %v222 = vshrl.u32 %v221, 7
    %v223 = vsub.s32 0, %v222
    %v224 = vrot.slane %v219, %v223
    %vm226 = vcmask 523264
    %v228 = vsel %vm226, %v194, 0
    %230 = vmatprep.subr.mxu0 0.0
    %231 = vmatpush1.msra.mxu0 %v210
    %232 = vmatprep.subr.mxu0 0.0
    %233 = vmatpush1.msra.mxu0 %v209
    %234 = vmatprep.subr.mxu0 0.0
    %235 = vmatpush1.msra.mxu0 %v208
    %236 = vmatprep.subr.mxu0 0.0
    %237 = vmatpush1.msra.mxu0 %v207
    %238 = vmatprep.subr.mxu0 0.0
    %239 = vmatpush1.msra.mxu0 %v206
    %240 = vmatprep.subr.mxu0 0.0
    %241 = vmatpush1.msra.mxu0 %v205
    %242 = vmatprep.subr.mxu0 0.0
    %243 = vmatpush1.msra.mxu0 %v204
    %244 = vmatprep.subr.mxu0 0.0
    %245 = vmatpush1.msra.mxu0 %v203
    %246 = vmatprep.subr.mxu0 0.0
    %247 = vmatpush1.msra.mxu0 %v202
    %248 = vmatprep.subr.mxu0 0.0
    %249 = vmatpush1.msra.mxu0 %v201
    %250 = vmatprep.subr.mxu0 0.0
    %251 = vmatpush1.msra.mxu0 %v200
    %252 = vmatprep.subr.mxu0 0.0
    %253 = vmatpush1.msra.mxu0 %v199
    %254 = vmatprep.subr.mxu0 0.0
    %255 = vmatpush1.msra.mxu0 %v198
    %256 = vmatprep.subr.mxu0 0.0
    %257 = vmatpush1.msra.mxu0 %v197
    %258 = vmatprep.subr.mxu0 0.0
    %259 = vmatpush1.msra.mxu0 %v196
    %260 = vmatprep.subr.mxu0 0.0
    %261 = vmatpush1.msra.mxu0 %v195
    %262 = vmatprep.subr.mxu0 0.0
    %263 = vmatpush2.msra.mxu0 0.0
    %264 = vmatprep.subr.mxu0 0.0
    %265 = vmatpush2.msra.mxu0 0.0
    %266 = vmatprep.subr.mxu0 0.0
    %267 = vmatpush2.msra.mxu0 0.0
    %268 = vmatprep.subr.mxu0 0.0
    %269 = vmatpush2.msra.mxu0 0.0
    %270 = vmatprep.subr.mxu0 0.0
    %271 = vmatpush2.msra.mxu0 0.0
    %272 = vmatprep.subr.mxu0 0.0
    %273 = vmatpush2.msra.mxu0 0.0
    %274 = vmatprep.subr.mxu0 0.0
    %275 = vmatpush2.msra.mxu0 0.0
    %276 = vmatprep.subr.mxu0 0.0
    %277 = vmatpush2.msra.mxu0 0.0
    %278 = vmatprep.subr.mxu0 0.0
    %279 = vmatpush2.msra.mxu0 %v218
    %280 = vmatprep.subr.mxu0 0.0
    %281 = vmatpush2.msra.mxu0 %v217
    %282 = vmatprep.subr.mxu0 0.0
    %283 = vmatpush2.msra.mxu0 %v216
    %284 = vmatprep.subr.mxu0 0.0
    %285 = vmatpush2.msra.mxu0 %v215
    %286 = vmatprep.subr.mxu0 0.0
    %287 = vmatpush2.msra.mxu0 %v214
    %288 = vmatprep.subr.mxu0 0.0
    %289 = vmatpush2.msra.mxu0 %v213
    %290 = vmatprep.subr.mxu0 0.0
    %291 = vmatpush2.msra.mxu0 %v212
    %292 = vmatprep.subr.mxu0 0.0
    %293 = vmatpush2.msra.mxu0 %v211
    %294 = vmatprep.mubr.f32.mxu0 %v228
    %295 = vmatmul.mubr.f32.gmra.mxu0 %v193
    %v296 = vpop.f32.mrf.mxu0
    %v297 = vadd.f32 %v224, %v296
    %v298 = vpop.f32.mrf.mxu0
    %299 = vdwg.mxu0
    %v300 = vmax.f32 %v297, 0.0
    %vm301 = vcmask 572928
    %v302 = vsel %vm301, %v191, -inf
    %303 = vmax.xlane.f32.xlu0 %v302
    %v304 = vpop.xlane.xlu0 %303
    %v305 = vsub.f32 %v191, %v304
    %v306 = vmul.f32 %v305, 1.442695
    %v307 = vpow.pop %v306
    %309 = vrot.lane.b32.xlu0 %v307, 64
    %v310 = vpop.permute.xlu0 %309
    %vm312 = vcmask 48128
    %v313 = vsel %vm312, %v310, 0.0
    %314 = vadd.xlane.f32.xlu0 %v313
    %v315 = vpop.xlane.xlu0 %314
    %v316 = vrcp.pop %v315
    %v317 = vmul.f32 %v307, %v316
    %vm318 = vcmask 622128
    %v319 = vsel %vm318, %v191, -inf
    %320 = vmax.xlane.f32.xlu0 %v319
    %v321 = vpop.xlane.xlu0 %320
    %v322 = vsub.f32 %v191, %v321
    %v323 = vmul.f32 %v322, 1.442695
    %v324 = vpow.pop %v323
    %326 = vrot.lane.b32.xlu0 %v324, 58
    %v327 = vpop.permute.xlu0 %326
    %v329 = vsel %vm312, %v327, 0.0
    %330 = vadd.xlane.f32.xlu0 %v329
    %v331 = vpop.xlane.xlu0 %330
    %v332 = vrcp.pop %v331
    %v333 = vmul.f32 %v324, %v332
    %vm334 = vcmask 671328
    %v335 = vsel %vm334, %v191, -inf
    %336 = vmax.xlane.f32.xlu0 %v335
    %v337 = vpop.xlane.xlu0 %336
    %v338 = vsub.f32 %v191, %v337
    %v339 = vmul.f32 %v338, 1.442695
    %v340 = vpow.pop %v339
    %342 = vrot.lane.b32.xlu0 %v340, 52
    %v343 = vpop.permute.xlu0 %342
    %v345 = vsel %vm312, %v343, 0.0
    %346 = vadd.xlane.f32.xlu0 %v345
    %v347 = vpop.xlane.xlu0 %346
    %v348 = vrcp.pop %v347
    %v349 = vmul.f32 %v340, %v348
    %351 = vrot.lane.b32.xlu0 %v317, 64
    %v352 = vpop.permute.xlu0 %351
    %355 = vrot.lane.b32.xlu0 %v333, 64
    %v356 = vpop.permute.xlu0 %355
    %359 = vrot.lane.b32.xlu0 %v349, 64
    %v360 = vpop.permute.xlu0 %359
    %v362 = vsel %vm312, %v352, %v356
    %vm363 = vcmask 97280
    %v364 = vsel %vm363, %v362, %v360
    %v366 = vlaneseq
    %v367 = vshrl.u32 %v366, 7
    %v368 = vsub.s32 0, %v367
    %v369 = vrot.slane %v106, %v368
    %v371 = vadd.f32 %v364, %v369
    %vm372 = vcmask 146432
    %v374 = vsel %vm372, %v371, 0
    %vm376 = vcmask 1041408
    %v378 = vsel %vm376, %v67, 0
    %v381 = vsel %vm376, %v68, 0
    %v384 = vsel %vm376, %v69, 0
    %386 = vmatprep.subr.mxu0 0.0
    %387 = vmatpush1.msra.mxu0 0.0
    %388 = vmatprep.subr.mxu0 0.0
    %389 = vmatpush1.msra.mxu0 0.0
    %390 = vmatprep.subr.mxu0 0.0
    %391 = vmatpush1.msra.mxu0 0.0
    %392 = vmatprep.subr.mxu0 0.0
    %393 = vmatpush1.msra.mxu0 0.0
    %394 = vmatprep.subr.mxu0 0.0
    %395 = vmatpush1.msra.mxu0 0.0
    %396 = vmatprep.subr.mxu0 0.0
    %397 = vmatpush1.msra.mxu0 0.0
    %398 = vmatprep.subr.mxu0 0.0
    %399 = vmatpush1.msra.mxu0 0.0
    %400 = vmatprep.subr.mxu0 0.0
    %401 = vmatpush1.msra.mxu0 0.0
    %402 = vmatprep.subr.mxu0 0.0
    %403 = vmatpush1.msra.mxu0 0.0
    %404 = vmatprep.subr.mxu0 0.0
    %405 = vmatpush1.msra.mxu0 0.0
    %406 = vmatprep.subr.mxu0 0.0
    %407 = vmatpush1.msra.mxu0 0.0
    %408 = vmatprep.subr.mxu0 0.0
    %409 = vmatpush1.msra.mxu0 0.0
    %410 = vmatprep.subr.mxu0 0.0
    %411 = vmatpush1.msra.mxu0 0.0
    %412 = vmatprep.subr.mxu0 %v381
    %413 = vmatpush1.msra.mxu0 %v378
    %414 = vmatprep.subr.mxu0 %v65
    %415 = vmatpush1.msra.mxu0 %v64
    %416 = vmatprep.subr.mxu0 %v62
    %417 = vmatpush1.msra.mxu0 %v61
    %418 = vmatprep.subr.mxu0 0.0
    %419 = vmatpush2.msra.mxu0 0.0
    %420 = vmatprep.subr.mxu0 0.0
    %421 = vmatpush2.msra.mxu0 0.0
    %422 = vmatprep.subr.mxu0 0.0
    %423 = vmatpush2.msra.mxu0 0.0
    %424 = vmatprep.subr.mxu0 0.0
    %425 = vmatpush2.msra.mxu0 0.0
    %426 = vmatprep.subr.mxu0 0.0
    %427 = vmatpush2.msra.mxu0 0.0
    %428 = vmatprep.subr.mxu0 0.0
    %429 = vmatpush2.msra.mxu0 0.0
    %430 = vmatprep.subr.mxu0 0.0
    %431 = vmatpush2.msra.mxu0 0.0
    %432 = vmatprep.subr.mxu0 0.0
    %433 = vmatpush2.msra.mxu0 0.0
    %434 = vmatprep.subr.mxu0 0.0
    %435 = vmatpush2.msra.mxu0 0.0
    %436 = vmatprep.subr.mxu0 0.0
    %437 = vmatpush2.msra.mxu0 0.0
    %438 = vmatprep.subr.mxu0 0.0
    %439 = vmatpush2.msra.mxu0 0.0
    %440 = vmatprep.subr.mxu0 0.0
    %441 = vmatpush2.msra.mxu0 0.0
    %442 = vmatprep.subr.mxu0 0.0
    %443 = vmatpush2.msra.mxu0 0.0
    %444 = vmatprep.subr.mxu0 0.0
    %445 = vmatpush2.msra.mxu0 0.0
    %446 = vmatprep.subr.mxu0 0.0
    %447 = vmatpush2.msra.mxu0 0.0
    %448 = vmatprep.subr.mxu0 0.0
    %449 = vmatpush2.msra.mxu0 0.0
    %450 = vmatprep.mubr.f32.mxu0 0.0
    %451 = vmatmul.mubr.f32.gmra.mxu0 %v374
    %v452 = vpop.f32.mrf.mxu0
    %v453 = vadd.f32 0.0, %v452
    %v454 = vpop.f32.mrf.mxu0
    %v455 = vadd.f32 0.0, %v454
    %456 = vdwg.mxu0
    %457 = vmatprep.subr.mxu0 0.0
    %458 = vmatpush1.msra.mxu0 0.0
    %459 = vmatprep.subr.mxu0 0.0
    %460 = vmatpush1.msra.mxu0 0.0
    %461 = vmatprep.subr.mxu0 0.0
    %462 = vmatpush1.msra.mxu0 0.0
    %463 = vmatprep.subr.mxu0 0.0
    %464 = vmatpush1.msra.mxu0 0.0
    %465 = vmatprep.subr.mxu0 0.0
    %466 = vmatpush1.msra.mxu0 0.0
    %467 = vmatprep.subr.mxu0 0.0
    %468 = vmatpush1.msra.mxu0 0.0
    %469 = vmatprep.subr.mxu0 0.0
    %470 = vmatpush1.msra.mxu0 0.0
    %471 = vmatprep.subr.mxu0 0.0
    %472 = vmatpush1.msra.mxu0 0.0
    %473 = vmatprep.subr.mxu0 0.0
    %474 = vmatpush1.msra.mxu0 0.0
    %475 = vmatprep.subr.mxu0 0.0
    %476 = vmatpush1.msra.mxu0 0.0
    %477 = vmatprep.subr.mxu0 0.0
    %478 = vmatpush1.msra.mxu0 0.0
    %479 = vmatprep.subr.mxu0 0.0
    %480 = vmatpush1.msra.mxu0 0.0
    %481 = vmatprep.subr.mxu0 0.0
    %482 = vmatpush1.msra.mxu0 0.0
    %483 = vmatprep.subr.mxu0 0.0
    %484 = vmatpush1.msra.mxu0 %v384
    %485 = vmatprep.subr.mxu0 0.0
    %486 = vmatpush1.msra.mxu0 %v66
    %487 = vmatprep.subr.mxu0 0.0
    %488 = vmatpush1.msra.mxu0 %v63
    %489 = vmatprep.subr.mxu0 0.0
    %490 = vmatpush2.msra.mxu0 0.0
    %491 = vmatprep.subr.mxu0 0.0
    %492 = vmatpush2.msra.mxu0 0.0
    %493 = vmatprep.subr.mxu0 0.0
    %494 = vmatpush2.msra.mxu0 0.0
    %495 = vmatprep.subr.mxu0 0.0
    %496 = vmatpush2.msra.mxu0 0.0
    %497 = vmatprep.subr.mxu0 0.0
    %498 = vmatpush2.msra.mxu0 0.0
    %499 = vmatprep.subr.mxu0 0.0
    %500 = vmatpush2.msra.mxu0 0.0
    %501 = vmatprep.subr.mxu0 0.0
    %502 = vmatpush2.msra.mxu0 0.0
    %503 = vmatprep.subr.mxu0 0.0
    %504 = vmatpush2.msra.mxu0 0.0
    %505 = vmatprep.subr.mxu0 0.0
    %506 = vmatpush2.msra.mxu0 0.0
    %507 = vmatprep.subr.mxu0 0.0
    %508 = vmatpush2.msra.mxu0 0.0
    %509 = vmatprep.subr.mxu0 0.0
    %510 = vmatpush2.msra.mxu0 0.0
    %511 = vmatprep.subr.mxu0 0.0
    %512 = vmatpush2.msra.mxu0 0.0
    %513 = vmatprep.subr.mxu0 0.0
    %514 = vmatpush2.msra.mxu0 0.0
    %515 = vmatprep.subr.mxu0 0.0
    %516 = vmatpush2.msra.mxu0 0.0
    %517 = vmatprep.subr.mxu0 0.0
    %518 = vmatpush2.msra.mxu0 0.0
    %519 = vmatprep.subr.mxu0 0.0
    %520 = vmatpush2.msra.mxu0 0.0
    %521 = vmatprep.mubr.f32.mxu0 0.0
    %522 = vmatmul.mubr.f32.gmra.mxu0 %v374
    %v523 = vpop.f32.mrf.mxu0
    %v524 = vadd.f32 0.0, %v523
    %v525 = vpop.f32.mrf.mxu0
    %526 = vdwg.mxu0
    %528 = vrot.lane.b32.xlu0 %v300, 96
    %v529 = vpop.permute.xlu0 %528
    %531 = vrot.lane.b32.xlu0 %v300, 64
    %v532 = vpop.permute.xlu0 %531
    %vm534 = vcmask 785408
    %v535 = vsel %vm534, %v300, %v529
    %v536 = vsel %vm226, %v529, %v532
    %v537 = vmul.f32 %v453, %v535
    %v538 = vmul.f32 %v455, %v536
    %v539 = vmul.f32 %v524, %v532
    %v541 = vsel %vm118, %v539, 0
    %543 = vmatprep.subr.mxu0 0.0
    %544 = vmatpush1.msra.mxu0 %v85
    %545 = vmatprep.subr.mxu0 0.0
    %546 = vmatpush1.msra.mxu0 %v84
    %547 = vmatprep.subr.mxu0 0.0
    %548 = vmatpush1.msra.mxu0 %v83
    %549 = vmatprep.subr.mxu0 0.0
    %550 = vmatpush1.msra.mxu0 %v82
    %551 = vmatprep.subr.mxu0 0.0
    %552 = vmatpush1.msra.mxu0 %v81
    %553 = vmatprep.subr.mxu0 0.0
    %554 = vmatpush1.msra.mxu0 %v80
    %555 = vmatprep.subr.mxu0 0.0
    %556 = vmatpush1.msra.mxu0 %v79
    %557 = vmatprep.subr.mxu0 0.0
    %558 = vmatpush1.msra.mxu0 %v78
    %559 = vmatprep.subr.mxu0 0.0
    %560 = vmatpush1.msra.mxu0 %v77
    %561 = vmatprep.subr.mxu0 0.0
    %562 = vmatpush1.msra.mxu0 %v76
    %563 = vmatprep.subr.mxu0 0.0
    %564 = vmatpush1.msra.mxu0 %v75
    %565 = vmatprep.subr.mxu0 0.0
    %566 = vmatpush1.msra.mxu0 %v74
    %567 = vmatprep.subr.mxu0 0.0
    %568 = vmatpush1.msra.mxu0 %v73
    %569 = vmatprep.subr.mxu0 0.0
    %570 = vmatpush1.msra.mxu0 %v72
    %571 = vmatprep.subr.mxu0 0.0
    %572 = vmatpush1.msra.mxu0 %v71
    %573 = vmatprep.subr.mxu0 0.0
    %574 = vmatpush1.msra.mxu0 %v70
    %575 = vmatprep.subr.mxu0 0.0
    %576 = vmatpush2.msra.mxu0 %v101
    %577 = vmatprep.subr.mxu0 0.0
    %578 = vmatpush2.msra.mxu0 %v100
    %579 = vmatprep.subr.mxu0 0.0
    %580 = vmatpush2.msra.mxu0 %v99
    %581 = vmatprep.subr.mxu0 0.0
    %582 = vmatpush2.msra.mxu0 %v98
    %583 = vmatprep.subr.mxu0 0.0
    %584 = vmatpush2.msra.mxu0 %v97
    %585 = vmatprep.subr.mxu0 0.0
    %586 = vmatpush2.msra.mxu0 %v96
    %587 = vmatprep.subr.mxu0 0.0
    %588 = vmatpush2.msra.mxu0 %v95
    %589 = vmatprep.subr.mxu0 0.0
    %590 = vmatpush2.msra.mxu0 %v94
    %591 = vmatprep.subr.mxu0 0.0
    %592 = vmatpush2.msra.mxu0 %v93
    %593 = vmatprep.subr.mxu0 0.0
    %594 = vmatpush2.msra.mxu0 %v92
    %595 = vmatprep.subr.mxu0 0.0
    %596 = vmatpush2.msra.mxu0 %v91
    %597 = vmatprep.subr.mxu0 0.0
    %598 = vmatpush2.msra.mxu0 %v90
    %599 = vmatprep.subr.mxu0 0.0
    %600 = vmatpush2.msra.mxu0 %v89
    %601 = vmatprep.subr.mxu0 0.0
    %602 = vmatpush2.msra.mxu0 %v88
    %603 = vmatprep.subr.mxu0 0.0
    %604 = vmatpush2.msra.mxu0 %v87
    %605 = vmatprep.subr.mxu0 0.0
    %606 = vmatpush2.msra.mxu0 %v86
    %607 = vmatprep.mubr.f32.mxu0 %v538
    %608 = vmatmul.mubr.f32.gmra.mxu0 %v537
    %v609 = vpop.f32.mrf.mxu0
    %v610 = vadd.f32 0.0, %v609
    %v611 = vpop.f32.mrf.mxu0
    %612 = vdwg.mxu0
    %613 = vmatprep.subr.mxu0 0.0
    %614 = vmatpush1.msra.mxu0 0.0
    %615 = vmatprep.subr.mxu0 0.0
    %616 = vmatpush1.msra.mxu0 0.0
    %617 = vmatprep.subr.mxu0 0.0
    %618 = vmatpush1.msra.mxu0 0.0
    %619 = vmatprep.subr.mxu0 0.0
    %620 = vmatpush1.msra.mxu0 0.0
    %621 = vmatprep.subr.mxu0 0.0
    %622 = vmatpush1.msra.mxu0 0.0
    %623 = vmatprep.subr.mxu0 0.0
    %624 = vmatpush1.msra.mxu0 0.0
    %625 = vmatprep.subr.mxu0 0.0
    %626 = vmatpush1.msra.mxu0 0.0
    %627 = vmatprep.subr.mxu0 0.0
    %628 = vmatpush1.msra.mxu0 0.0
    %629 = vmatprep.subr.mxu0 0.0
    %630 = vmatpush1.msra.mxu0 0.0
    %631 = vmatprep.subr.mxu0 0.0
    %632 = vmatpush1.msra.mxu0 0.0
    %633 = vmatprep.subr.mxu0 0.0
    %634 = vmatpush1.msra.mxu0 0.0
    %635 = vmatprep.subr.mxu0 0.0
    %636 = vmatpush1.msra.mxu0 0.0
    %637 = vmatprep.subr.mxu0 0.0
    %638 = vmatpush1.msra.mxu0 %v105
    %639 = vmatprep.subr.mxu0 0.0
    %640 = vmatpush1.msra.mxu0 %v104
    %641 = vmatprep.subr.mxu0 0.0
    %642 = vmatpush1.msra.mxu0 %v103
    %643 = vmatprep.subr.mxu0 0.0
    %644 = vmatpush1.msra.mxu0 %v102
    %645 = vmatprep.subr.mxu0 0.0
    %646 = vmatpush2.msra.mxu0 0.0
    %647 = vmatprep.subr.mxu0 0.0
    %648 = vmatpush2.msra.mxu0 0.0
    %649 = vmatprep.subr.mxu0 0.0
    %650 = vmatpush2.msra.mxu0 0.0
    %651 = vmatprep.subr.mxu0 0.0
    %652 = vmatpush2.msra.mxu0 0.0
    %653 = vmatprep.subr.mxu0 0.0
    %654 = vmatpush2.msra.mxu0 0.0
    %655 = vmatprep.subr.mxu0 0.0
    %656 = vmatpush2.msra.mxu0 0.0
    %657 = vmatprep.subr.mxu0 0.0
    %658 = vmatpush2.msra.mxu0 0.0
    %659 = vmatprep.subr.mxu0 0.0
    %660 = vmatpush2.msra.mxu0 0.0
    %661 = vmatprep.subr.mxu0 0.0
    %662 = vmatpush2.msra.mxu0 0.0
    %663 = vmatprep.subr.mxu0 0.0
    %664 = vmatpush2.msra.mxu0 0.0
    %665 = vmatprep.subr.mxu0 0.0
    %666 = vmatpush2.msra.mxu0 0.0
    %667 = vmatprep.subr.mxu0 0.0
    %668 = vmatpush2.msra.mxu0 0.0
    %669 = vmatprep.subr.mxu0 0.0
    %670 = vmatpush2.msra.mxu0 0.0
    %671 = vmatprep.subr.mxu0 0.0
    %672 = vmatpush2.msra.mxu0 0.0
    %673 = vmatprep.subr.mxu0 0.0
    %674 = vmatpush2.msra.mxu0 0.0
    %675 = vmatprep.subr.mxu0 0.0
    %676 = vmatpush2.msra.mxu0 0.0
    %677 = vmatprep.mubr.f32.mxu0 0.0
    %678 = vmatmul.mubr.f32.gmra.mxu0 %v541
    %v679 = vpop.f32.mrf.mxu0
    %v680 = vadd.f32 %v610, %v679
    %v681 = vpop.f32.mrf.mxu0
    %682 = vdwg.mxu0
    %v683 = vld [vmem:[%s8] sm:$0xff]
    %v684 = vld [vmem:[%s8 + $0x8] sm:$0xff]
    %v685 = vld [vmem:[%s8 + $0x10] sm:$0xff]
    %v686 = vld [vmem:[%s8 + $0x18] sm:$0xff]
    %v687 = vld [vmem:[%s8 + $0x20] sm:$0xff]
    %v688 = vld [vmem:[%s8 + $0x28] sm:$0xff]
    %v689 = vld [vmem:[%s9] sm:$0x1]
    %v690 = vld [vmem:[%s12] sm:$0xff]
    %v691 = vld [vmem:[%s12 + $0x8] sm:$0xff]
    %v692 = vld [vmem:[%s12 + $0x10] sm:$0xff]
    %v693 = vld [vmem:[%s12 + $0x18] sm:$0xff]
    %v694 = vld [vmem:[%s12 + $0x20] sm:$0xff]
    %v695 = vld [vmem:[%s12 + $0x28] sm:$0xff]
    %v696 = vld [vmem:[%s12 + $0x30] sm:$0x3]
    %v697 = vld [vmem:[%s12 + $0x38] sm:$0x3]
    %v698 = vld [vmem:[%s12 + $0x40] sm:$0x3]
    %v699 = vld [vmem:[%s13] sm:$0xff]
    %v700 = vld [vmem:[%s13 + $0x8] sm:$0xff]
    %v701 = vld [vmem:[%s13 + $0x10] sm:$0xff]
    %v702 = vld [vmem:[%s13 + $0x18] sm:$0xff]
    %v703 = vld [vmem:[%s13 + $0x20] sm:$0xff]
    %v704 = vld [vmem:[%s13 + $0x28] sm:$0xff]
    %v705 = vld [vmem:[%s13 + $0x30] sm:$0xff]
    %v706 = vld [vmem:[%s13 + $0x38] sm:$0xff]
    %v707 = vld [vmem:[%s13 + $0x40] sm:$0xff]
    %v708 = vld [vmem:[%s13 + $0x48] sm:$0xff]
    %v709 = vld [vmem:[%s13 + $0x50] sm:$0xff]
    %v710 = vld [vmem:[%s13 + $0x58] sm:$0xff]
    %v711 = vld [vmem:[%s13 + $0x60] sm:$0xff]
    %v712 = vld [vmem:[%s13 + $0x68] sm:$0xff]
    %v713 = vld [vmem:[%s13 + $0x70] sm:$0xff]
    %v714 = vld [vmem:[%s13 + $0x78] sm:$0xff]
    %v715 = vld [vmem:[%s13 + $0x80] sm:$0xff]
    %v716 = vld [vmem:[%s13 + $0x88] sm:$0xff]
    %v717 = vld [vmem:[%s13 + $0x90] sm:$0xff]
    %v718 = vld [vmem:[%s13 + $0x98] sm:$0xff]
    %v719 = vld [vmem:[%s13 + $0xa0] sm:$0xff]
    %v720 = vld [vmem:[%s13 + $0xa8] sm:$0xff]
    %v721 = vld [vmem:[%s13 + $0xb0] sm:$0xff]
    %v722 = vld [vmem:[%s13 + $0xb8] sm:$0xff]
    %v723 = vld [vmem:[%s13 + $0xc0] sm:$0xff]
    %v724 = vld [vmem:[%s13 + $0xc8] sm:$0xff]
    %v725 = vld [vmem:[%s13 + $0xd0] sm:$0xff]
    %v726 = vld [vmem:[%s13 + $0xd8] sm:$0xff]
    %v727 = vld [vmem:[%s13 + $0xe0] sm:$0xff]
    %v728 = vld [vmem:[%s13 + $0xe8] sm:$0xff]
    %v729 = vld [vmem:[%s13 + $0xf0] sm:$0xff]
    %v730 = vld [vmem:[%s13 + $0xf8] sm:$0xff]
    %v731 = vld [vmem:[%s13 + $0x100] sm:$0xff]
    %v732 = vld [vmem:[%s13 + $0x108] sm:$0xff]
    %v733 = vld [vmem:[%s13 + $0x110] sm:$0xff]
    %v734 = vld [vmem:[%s13 + $0x118] sm:$0xff]
    %v735 = vld [vmem:[%s14] sm:$0x1]
    %v737 = vlaneseq
    %v738 = vshrl.u32 %v737, 7
    %v739 = vsub.s32 0, %v738
    %v740 = vrot.slane %v689, %v739
    %vm742 = vcmask 392192
    %v744 = vsel %vm742, %v680, 0
    %746 = vmatprep.subr.mxu0 0.0
    %747 = vmatpush1.msra.mxu0 0.0
    %748 = vmatprep.subr.mxu0 0.0
    %749 = vmatpush1.msra.mxu0 0.0
    %750 = vmatprep.subr.mxu0 0.0
    %751 = vmatpush1.msra.mxu0 0.0
    %752 = vmatprep.subr.mxu0 0.0
    %753 = vmatpush1.msra.mxu0 0.0
    %754 = vmatprep.subr.mxu0 0.0
    %755 = vmatpush1.msra.mxu0 0.0
    %756 = vmatprep.subr.mxu0 0.0
    %757 = vmatpush1.msra.mxu0 0.0
    %758 = vmatprep.subr.mxu0 0.0
    %759 = vmatpush1.msra.mxu0 0.0
    %760 = vmatprep.subr.mxu0 0.0
    %761 = vmatpush1.msra.mxu0 0.0
    %762 = vmatprep.subr.mxu0 0.0
    %763 = vmatpush1.msra.mxu0 0.0
    %764 = vmatprep.subr.mxu0 0.0
    %765 = vmatpush1.msra.mxu0 0.0
    %766 = vmatprep.subr.mxu0 0.0
    %767 = vmatpush1.msra.mxu0 %v688
    %768 = vmatprep.subr.mxu0 0.0
    %769 = vmatpush1.msra.mxu0 %v687
    %770 = vmatprep.subr.mxu0 0.0
    %771 = vmatpush1.msra.mxu0 %v686
    %772 = vmatprep.subr.mxu0 0.0
    %773 = vmatpush1.msra.mxu0 %v685
    %774 = vmatprep.subr.mxu0 0.0
    %775 = vmatpush1.msra.mxu0 %v684
    %776 = vmatprep.subr.mxu0 0.0
    %777 = vmatpush1.msra.mxu0 %v683
    %778 = vmatprep.subr.mxu0 0.0
    %779 = vmatpush2.msra.mxu0 0.0
    %780 = vmatprep.subr.mxu0 0.0
    %781 = vmatpush2.msra.mxu0 0.0
    %782 = vmatprep.subr.mxu0 0.0
    %783 = vmatpush2.msra.mxu0 0.0
    %784 = vmatprep.subr.mxu0 0.0
    %785 = vmatpush2.msra.mxu0 0.0
    %786 = vmatprep.subr.mxu0 0.0
    %787 = vmatpush2.msra.mxu0 0.0
    %788 = vmatprep.subr.mxu0 0.0
    %789 = vmatpush2.msra.mxu0 0.0
    %790 = vmatprep.subr.mxu0 0.0
    %791 = vmatpush2.msra.mxu0 0.0
    %792 = vmatprep.subr.mxu0 0.0
    %793 = vmatpush2.msra.mxu0 0.0
    %794 = vmatprep.subr.mxu0 0.0
    %795 = vmatpush2.msra.mxu0 0.0
    %796 = vmatprep.subr.mxu0 0.0
    %797 = vmatpush2.msra.mxu0 0.0
    %798 = vmatprep.subr.mxu0 0.0
    %799 = vmatpush2.msra.mxu0 0.0
    %800 = vmatprep.subr.mxu0 0.0
    %801 = vmatpush2.msra.mxu0 0.0
    %802 = vmatprep.subr.mxu0 0.0
    %803 = vmatpush2.msra.mxu0 0.0
    %804 = vmatprep.subr.mxu0 0.0
    %805 = vmatpush2.msra.mxu0 0.0
    %806 = vmatprep.subr.mxu0 0.0
    %807 = vmatpush2.msra.mxu0 0.0
    %808 = vmatprep.subr.mxu0 0.0
    %809 = vmatpush2.msra.mxu0 0.0
    %810 = vmatprep.mubr.f32.mxu0 0.0
    %811 = vmatmul.mubr.f32.gmra.mxu0 %v744
    %v812 = vpop.f32.mrf.mxu0
    %v813 = vadd.f32 %v740, %v812
    %v814 = vpop.f32.mrf.mxu0
    %815 = vdwg.mxu0
    %v816 = vmax.f32 %v813, 0.0
    %v817 = vld [vmem:[%s10] sm:$0xff]
    %v818 = vld [vmem:[%s10 + $0x8] sm:$0xff]
    %v819 = vld [vmem:[%s10 + $0x10] sm:$0xff]
    %v820 = vld [vmem:[%s10 + $0x18] sm:$0xff]
    %v821 = vld [vmem:[%s10 + $0x20] sm:$0xff]
    %v822 = vld [vmem:[%s10 + $0x28] sm:$0xff]
    %v823 = vld [vmem:[%s10 + $0x30] sm:$0xff]
    %v824 = vld [vmem:[%s10 + $0x38] sm:$0xff]
    %v825 = vld [vmem:[%s10 + $0x40] sm:$0xff]
    %v826 = vld [vmem:[%s10 + $0x48] sm:$0xff]
    %v827 = vld [vmem:[%s10 + $0x50] sm:$0xff]
    %v828 = vld [vmem:[%s10 + $0x58] sm:$0xff]
    %v829 = vld [vmem:[%s11] sm:$0x1]
    %v831 = vlaneseq
    %v832 = vshrl.u32 %v831, 7
    %v833 = vsub.s32 0, %v832
    %v834 = vrot.slane %v829, %v833
    %v837 = vsel %vm534, %v816, 0
    %839 = vmatprep.subr.mxu0 0.0
    %840 = vmatpush1.msra.mxu0 0.0
    %841 = vmatprep.subr.mxu0 0.0
    %842 = vmatpush1.msra.mxu0 0.0
    %843 = vmatprep.subr.mxu0 0.0
    %844 = vmatpush1.msra.mxu0 0.0
    %845 = vmatprep.subr.mxu0 0.0
    %846 = vmatpush1.msra.mxu0 0.0
    %847 = vmatprep.subr.mxu0 0.0
    %848 = vmatpush1.msra.mxu0 %v828
    %849 = vmatprep.subr.mxu0 0.0
    %850 = vmatpush1.msra.mxu0 %v827
    %851 = vmatprep.subr.mxu0 0.0
    %852 = vmatpush1.msra.mxu0 %v826
    %853 = vmatprep.subr.mxu0 0.0
    %854 = vmatpush1.msra.mxu0 %v825
    %855 = vmatprep.subr.mxu0 0.0
    %856 = vmatpush1.msra.mxu0 %v824
    %857 = vmatprep.subr.mxu0 0.0
    %858 = vmatpush1.msra.mxu0 %v823
    %859 = vmatprep.subr.mxu0 0.0
    %860 = vmatpush1.msra.mxu0 %v822
    %861 = vmatprep.subr.mxu0 0.0
    %862 = vmatpush1.msra.mxu0 %v821
    %863 = vmatprep.subr.mxu0 0.0
    %864 = vmatpush1.msra.mxu0 %v820
    %865 = vmatprep.subr.mxu0 0.0
    %866 = vmatpush1.msra.mxu0 %v819
    %867 = vmatprep.subr.mxu0 0.0
    %868 = vmatpush1.msra.mxu0 %v818
    %869 = vmatprep.subr.mxu0 0.0
    %870 = vmatpush1.msra.mxu0 %v817
    %871 = vmatprep.subr.mxu0 0.0
    %872 = vmatpush2.msra.mxu0 0.0
    %873 = vmatprep.subr.mxu0 0.0
    %874 = vmatpush2.msra.mxu0 0.0
    %875 = vmatprep.subr.mxu0 0.0
    %876 = vmatpush2.msra.mxu0 0.0
    %877 = vmatprep.subr.mxu0 0.0
    %878 = vmatpush2.msra.mxu0 0.0
    %879 = vmatprep.subr.mxu0 0.0
    %880 = vmatpush2.msra.mxu0 0.0
    %881 = vmatprep.subr.mxu0 0.0
    %882 = vmatpush2.msra.mxu0 0.0
    %883 = vmatprep.subr.mxu0 0.0
    %884 = vmatpush2.msra.mxu0 0.0
    %885 = vmatprep.subr.mxu0 0.0
    %886 = vmatpush2.msra.mxu0 0.0
    %887 = vmatprep.subr.mxu0 0.0
    %888 = vmatpush2.msra.mxu0 0.0
    %889 = vmatprep.subr.mxu0 0.0
    %890 = vmatpush2.msra.mxu0 0.0
    %891 = vmatprep.subr.mxu0 0.0
    %892 = vmatpush2.msra.mxu0 0.0
    %893 = vmatprep.subr.mxu0 0.0
    %894 = vmatpush2.msra.mxu0 0.0
    %895 = vmatprep.subr.mxu0 0.0
    %896 = vmatpush2.msra.mxu0 0.0
    %897 = vmatprep.subr.mxu0 0.0
    %898 = vmatpush2.msra.mxu0 0.0
    %899 = vmatprep.subr.mxu0 0.0
    %900 = vmatpush2.msra.mxu0 0.0
    %901 = vmatprep.subr.mxu0 0.0
    %902 = vmatpush2.msra.mxu0 0.0
    %903 = vmatprep.mubr.f32.mxu0 0.0
    %904 = vmatmul.mubr.f32.gmra.mxu0 %v837
    %v905 = vpop.f32.mrf.mxu0
    %v906 = vadd.f32 %v834, %v905
    %v907 = vpop.f32.mrf.mxu0
    %908 = vdwg.mxu0
    %v909 = vmax.f32 %v906, 0.0
    %vm910 = vcmask 835328
    %v911 = vsel %vm910, %v813, -inf
    %912 = vmax.xlane.f32.xlu0 %v911
    %v913 = vpop.xlane.xlu0 %912
    %v914 = vsub.f32 %v813, %v913
    %v915 = vmul.f32 %v914, 1.442695
    %v916 = vpow.pop %v915
    %918 = vrot.lane.b32.xlu0 %v916, 32
    %v919 = vpop.permute.xlu0 %918
    %v921 = vsel %vm312, %v919, 0.0
    %922 = vadd.xlane.f32.xlu0 %v921
    %v923 = vpop.xlane.xlu0 %922
    %v924 = vrcp.pop %v923
    %v925 = vmul.f32 %v916, %v924
    %vm926 = vcmask 884528
    %v927 = vsel %vm926, %v813, -inf
    %928 = vmax.xlane.f32.xlu0 %v927
    %v929 = vpop.xlane.xlu0 %928
    %v930 = vsub.f32 %v813, %v929
    %v931 = vmul.f32 %v930, 1.442695
    %v932 = vpow.pop %v931
    %934 = vrot.lane.b32.xlu0 %v932, 26
    %v935 = vpop.permute.xlu0 %934
    %v937 = vsel %vm312, %v935, 0.0
    %938 = vadd.xlane.f32.xlu0 %v937
    %v939 = vpop.xlane.xlu0 %938
    %v940 = vrcp.pop %v939
    %v941 = vmul.f32 %v932, %v940
    %vm942 = vcmask 933728
    %v943 = vsel %vm942, %v813, -inf
    %944 = vmax.xlane.f32.xlu0 %v943
    %v945 = vpop.xlane.xlu0 %944
    %v946 = vsub.f32 %v813, %v945
    %v947 = vmul.f32 %v946, 1.442695
    %v948 = vpow.pop %v947
    %950 = vrot.lane.b32.xlu0 %v948, 20
    %v951 = vpop.permute.xlu0 %950
    %v953 = vsel %vm312, %v951, 0.0
    %954 = vadd.xlane.f32.xlu0 %v953
    %v955 = vpop.xlane.xlu0 %954
    %v956 = vrcp.pop %v955
    %v957 = vmul.f32 %v948, %v956
    %959 = vrot.lane.b32.xlu0 %v925, 32
    %v960 = vpop.permute.xlu0 %959
    %963 = vrot.lane.b32.xlu0 %v941, 32
    %v964 = vpop.permute.xlu0 %963
    %967 = vrot.lane.b32.xlu0 %v957, 32
    %v968 = vpop.permute.xlu0 %967
    %v970 = vsel %vm312, %v960, %v964
    %v971 = vsel %vm363, %v970, %v968
    %v973 = vlaneseq
    %v974 = vshrl.u32 %v973, 7
    %v975 = vsub.s32 0, %v974
    %v976 = vrot.slane %v735, %v975
    %v978 = vadd.f32 %v971, %v976
    %v980 = vsel %vm372, %v978, 0
    %v983 = vsel %vm376, %v696, 0
    %v986 = vsel %vm376, %v697, 0
    %v989 = vsel %vm376, %v698, 0
    %991 = vmatprep.subr.mxu0 0.0
    %992 = vmatpush1.msra.mxu0 0.0
    %993 = vmatprep.subr.mxu0 0.0
    %994 = vmatpush1.msra.mxu0 0.0
    %995 = vmatprep.subr.mxu0 0.0
    %996 = vmatpush1.msra.mxu0 0.0
    %997 = vmatprep.subr.mxu0 0.0
    %998 = vmatpush1.msra.mxu0 0.0
    %999 = vmatprep.subr.mxu0 0.0
    %1000 = vmatpush1.msra.mxu0 0.0
    %1001 = vmatprep.subr.mxu0 0.0
    %1002 = vmatpush1.msra.mxu0 0.0
    %1003 = vmatprep.subr.mxu0 0.0
    %1004 = vmatpush1.msra.mxu0 0.0
    %1005 = vmatprep.subr.mxu0 0.0
    %1006 = vmatpush1.msra.mxu0 0.0
    %1007 = vmatprep.subr.mxu0 0.0
    %1008 = vmatpush1.msra.mxu0 0.0
    %1009 = vmatprep.subr.mxu0 0.0
    %1010 = vmatpush1.msra.mxu0 0.0
    %1011 = vmatprep.subr.mxu0 0.0
    %1012 = vmatpush1.msra.mxu0 0.0
    %1013 = vmatprep.subr.mxu0 0.0
    %1014 = vmatpush1.msra.mxu0 0.0
    %1015 = vmatprep.subr.mxu0 0.0
    %1016 = vmatpush1.msra.mxu0 0.0
    %1017 = vmatprep.subr.mxu0 %v986
    %1018 = vmatpush1.msra.mxu0 %v983
    %1019 = vmatprep.subr.mxu0 %v694
    %1020 = vmatpush1.msra.mxu0 %v693
    %1021 = vmatprep.subr.mxu0 %v691
    %1022 = vmatpush1.msra.mxu0 %v690
    %1023 = vmatprep.subr.mxu0 0.0
    %1024 = vmatpush2.msra.mxu0 0.0
    %1025 = vmatprep.subr.mxu0 0.0
    %1026 = vmatpush2.msra.mxu0 0.0
    %1027 = vmatprep.subr.mxu0 0.0
    %1028 = vmatpush2.msra.mxu0 0.0
    %1029 = vmatprep.subr.mxu0 0.0
    %1030 = vmatpush2.msra.mxu0 0.0
    %1031 = vmatprep.subr.mxu0 0.0
    %1032 = vmatpush2.msra.mxu0 0.0
    %1033 = vmatprep.subr.mxu0 0.0
    %1034 = vmatpush2.msra.mxu0 0.0
    %1035 = vmatprep.subr.mxu0 0.0
    %1036 = vmatpush2.msra.mxu0 0.0
    %1037 = vmatprep.subr.mxu0 0.0
    %1038 = vmatpush2.msra.mxu0 0.0
    %1039 = vmatprep.subr.mxu0 0.0
    %1040 = vmatpush2.msra.mxu0 0.0
    %1041 = vmatprep.subr.mxu0 0.0
    %1042 = vmatpush2.msra.mxu0 0.0
    %1043 = vmatprep.subr.mxu0 0.0
    %1044 = vmatpush2.msra.mxu0 0.0
    %1045 = vmatprep.subr.mxu0 0.0
    %1046 = vmatpush2.msra.mxu0 0.0
    %1047 = vmatprep.subr.mxu0 0.0
    %1048 = vmatpush2.msra.mxu0 0.0
    %1049 = vmatprep.subr.mxu0 0.0
    %1050 = vmatpush2.msra.mxu0 0.0
    %1051 = vmatprep.subr.mxu0 0.0
    %1052 = vmatpush2.msra.mxu0 0.0
    %1053 = vmatprep.subr.mxu0 0.0
    %1054 = vmatpush2.msra.mxu0 0.0
    %1055 = vmatprep.mubr.f32.mxu0 0.0
    %1056 = vmatmul.mubr.f32.gmra.mxu0 %v980
    %v1057 = vpop.f32.mrf.mxu0
    %v1058 = vadd.f32 0.0, %v1057
    %v1059 = vpop.f32.mrf.mxu0
    %v1060 = vadd.f32 0.0, %v1059
    %1061 = vdwg.mxu0
    %1062 = vmatprep.subr.mxu0 0.0
    %1063 = vmatpush1.msra.mxu0 0.0
    %1064 = vmatprep.subr.mxu0 0.0
    %1065 = vmatpush1.msra.mxu0 0.0
    %1066 = vmatprep.subr.mxu0 0.0
    %1067 = vmatpush1.msra.mxu0 0.0
    %1068 = vmatprep.subr.mxu0 0.0
    %1069 = vmatpush1.msra.mxu0 0.0
    %1070 = vmatprep.subr.mxu0 0.0
    %1071 = vmatpush1.msra.mxu0 0.0
    %1072 = vmatprep.subr.mxu0 0.0
    %1073 = vmatpush1.msra.mxu0 0.0
    %1074 = vmatprep.subr.mxu0 0.0
    %1075 = vmatpush1.msra.mxu0 0.0
    %1076 = vmatprep.subr.mxu0 0.0
    %1077 = vmatpush1.msra.mxu0 0.0
    %1078 = vmatprep.subr.mxu0 0.0
    %1079 = vmatpush1.msra.mxu0 0.0
    %1080 = vmatprep.subr.mxu0 0.0
    %1081 = vmatpush1.msra.mxu0 0.0
    %1082 = vmatprep.subr.mxu0 0.0
    %1083 = vmatpush1.msra.mxu0 0.0
    %1084 = vmatprep.subr.mxu0 0.0
    %1085 = vmatpush1.msra.mxu0 0.0
    %1086 = vmatprep.subr.mxu0 0.0
    %1087 = vmatpush1.msra.mxu0 0.0
    %1088 = vmatprep.subr.mxu0 0.0
    %1089 = vmatpush1.msra.mxu0 %v989
    %1090 = vmatprep.subr.mxu0 0.0
    %1091 = vmatpush1.msra.mxu0 %v695
    %1092 = vmatprep.subr.mxu0 0.0
    %1093 = vmatpush1.msra.mxu0 %v692
    %1094 = vmatprep.subr.mxu0 0.0
    %1095 = vmatpush2.msra.mxu0 0.0
    %1096 = vmatprep.subr.mxu0 0.0
    %1097 = vmatpush2.msra.mxu0 0.0
    %1098 = vmatprep.subr.mxu0 0.0
    %1099 = vmatpush2.msra.mxu0 0.0
    %1100 = vmatprep.subr.mxu0 0.0
    %1101 = vmatpush2.msra.mxu0 0.0
    %1102 = vmatprep.subr.mxu0 0.0
    %1103 = vmatpush2.msra.mxu0 0.0
    %1104 = vmatprep.subr.mxu0 0.0
    %1105 = vmatpush2.msra.mxu0 0.0
    %1106 = vmatprep.subr.mxu0 0.0
    %1107 = vmatpush2.msra.mxu0 0.0
    %1108 = vmatprep.subr.mxu0 0.0
    %1109 = vmatpush2.msra.mxu0 0.0
    %1110 = vmatprep.subr.mxu0 0.0
    %1111 = vmatpush2.msra.mxu0 0.0
    %1112 = vmatprep.subr.mxu0 0.0
    %1113 = vmatpush2.msra.mxu0 0.0
    %1114 = vmatprep.subr.mxu0 0.0
    %1115 = vmatpush2.msra.mxu0 0.0
    %1116 = vmatprep.subr.mxu0 0.0
    %1117 = vmatpush2.msra.mxu0 0.0
    %1118 = vmatprep.subr.mxu0 0.0
    %1119 = vmatpush2.msra.mxu0 0.0
    %1120 = vmatprep.subr.mxu0 0.0
    %1121 = vmatpush2.msra.mxu0 0.0
    %1122 = vmatprep.subr.mxu0 0.0
    %1123 = vmatpush2.msra.mxu0 0.0
    %1124 = vmatprep.subr.mxu0 0.0
    %1125 = vmatpush2.msra.mxu0 0.0
    %1126 = vmatprep.mubr.f32.mxu0 0.0
    %1127 = vmatmul.mubr.f32.gmra.mxu0 %v980
    %v1128 = vpop.f32.mrf.mxu0
    %v1129 = vadd.f32 0.0, %v1128
    %v1130 = vpop.f32.mrf.mxu0
    %1131 = vdwg.mxu0
    %1133 = vrot.lane.b32.xlu0 %v909, 96
    %v1134 = vpop.permute.xlu0 %1133
    %1136 = vrot.lane.b32.xlu0 %v909, 64
    %v1137 = vpop.permute.xlu0 %1136
    %v1139 = vsel %vm534, %v909, %v1134
    %v1140 = vsel %vm226, %v1134, %v1137
    %v1141 = vmul.f32 %v1058, %v1139
    %v1142 = vmul.f32 %v1060, %v1140
    %v1143 = vmul.f32 %v1129, %v1137
    %v1145 = vsel %vm118, %v1143, 0
    %1147 = vmatprep.subr.mxu0 0.0
    %1148 = vmatpush1.msra.mxu0 %v714
    %1149 = vmatprep.subr.mxu0 0.0
    %1150 = vmatpush1.msra.mxu0 %v713
    %1151 = vmatprep.subr.mxu0 0.0
    %1152 = vmatpush1.msra.mxu0 %v712
    %1153 = vmatprep.subr.mxu0 0.0
    %1154 = vmatpush1.msra.mxu0 %v711
    %1155 = vmatprep.subr.mxu0 0.0
    %1156 = vmatpush1.msra.mxu0 %v710
    %1157 = vmatprep.subr.mxu0 0.0
    %1158 = vmatpush1.msra.mxu0 %v709
    %1159 = vmatprep.subr.mxu0 0.0
    %1160 = vmatpush1.msra.mxu0 %v708
    %1161 = vmatprep.subr.mxu0 0.0
    %1162 = vmatpush1.msra.mxu0 %v707
    %1163 = vmatprep.subr.mxu0 0.0
    %1164 = vmatpush1.msra.mxu0 %v706
    %1165 = vmatprep.subr.mxu0 0.0
    %1166 = vmatpush1.msra.mxu0 %v705
    %1167 = vmatprep.subr.mxu0 0.0
    %1168 = vmatpush1.msra.mxu0 %v704
    %1169 = vmatprep.subr.mxu0 0.0
    %1170 = vmatpush1.msra.mxu0 %v703
    %1171 = vmatprep.subr.mxu0 0.0
    %1172 = vmatpush1.msra.mxu0 %v702
    %1173 = vmatprep.subr.mxu0 0.0
    %1174 = vmatpush1.msra.mxu0 %v701
    %1175 = vmatprep.subr.mxu0 0.0
    %1176 = vmatpush1.msra.mxu0 %v700
    %1177 = vmatprep.subr.mxu0 0.0
    %1178 = vmatpush1.msra.mxu0 %v699
    %1179 = vmatprep.subr.mxu0 0.0
    %1180 = vmatpush2.msra.mxu0 %v730
    %1181 = vmatprep.subr.mxu0 0.0
    %1182 = vmatpush2.msra.mxu0 %v729
    %1183 = vmatprep.subr.mxu0 0.0
    %1184 = vmatpush2.msra.mxu0 %v728
    %1185 = vmatprep.subr.mxu0 0.0
    %1186 = vmatpush2.msra.mxu0 %v727
    %1187 = vmatprep.subr.mxu0 0.0
    %1188 = vmatpush2.msra.mxu0 %v726
    %1189 = vmatprep.subr.mxu0 0.0
    %1190 = vmatpush2.msra.mxu0 %v725
    %1191 = vmatprep.subr.mxu0 0.0
    %1192 = vmatpush2.msra.mxu0 %v724
    %1193 = vmatprep.subr.mxu0 0.0
    %1194 = vmatpush2.msra.mxu0 %v723
    %1195 = vmatprep.subr.mxu0 0.0
    %1196 = vmatpush2.msra.mxu0 %v722
    %1197 = vmatprep.subr.mxu0 0.0
    %1198 = vmatpush2.msra.mxu0 %v721
    %1199 = vmatprep.subr.mxu0 0.0
    %1200 = vmatpush2.msra.mxu0 %v720
    %1201 = vmatprep.subr.mxu0 0.0
    %1202 = vmatpush2.msra.mxu0 %v719
    %1203 = vmatprep.subr.mxu0 0.0
    %1204 = vmatpush2.msra.mxu0 %v718
    %1205 = vmatprep.subr.mxu0 0.0
    %1206 = vmatpush2.msra.mxu0 %v717
    %1207 = vmatprep.subr.mxu0 0.0
    %1208 = vmatpush2.msra.mxu0 %v716
    %1209 = vmatprep.subr.mxu0 0.0
    %1210 = vmatpush2.msra.mxu0 %v715
    %1211 = vmatprep.mubr.f32.mxu0 %v1142
    %1212 = vmatmul.mubr.f32.gmra.mxu0 %v1141
    %v1213 = vpop.f32.mrf.mxu0
    %v1214 = vadd.f32 0.0, %v1213
    %v1215 = vpop.f32.mrf.mxu0
    %1216 = vdwg.mxu0
    %1217 = vmatprep.subr.mxu0 0.0
    %1218 = vmatpush1.msra.mxu0 0.0
    %1219 = vmatprep.subr.mxu0 0.0
    %1220 = vmatpush1.msra.mxu0 0.0
    %1221 = vmatprep.subr.mxu0 0.0
    %1222 = vmatpush1.msra.mxu0 0.0
    %1223 = vmatprep.subr.mxu0 0.0
    %1224 = vmatpush1.msra.mxu0 0.0
    %1225 = vmatprep.subr.mxu0 0.0
    %1226 = vmatpush1.msra.mxu0 0.0
    %1227 = vmatprep.subr.mxu0 0.0
    %1228 = vmatpush1.msra.mxu0 0.0
    %1229 = vmatprep.subr.mxu0 0.0
    %1230 = vmatpush1.msra.mxu0 0.0
    %1231 = vmatprep.subr.mxu0 0.0
    %1232 = vmatpush1.msra.mxu0 0.0
    %1233 = vmatprep.subr.mxu0 0.0
    %1234 = vmatpush1.msra.mxu0 0.0
    %1235 = vmatprep.subr.mxu0 0.0
    %1236 = vmatpush1.msra.mxu0 0.0
    %1237 = vmatprep.subr.mxu0 0.0
    %1238 = vmatpush1.msra.mxu0 0.0
    %1239 = vmatprep.subr.mxu0 0.0
    %1240 = vmatpush1.msra.mxu0 0.0
    %1241 = vmatprep.subr.mxu0 0.0
    %1242 = vmatpush1.msra.mxu0 %v734
    %1243 = vmatprep.subr.mxu0 0.0
    %1244 = vmatpush1.msra.mxu0 %v733
    %1245 = vmatprep.subr.mxu0 0.0
    %1246 = vmatpush1.msra.mxu0 %v732
    %1247 = vmatprep.subr.mxu0 0.0
    %1248 = vmatpush1.msra.mxu0 %v731
    %1249 = vmatprep.subr.mxu0 0.0
    %1250 = vmatpush2.msra.mxu0 0.0
    %1251 = vmatprep.subr.mxu0 0.0
    %1252 = vmatpush2.msra.mxu0 0.0
    %1253 = vmatprep.subr.mxu0 0.0
    %1254 = vmatpush2.msra.mxu0 0.0
    %1255 = vmatprep.subr.mxu0 0.0
    %1256 = vmatpush2.msra.mxu0 0.0
    %1257 = vmatprep.subr.mxu0 0.0
    %1258 = vmatpush2.msra.mxu0 0.0
    %1259 = vmatprep.subr.mxu0 0.0
    %1260 = vmatpush2.msra.mxu0 0.0
    %1261 = vmatprep.subr.mxu0 0.0
    %1262 = vmatpush2.msra.mxu0 0.0
    %1263 = vmatprep.subr.mxu0 0.0
    %1264 = vmatpush2.msra.mxu0 0.0
    %1265 = vmatprep.subr.mxu0 0.0
    %1266 = vmatpush2.msra.mxu0 0.0
    %1267 = vmatprep.subr.mxu0 0.0
    %1268 = vmatpush2.msra.mxu0 0.0
    %1269 = vmatprep.subr.mxu0 0.0
    %1270 = vmatpush2.msra.mxu0 0.0
    %1271 = vmatprep.subr.mxu0 0.0
    %1272 = vmatpush2.msra.mxu0 0.0
    %1273 = vmatprep.subr.mxu0 0.0
    %1274 = vmatpush2.msra.mxu0 0.0
    %1275 = vmatprep.subr.mxu0 0.0
    %1276 = vmatpush2.msra.mxu0 0.0
    %1277 = vmatprep.subr.mxu0 0.0
    %1278 = vmatpush2.msra.mxu0 0.0
    %1279 = vmatprep.subr.mxu0 0.0
    %1280 = vmatpush2.msra.mxu0 0.0
    %1281 = vmatprep.mubr.f32.mxu0 0.0
    %1282 = vmatmul.mubr.f32.gmra.mxu0 %v1145
    %v1283 = vpop.f32.mrf.mxu0
    %v1284 = vadd.f32 %v1214, %v1283
    %v1285 = vpop.f32.mrf.mxu0
    %1286 = vdwg.mxu0
    %v1287 = vsel %vm742, %v1284, 0.0
    %1288 = vst [vmem:[#allocation2] sm:$0xff] %v1287
    // Predicated region
    $region62: #{tpu_custom_call.1} parent=1 // pred_check
      _
    $region63: #{tpu_custom_call.1} parent=1 // pred_check_branch
      %1290 = sbr.rel (0) target = $region65
    $region64: #{tpu_custom_call.1} parent=1 // pred_region
      %s1292 = ssub.s32 128, 128
      %1293 = vsyncadd [#allocation3], %s1292
      %s1295 = sshll.u32 [#allocation2], 4
      %s1296 = int_to_ptr.vmem [resolvable:$true] %s1295
      %1298 = dma.vmem_to_hbm [thread:$0]  %s1296, 128, %s15, [#allocation3]
    $region65: #{tpu_custom_call.1} parent=1 // pred_fallthru
      _
    // Predicated region
    $region66: #{tpu_custom_call.1} parent=1 // pred_check
      _
    $region67: #{tpu_custom_call.1} parent=1 // pred_check_branch
      %1300 = sbr.rel (0) target = $region69
    $region68: #{tpu_custom_call.1} parent=1 // pred_region
      %1301 = dma.done [#allocation3], 128
    $region69: #{tpu_custom_call.1} parent=1 // pred_fallthru
      _
    %1302 = vsyncpa [#allocation3], 1

// kernel: tpu_custom_call.1
$region0: #{tpu_custom_call.1}
  #allocation0 [shape = 'u32[]', space=smem, size = 0x4, offset = 0x4, fixed_abs, tag = 'smem constant byte address 0x4 - core index']
  #allocation1 [shape = 'u32[144,128]{1,0:T(1,128)}', space=vmem, size = 0x12000, scoped, tag = 'internal scratch']
  %s0 = inlined_call_operand.vmem [shape: f32[8,32], index: 0, kind: input, shape index: {}]
  %s1 = inlined_call_operand.vmem [shape: f32[32,210], index: 1, kind: input, shape index: {}]
  %s2 = inlined_call_operand.vmem [shape: f32[1,210], index: 2, kind: input, shape index: {}]
  %s3 = inlined_call_operand.vmem [shape: f32[192,96], index: 3, kind: input, shape index: {}]
  %s4 = inlined_call_operand.vmem [shape: f32[1,96], index: 4, kind: input, shape index: {}]
  %s5 = inlined_call_operand.vmem [shape: f32[18,288], index: 5, kind: input, shape index: {}]
  %s6 = inlined_call_operand.vmem [shape: f32[288,48], index: 6, kind: input, shape index: {}]
  %s7 = inlined_call_operand.vmem [shape: f32[1,18], index: 7, kind: input, shape index: {}]
  %s8 = inlined_call_operand.vmem [shape: f32[48,114], index: 8, kind: input, shape index: {}]
  %s9 = inlined_call_operand.vmem [shape: f32[1,114], index: 9, kind: input, shape index: {}]
  %s10 = inlined_call_operand.vmem [shape: f32[96,96], index: 10, kind: input, shape index: {}]
  %s11 = inlined_call_operand.vmem [shape: f32[1,96], index: 11, kind: input, shape index: {}]
  %s12 = inlined_call_operand.vmem [shape: f32[18,288], index: 12, kind: input, shape index: {}]
  %s13 = inlined_call_operand.vmem [shape: f32[288,48], index: 13, kind: input, shape index: {}]
  %s14 = inlined_call_operand.vmem [shape: f32[1,18], index: 14, kind: input, shape index: {}]
  %s15 = inlined_call_operand.hbm [shape: f32[8,128], index: 15, kind: output, shape index: {}]
  %s16 = sld [smem:[#allocation0]]
  $region70: #{tpu_custom_call.1} parent=0
    _
  %s18 = ssub.s32 1, %s16
  %s19 = scalar_select 0, %s18, %s16
  $region1: #{tpu_custom_call.1} parent=0
    #allocation2 [shape = 'u8[4096]{0}', space=vmem, size = 0x1000, scoped, tag = 'output window, operand 0, single buffered']
    #allocation3 [shape = 's32[1]{0}', space=sflag, size = 0x4, scoped, tag = 'scoped memory for tpu_custom_call.1']
    %20 = vsyncpa [#allocation3], 0
    // Predicated region
    $region2: #{tpu_custom_call.1} parent=1 // pred_check
      _
    $region3: #{tpu_custom_call.1} parent=1 // pred_check_branch
      %22 = sbr.rel (0) target = $region5
    $region4: #{tpu_custom_call.1} parent=1 // pred_region
      _
    $region5: #{tpu_custom_call.1} parent=1 // pred_fallthru
      _
    // Predicated region
    $region6: #{tpu_custom_call.1} parent=1 // pred_check
      _
    $region7: #{tpu_custom_call.1} parent=1 // pred_check_branch
      %24 = sbr.rel (0) target = $region9
    $region8: #{tpu_custom_call.1} parent=1 // pred_region
      _
    $region9: #{tpu_custom_call.1} parent=1 // pred_fallthru
      _
    // Predicated region
    $region10: #{tpu_custom_call.1} parent=1 // pred_check
      _
    $region11: #{tpu_custom_call.1} parent=1 // pred_check_branch
      %26 = sbr.rel (0) target = $region13
    $region12: #{tpu_custom_call.1} parent=1 // pred_region
      _
    $region13: #{tpu_custom_call.1} parent=1 // pred_fallthru
      _
    // Predicated region
    $region14: #{tpu_custom_call.1} parent=1 // pred_check
      _
    $region15: #{tpu_custom_call.1} parent=1 // pred_check_branch
      %28 = sbr.rel (0) target = $region17
    $region16: #{tpu_custom_call.1} parent=1 // pred_region
      _
    $region17: #{tpu_custom_call.1} parent=1 // pred_fallthru
      _
    // Predicated region
    $region18: #{tpu_custom_call.1} parent=1 // pred_check
      _
    $region19: #{tpu_custom_call.1} parent=1 // pred_check_branch
      %30 = sbr.rel (0) target = $region21
    $region20: #{tpu_custom_call.1} parent=1 // pred_region
      _
    $region21: #{tpu_custom_call.1} parent=1 // pred_fallthru
      _
    // Predicated region
    $region22: #{tpu_custom_call.1} parent=1 // pred_check
      _
    $region23: #{tpu_custom_call.1} parent=1 // pred_check_branch
      %32 = sbr.rel (0) target = $region25
    $region24: #{tpu_custom_call.1} parent=1 // pred_region
      _
    $region25: #{tpu_custom_call.1} parent=1 // pred_fallthru
      _
    // Predicated region
    $region26: #{tpu_custom_call.1} parent=1 // pred_check
      _
    $region27: #{tpu_custom_call.1} parent=1 // pred_check_branch
      %34 = sbr.rel (0) target = $region29
    $region28: #{tpu_custom_call.1} parent=1 // pred_region
      _
    $region29: #{tpu_custom_call.1} parent=1 // pred_fallthru
      _
    // Predicated region
    $region30: #{tpu_custom_call.1} parent=1 // pred_check
      _
    $region31: #{tpu_custom_call.1} parent=1 // pred_check_branch
      %36 = sbr.rel (0) target = $region33
    $region32: #{tpu_custom_call.1} parent=1 // pred_region
      _
    $region33: #{tpu_custom_call.1} parent=1 // pred_fallthru
      _
    // Predicated region
    $region34: #{tpu_custom_call.1} parent=1 // pred_check
      _
    $region35: #{tpu_custom_call.1} parent=1 // pred_check_branch
      %38 = sbr.rel (0) target = $region37
    $region36: #{tpu_custom_call.1} parent=1 // pred_region
      _
    $region37: #{tpu_custom_call.1} parent=1 // pred_fallthru
      _
    // Predicated region
    $region38: #{tpu_custom_call.1} parent=1 // pred_check
      _
    $region39: #{tpu_custom_call.1} parent=1 // pred_check_branch
      %40 = sbr.rel (0) target = $region41
    $region40: #{tpu_custom_call.1} parent=1 // pred_region
      _
    $region41: #{tpu_custom_call.1} parent=1 // pred_fallthru
      _
    // Predicated region
    $region42: #{tpu_custom_call.1} parent=1 // pred_check
      _
    $region43: #{tpu_custom_call.1} parent=1 // pred_check_branch
      %42 = sbr.rel (0) target = $region45
    $region44: #{tpu_custom_call.1} parent=1 // pred_region
      _
    $region45: #{tpu_custom_call.1} parent=1 // pred_fallthru
      _
    // Predicated region
    $region46: #{tpu_custom_call.1} parent=1 // pred_check
      _
    $region47: #{tpu_custom_call.1} parent=1 // pred_check_branch
      %44 = sbr.rel (0) target = $region49
    $region48: #{tpu_custom_call.1} parent=1 // pred_region
      _
    $region49: #{tpu_custom_call.1} parent=1 // pred_fallthru
      _
    // Predicated region
    $region50: #{tpu_custom_call.1} parent=1 // pred_check
      _
    $region51: #{tpu_custom_call.1} parent=1 // pred_check_branch
      %46 = sbr.rel (0) target = $region53
    $region52: #{tpu_custom_call.1} parent=1 // pred_region
      _
    $region53: #{tpu_custom_call.1} parent=1 // pred_fallthru
      _
    // Predicated region
    $region54: #{tpu_custom_call.1} parent=1 // pred_check
      _
    $region55: #{tpu_custom_call.1} parent=1 // pred_check_branch
      %48 = sbr.rel (0) target = $region57
    $region56: #{tpu_custom_call.1} parent=1 // pred_region
      _
    $region57: #{tpu_custom_call.1} parent=1 // pred_fallthru
      _
    // Predicated region
    $region58: #{tpu_custom_call.1} parent=1 // pred_check
      _
    $region59: #{tpu_custom_call.1} parent=1 // pred_check_branch
      %50 = sbr.rel (0) target = $region61
    $region60: #{tpu_custom_call.1} parent=1 // pred_region
      _
    $region61: #{tpu_custom_call.1} parent=1 // pred_fallthru
      _
    %v51 = vld [vmem:[%s0] sm:$0xff]
    %v52 = vld [vmem:[%s1] sm:$0xff]
    %v53 = vld [vmem:[%s1 + $0x8] sm:$0xff]
    %v54 = vld [vmem:[%s1 + $0x10] sm:$0xff]
    %v55 = vld [vmem:[%s1 + $0x18] sm:$0xff]
    %v56 = vld [vmem:[%s1 + $0x20] sm:$0xff]
    %v57 = vld [vmem:[%s1 + $0x28] sm:$0xff]
    %v58 = vld [vmem:[%s1 + $0x30] sm:$0xff]
    %v59 = vld [vmem:[%s1 + $0x38] sm:$0xff]
    %v60 = vld [vmem:[%s2] sm:$0x3]
    %v61 = vld [vmem:[%s5] sm:$0xff]
    %v62 = vld [vmem:[%s5 + $0x8] sm:$0xff]
    %v63 = vld [vmem:[%s5 + $0x10] sm:$0xff]
    %v64 = vld [vmem:[%s5 + $0x18] sm:$0xff]
    %v65 = vld [vmem:[%s5 + $0x20] sm:$0xff]
    %v66 = vld [vmem:[%s5 + $0x28] sm:$0xff]
    %v67 = vld [vmem:[%s5 + $0x30] sm:$0x3]
    %v68 = vld [vmem:[%s5 + $0x38] sm:$0x3]
    %v69 = vld [vmem:[%s5 + $0x40] sm:$0x3]
    %v70 = vld [vmem:[%s6] sm:$0xff]
    %v71 = vld [vmem:[%s6 + $0x8] sm:$0xff]
    %v72 = vld [vmem:[%s6 + $0x10] sm:$0xff]
    %v73 = vld [vmem:[%s6 + $0x18] sm:$0xff]
    %v74 = vld [vmem:[%s6 + $0x20] sm:$0xff]
    %v75 = vld [vmem:[%s6 + $0x28] sm:$0xff]
    %v76 = vld [vmem:[%s6 + $0x30] sm:$0xff]
    %v77 = vld [vmem:[%s6 + $0x38] sm:$0xff]
    %v78 = vld [vmem:[%s6 + $0x40] sm:$0xff]
    %v79 = vld [vmem:[%s6 + $0x48] sm:$0xff]
    %v80 = vld [vmem:[%s6 + $0x50] sm:$0xff]
    %v81 = vld [vmem:[%s6 + $0x58] sm:$0xff]
    %v82 = vld [vmem:[%s6 + $0x60] sm:$0xff]
    %v83 = vld [vmem:[%s6 + $0x68] sm:$0xff]
    %v84 = vld [vmem:[%s6 + $0x70] sm:$0xff]
    %v85 = vld [vmem:[%s6 + $0x78] sm:$0xff]
    %v86 = vld [vmem:[%s6 + $0x80] sm:$0xff]
    %v87 = vld [vmem:[%s6 + $0x88] sm:$0xff]
    %v88 = vld [vmem:[%s6 + $0x90] sm:$0xff]
    %v89 = vld [vmem:[%s6 + $0x98] sm:$0xff]
    %v90 = vld [vmem:[%s6 + $0xa0] sm:$0xff]
    %v91 = vld [vmem:[%s6 + $0xa8] sm:$0xff]
    %v92 = vld [vmem:[%s6 + $0xb0] sm:$0xff]
    %v93 = vld [vmem:[%s6 + $0xb8] sm:$0xff]
    %v94 = vld [vmem:[%s6 + $0xc0] sm:$0xff]
    %v95 = vld [vmem:[%s6 + $0xc8] sm:$0xff]
    %v96 = vld [vmem:[%s6 + $0xd0] sm:$0xff]
    %v97 = vld [vmem:[%s6 + $0xd8] sm:$0xff]
    %v98 = vld [vmem:[%s6 + $0xe0] sm:$0xff]
    %v99 = vld [vmem:[%s6 + $0xe8] sm:$0xff]
    %v100 = vld [vmem:[%s6 + $0xf0] sm:$0xff]
    %v101 = vld [vmem:[%s6 + $0xf8] sm:$0xff]
    %v102 = vld [vmem:[%s6 + $0x100] sm:$0xff]
    %v103 = vld [vmem:[%s6 + $0x108] sm:$0xff]
    %v104 = vld [vmem:[%s6 + $0x110] sm:$0xff]
    %v105 = vld [vmem:[%s6 + $0x118] sm:$0xff]
    %v106 = vld [vmem:[%s7] sm:$0x1]
    %v108 = vlaneseq
    %v109 = vshrl.u32 %v108, 7
    %v110 = vsub.s32 0, %v109
    %v111 = vrot.slane %v60, %v110
    %v112 = vlaneseq
    %v113 = vshrl.u32 %v112, 7
    %v114 = vsub.s32 1, %v113
    %v115 = vrot.slane %v60, %v114
    %vm118 = vcmask 261120
    %v120 = vsel %vm118, %v51, 0
    %122 = vmatprep.subr.mxu0 0.0
    %123 = vmatpush1.msra.mxu0 0.0
    %124 = vmatprep.subr.mxu0 0.0
    %125 = vmatpush1.msra.mxu0 0.0
    %126 = vmatprep.subr.mxu0 0.0
    %127 = vmatpush1.msra.mxu0 0.0
    %128 = vmatprep.subr.mxu0 0.0
    %129 = vmatpush1.msra.mxu0 0.0
    %130 = vmatprep.subr.mxu0 0.0
    %131 = vmatpush1.msra.mxu0 0.0
    %132 = vmatprep.subr.mxu0 0.0
    %133 = vmatpush1.msra.mxu0 0.0
    %134 = vmatprep.subr.mxu0 0.0
    %135 = vmatpush1.msra.mxu0 0.0
    %136 = vmatprep.subr.mxu0 0.0
    %137 = vmatpush1.msra.mxu0 0.0
    %138 = vmatprep.subr.mxu0 0.0
    %139 = vmatpush1.msra.mxu0 0.0
    %140 = vmatprep.subr.mxu0 0.0
    %141 = vmatpush1.msra.mxu0 0.0
    %142 = vmatprep.subr.mxu0 0.0
    %143 = vmatpush1.msra.mxu0 0.0
    %144 = vmatprep.subr.mxu0 0.0
    %145 = vmatpush1.msra.mxu0 0.0
    %146 = vmatprep.subr.mxu0 %v59
    %147 = vmatpush1.msra.mxu0 %v58
    %148 = vmatprep.subr.mxu0 %v57
    %149 = vmatpush1.msra.mxu0 %v56
    %150 = vmatprep.subr.mxu0 %v55
    %151 = vmatpush1.msra.mxu0 %v54
    %152 = vmatprep.subr.mxu0 %v53
    %153 = vmatpush1.msra.mxu0 %v52
    %154 = vmatprep.subr.mxu0 0.0
    %155 = vmatpush2.msra.mxu0 0.0
    %156 = vmatprep.subr.mxu0 0.0
    %157 = vmatpush2.msra.mxu0 0.0
    %158 = vmatprep.subr.mxu0 0.0
    %159 = vmatpush2.msra.mxu0 0.0
    %160 = vmatprep.subr.mxu0 0.0
    %161 = vmatpush2.msra.mxu0 0.0
    %162 = vmatprep.subr.mxu0 0.0
    %163 = vmatpush2.msra.mxu0 0.0
    %164 = vmatprep.subr.mxu0 0.0
    %165 = vmatpush2.msra.mxu0 0.0
    %166 = vmatprep.subr.mxu0 0.0
    %167 = vmatpush2.msra.mxu0 0.0
    %168 = vmatprep.subr.mxu0 0.0
    %169 = vmatpush2.msra.mxu0 0.0
    %170 = vmatprep.subr.mxu0 0.0
    %171 = vmatpush2.msra.mxu0 0.0
    %172 = vmatprep.subr.mxu0 0.0
    %173 = vmatpush2.msra.mxu0 0.0
    %174 = vmatprep.subr.mxu0 0.0
    %175 = vmatpush2.msra.mxu0 0.0
    %176 = vmatprep.subr.mxu0 0.0
    %177 = vmatpush2.msra.mxu0 0.0
    %178 = vmatprep.subr.mxu0 0.0
    %179 = vmatpush2.msra.mxu0 0.0
    %180 = vmatprep.subr.mxu0 0.0
    %181 = vmatpush2.msra.mxu0 0.0
    %182 = vmatprep.subr.mxu0 0.0
    %183 = vmatpush2.msra.mxu0 0.0
    %184 = vmatprep.subr.mxu0 0.0
    %185 = vmatpush2.msra.mxu0 0.0
    %186 = vmatprep.mubr.f32.mxu0 0.0
    %187 = vmatmul.mubr.f32.gmra.mxu0 %v120
    %v188 = vpop.f32.mrf.mxu0
    %v189 = vadd.f32 %v111, %v188
    %v190 = vpop.f32.mrf.mxu0
    %v191 = vadd.f32 %v115, %v190
    %192 = vdwg.mxu0
    %v193 = vmax.f32 %v189, 0.0
    %v194 = vmax.f32 %v191, 0.0
    %v195 = vld [vmem:[%s3] sm:$0xff]
    %v196 = vld [vmem:[%s3 + $0x8] sm:$0xff]
    %v197 = vld [vmem:[%s3 + $0x10] sm:$0xff]
    %v198 = vld [vmem:[%s3 + $0x18] sm:$0xff]
    %v199 = vld [vmem:[%s3 + $0x20] sm:$0xff]
    %v200 = vld [vmem:[%s3 + $0x28] sm:$0xff]
    %v201 = vld [vmem:[%s3 + $0x30] sm:$0xff]
    %v202 = vld [vmem:[%s3 + $0x38] sm:$0xff]
    %v203 = vld [vmem:[%s3 + $0x40] sm:$0xff]
    %v204 = vld [vmem:[%s3 + $0x48] sm:$0xff]
    %v205 = vld [vmem:[%s3 + $0x50] sm:$0xff]
    %v206 = vld [vmem:[%s3 + $0x58] sm:$0xff]
    %v207 = vld [vmem:[%s3 + $0x60] sm:$0xff]
    %v208 = vld [vmem:[%s3 + $0x68] sm:$0xff]
    %v209 = vld [vmem:[%s3 + $0x70] sm:$0xff]
    %v210 = vld [vmem:[%s3 + $0x78] sm:$0xff]
    %v211 = vld [vmem:[%s3 + $0x80] sm:$0xff]
    %v212 = vld [vmem:[%s3 + $0x88] sm:$0xff]
    %v213 = vld [vmem:[%s3 + $0x90] sm:$0xff]
    %v214 = vld [vmem:[%s3 + $0x98] sm:$0xff]
    %v215 = vld [vmem:[%s3 + $0xa0] sm:$0xff]
    %v216 = vld [vmem:[%s3 + $0xa8] sm:$0xff]
    %v217 = vld [vmem:[%s3 + $0xb0] sm:$0xff]
    %v218 = vld [vmem:[%s3 + $0xb8] sm:$0xff]
    %v219 = vld [vmem:[%s4] sm:$0x1]
    %v221 = vlaneseq
    %v222 = vshrl.u32 %v221, 7
    %v223 = vsub.s32 0, %v222
    %v224 = vrot.slane %v219, %v223
    %vm226 = vcmask 523264
    %v228 = vsel %vm226, %v194, 0
    %230 = vmatprep.subr.mxu0 0.0
    %231 = vmatpush1.msra.mxu0 %v210
    %232 = vmatprep.subr.mxu0 0.0
    %233 = vmatpush1.msra.mxu0 %v209
    %234 = vmatprep.subr.mxu0 0.0
    %235 = vmatpush1.msra.mxu0 %v208
    %236 = vmatprep.subr.mxu0 0.0
    %237 = vmatpush1.msra.mxu0 %v207
    %238 = vmatprep.subr.mxu0 0.0
    %239 = vmatpush1.msra.mxu0 %v206
    %240 = vmatprep.subr.mxu0 0.0
    %241 = vmatpush1.msra.mxu0 %v205
    %242 = vmatprep.subr.mxu0 0.0
    %243 = vmatpush1.msra.mxu0 %v204
    %244 = vmatprep.subr.mxu0 0.0
    %245 = vmatpush1.msra.mxu0 %v203
    %246 = vmatprep.subr.mxu0 0.0
    %247 = vmatpush1.msra.mxu0 %v202
    %248 = vmatprep.subr.mxu0 0.0
    %249 = vmatpush1.msra.mxu0 %v201
    %250 = vmatprep.subr.mxu0 0.0
    %251 = vmatpush1.msra.mxu0 %v200
    %252 = vmatprep.subr.mxu0 0.0
    %253 = vmatpush1.msra.mxu0 %v199
    %254 = vmatprep.subr.mxu0 0.0
    %255 = vmatpush1.msra.mxu0 %v198
    %256 = vmatprep.subr.mxu0 0.0
    %257 = vmatpush1.msra.mxu0 %v197
    %258 = vmatprep.subr.mxu0 0.0
    %259 = vmatpush1.msra.mxu0 %v196
    %260 = vmatprep.subr.mxu0 0.0
    %261 = vmatpush1.msra.mxu0 %v195
    %262 = vmatprep.subr.mxu0 0.0
    %263 = vmatpush2.msra.mxu0 0.0
    %264 = vmatprep.subr.mxu0 0.0
    %265 = vmatpush2.msra.mxu0 0.0
    %266 = vmatprep.subr.mxu0 0.0
    %267 = vmatpush2.msra.mxu0 0.0
    %268 = vmatprep.subr.mxu0 0.0
    %269 = vmatpush2.msra.mxu0 0.0
    %270 = vmatprep.subr.mxu0 0.0
    %271 = vmatpush2.msra.mxu0 0.0
    %272 = vmatprep.subr.mxu0 0.0
    %273 = vmatpush2.msra.mxu0 0.0
    %274 = vmatprep.subr.mxu0 0.0
    %275 = vmatpush2.msra.mxu0 0.0
    %276 = vmatprep.subr.mxu0 0.0
    %277 = vmatpush2.msra.mxu0 0.0
    %278 = vmatprep.subr.mxu0 0.0
    %279 = vmatpush2.msra.mxu0 %v218
    %280 = vmatprep.subr.mxu0 0.0
    %281 = vmatpush2.msra.mxu0 %v217
    %282 = vmatprep.subr.mxu0 0.0
    %283 = vmatpush2.msra.mxu0 %v216
    %284 = vmatprep.subr.mxu0 0.0
    %285 = vmatpush2.msra.mxu0 %v215
    %286 = vmatprep.subr.mxu0 0.0
    %287 = vmatpush2.msra.mxu0 %v214
    %288 = vmatprep.subr.mxu0 0.0
    %289 = vmatpush2.msra.mxu0 %v213
    %290 = vmatprep.subr.mxu0 0.0
    %291 = vmatpush2.msra.mxu0 %v212
    %292 = vmatprep.subr.mxu0 0.0
    %293 = vmatpush2.msra.mxu0 %v211
    %294 = vmatprep.mubr.f32.mxu0 %v228
    %295 = vmatmul.mubr.f32.gmra.mxu0 %v193
    %v296 = vpop.f32.mrf.mxu0
    %v297 = vadd.f32 %v224, %v296
    %v298 = vpop.f32.mrf.mxu0
    %299 = vdwg.mxu0
    %v300 = vmax.f32 %v297, 0.0
    %vm301 = vcmask 572928
    %v302 = vsel %vm301, %v191, -inf
    %303 = vmax.xlane.f32.xlu0 %v302
    %v304 = vpop.xlane.xlu0 %303
    %v305 = vsub.f32 %v191, %v304
    %v306 = vmul.f32 %v305, 1.442695
    %v307 = vpow.pop %v306
    %309 = vrot.lane.b32.xlu0 %v307, 64
    %v310 = vpop.permute.xlu0 %309
    %vm312 = vcmask 48128
    %v313 = vsel %vm312, %v310, 0.0
    %314 = vadd.xlane.f32.xlu0 %v313
    %v315 = vpop.xlane.xlu0 %314
    %v316 = vrcp.pop %v315
    %v317 = vmul.f32 %v307, %v316
    %vm318 = vcmask 622128
    %v319 = vsel %vm318, %v191, -inf
    %320 = vmax.xlane.f32.xlu0 %v319
    %v321 = vpop.xlane.xlu0 %320
    %v322 = vsub.f32 %v191, %v321
    %v323 = vmul.f32 %v322, 1.442695
    %v324 = vpow.pop %v323
    %326 = vrot.lane.b32.xlu0 %v324, 58
    %v327 = vpop.permute.xlu0 %326
    %v329 = vsel %vm312, %v327, 0.0
    %330 = vadd.xlane.f32.xlu0 %v329
    %v331 = vpop.xlane.xlu0 %330
    %v332 = vrcp.pop %v331
    %v333 = vmul.f32 %v324, %v332
    %vm334 = vcmask 671328
    %v335 = vsel %vm334, %v191, -inf
    %336 = vmax.xlane.f32.xlu0 %v335
    %v337 = vpop.xlane.xlu0 %336
    %v338 = vsub.f32 %v191, %v337
    %v339 = vmul.f32 %v338, 1.442695
    %v340 = vpow.pop %v339
    %342 = vrot.lane.b32.xlu0 %v340, 52
    %v343 = vpop.permute.xlu0 %342
    %v345 = vsel %vm312, %v343, 0.0
    %346 = vadd.xlane.f32.xlu0 %v345
    %v347 = vpop.xlane.xlu0 %346
    %v348 = vrcp.pop %v347
    %v349 = vmul.f32 %v340, %v348
    %351 = vrot.lane.b32.xlu0 %v317, 64
    %v352 = vpop.permute.xlu0 %351
    %355 = vrot.lane.b32.xlu0 %v333, 64
    %v356 = vpop.permute.xlu0 %355
    %359 = vrot.lane.b32.xlu0 %v349, 64
    %v360 = vpop.permute.xlu0 %359
    %v362 = vsel %vm312, %v352, %v356
    %vm363 = vcmask 97280
    %v364 = vsel %vm363, %v362, %v360
    %v366 = vlaneseq
    %v367 = vshrl.u32 %v366, 7
    %v368 = vsub.s32 0, %v367
    %v369 = vrot.slane %v106, %v368
    %v371 = vadd.f32 %v364, %v369
    %vm372 = vcmask 146432
    %v374 = vsel %vm372, %v371, 0
    %vm376 = vcmask 1041408
    %v378 = vsel %vm376, %v67, 0
    %v381 = vsel %vm376, %v68, 0
    %v384 = vsel %vm376, %v69, 0
    %386 = vmatprep.subr.mxu0 0.0
    %387 = vmatpush1.msra.mxu0 0.0
    %388 = vmatprep.subr.mxu0 0.0
    %389 = vmatpush1.msra.mxu0 0.0
    %390 = vmatprep.subr.mxu0 0.0
    %391 = vmatpush1.msra.mxu0 0.0
    %392 = vmatprep.subr.mxu0 0.0
    %393 = vmatpush1.msra.mxu0 0.0
    %394 = vmatprep.subr.mxu0 0.0
    %395 = vmatpush1.msra.mxu0 0.0
    %396 = vmatprep.subr.mxu0 0.0
    %397 = vmatpush1.msra.mxu0 0.0
    %398 = vmatprep.subr.mxu0 0.0
    %399 = vmatpush1.msra.mxu0 0.0
    %400 = vmatprep.subr.mxu0 0.0
    %401 = vmatpush1.msra.mxu0 0.0
    %402 = vmatprep.subr.mxu0 0.0
    %403 = vmatpush1.msra.mxu0 0.0
    %404 = vmatprep.subr.mxu0 0.0
    %405 = vmatpush1.msra.mxu0 0.0
    %406 = vmatprep.subr.mxu0 0.0
    %407 = vmatpush1.msra.mxu0 0.0
    %408 = vmatprep.subr.mxu0 0.0
    %409 = vmatpush1.msra.mxu0 0.0
    %410 = vmatprep.subr.mxu0 0.0
    %411 = vmatpush1.msra.mxu0 0.0
    %412 = vmatprep.subr.mxu0 %v381
    %413 = vmatpush1.msra.mxu0 %v378
    %414 = vmatprep.subr.mxu0 %v65
    %415 = vmatpush1.msra.mxu0 %v64
    %416 = vmatprep.subr.mxu0 %v62
    %417 = vmatpush1.msra.mxu0 %v61
    %418 = vmatprep.subr.mxu0 0.0
    %419 = vmatpush2.msra.mxu0 0.0
    %420 = vmatprep.subr.mxu0 0.0
    %421 = vmatpush2.msra.mxu0 0.0
    %422 = vmatprep.subr.mxu0 0.0
    %423 = vmatpush2.msra.mxu0 0.0
    %424 = vmatprep.subr.mxu0 0.0
    %425 = vmatpush2.msra.mxu0 0.0
    %426 = vmatprep.subr.mxu0 0.0
    %427 = vmatpush2.msra.mxu0 0.0
    %428 = vmatprep.subr.mxu0 0.0
    %429 = vmatpush2.msra.mxu0 0.0
    %430 = vmatprep.subr.mxu0 0.0
    %431 = vmatpush2.msra.mxu0 0.0
    %432 = vmatprep.subr.mxu0 0.0
    %433 = vmatpush2.msra.mxu0 0.0
    %434 = vmatprep.subr.mxu0 0.0
    %435 = vmatpush2.msra.mxu0 0.0
    %436 = vmatprep.subr.mxu0 0.0
    %437 = vmatpush2.msra.mxu0 0.0
    %438 = vmatprep.subr.mxu0 0.0
    %439 = vmatpush2.msra.mxu0 0.0
    %440 = vmatprep.subr.mxu0 0.0
    %441 = vmatpush2.msra.mxu0 0.0
    %442 = vmatprep.subr.mxu0 0.0
    %443 = vmatpush2.msra.mxu0 0.0
    %444 = vmatprep.subr.mxu0 0.0
    %445 = vmatpush2.msra.mxu0 0.0
    %446 = vmatprep.subr.mxu0 0.0
    %447 = vmatpush2.msra.mxu0 0.0
    %448 = vmatprep.subr.mxu0 0.0
    %449 = vmatpush2.msra.mxu0 0.0
    %450 = vmatprep.mubr.f32.mxu0 0.0
    %451 = vmatmul.mubr.f32.gmra.mxu0 %v374
    %v452 = vpop.f32.mrf.mxu0
    %v453 = vadd.f32 0.0, %v452
    %v454 = vpop.f32.mrf.mxu0
    %v455 = vadd.f32 0.0, %v454
    %456 = vdwg.mxu0
    %457 = vmatprep.subr.mxu0 0.0
    %458 = vmatpush1.msra.mxu0 0.0
    %459 = vmatprep.subr.mxu0 0.0
    %460 = vmatpush1.msra.mxu0 0.0
    %461 = vmatprep.subr.mxu0 0.0
    %462 = vmatpush1.msra.mxu0 0.0
    %463 = vmatprep.subr.mxu0 0.0
    %464 = vmatpush1.msra.mxu0 0.0
    %465 = vmatprep.subr.mxu0 0.0
    %466 = vmatpush1.msra.mxu0 0.0
    %467 = vmatprep.subr.mxu0 0.0
    %468 = vmatpush1.msra.mxu0 0.0
    %469 = vmatprep.subr.mxu0 0.0
    %470 = vmatpush1.msra.mxu0 0.0
    %471 = vmatprep.subr.mxu0 0.0
    %472 = vmatpush1.msra.mxu0 0.0
    %473 = vmatprep.subr.mxu0 0.0
    %474 = vmatpush1.msra.mxu0 0.0
    %475 = vmatprep.subr.mxu0 0.0
    %476 = vmatpush1.msra.mxu0 0.0
    %477 = vmatprep.subr.mxu0 0.0
    %478 = vmatpush1.msra.mxu0 0.0
    %479 = vmatprep.subr.mxu0 0.0
    %480 = vmatpush1.msra.mxu0 0.0
    %481 = vmatprep.subr.mxu0 0.0
    %482 = vmatpush1.msra.mxu0 0.0
    %483 = vmatprep.subr.mxu0 0.0
    %484 = vmatpush1.msra.mxu0 %v384
    %485 = vmatprep.subr.mxu0 0.0
    %486 = vmatpush1.msra.mxu0 %v66
    %487 = vmatprep.subr.mxu0 0.0
    %488 = vmatpush1.msra.mxu0 %v63
    %489 = vmatprep.subr.mxu0 0.0
    %490 = vmatpush2.msra.mxu0 0.0
    %491 = vmatprep.subr.mxu0 0.0
    %492 = vmatpush2.msra.mxu0 0.0
    %493 = vmatprep.subr.mxu0 0.0
    %494 = vmatpush2.msra.mxu0 0.0
    %495 = vmatprep.subr.mxu0 0.0
    %496 = vmatpush2.msra.mxu0 0.0
    %497 = vmatprep.subr.mxu0 0.0
    %498 = vmatpush2.msra.mxu0 0.0
    %499 = vmatprep.subr.mxu0 0.0
    %500 = vmatpush2.msra.mxu0 0.0
    %501 = vmatprep.subr.mxu0 0.0
    %502 = vmatpush2.msra.mxu0 0.0
    %503 = vmatprep.subr.mxu0 0.0
    %504 = vmatpush2.msra.mxu0 0.0
    %505 = vmatprep.subr.mxu0 0.0
    %506 = vmatpush2.msra.mxu0 0.0
    %507 = vmatprep.subr.mxu0 0.0
    %508 = vmatpush2.msra.mxu0 0.0
    %509 = vmatprep.subr.mxu0 0.0
    %510 = vmatpush2.msra.mxu0 0.0
    %511 = vmatprep.subr.mxu0 0.0
    %512 = vmatpush2.msra.mxu0 0.0
    %513 = vmatprep.subr.mxu0 0.0
    %514 = vmatpush2.msra.mxu0 0.0
    %515 = vmatprep.subr.mxu0 0.0
    %516 = vmatpush2.msra.mxu0 0.0
    %517 = vmatprep.subr.mxu0 0.0
    %518 = vmatpush2.msra.mxu0 0.0
    %519 = vmatprep.subr.mxu0 0.0
    %520 = vmatpush2.msra.mxu0 0.0
    %521 = vmatprep.mubr.f32.mxu0 0.0
    %522 = vmatmul.mubr.f32.gmra.mxu0 %v374
    %v523 = vpop.f32.mrf.mxu0
    %v524 = vadd.f32 0.0, %v523
    %v525 = vpop.f32.mrf.mxu0
    %526 = vdwg.mxu0
    %528 = vrot.lane.b32.xlu0 %v300, 96
    %v529 = vpop.permute.xlu0 %528
    %531 = vrot.lane.b32.xlu0 %v300, 64
    %v532 = vpop.permute.xlu0 %531
    %vm534 = vcmask 785408
    %v535 = vsel %vm534, %v300, %v529
    %v536 = vsel %vm226, %v529, %v532
    %v537 = vmul.f32 %v453, %v535
    %v538 = vmul.f32 %v455, %v536
    %v539 = vmul.f32 %v524, %v532
    %v541 = vsel %vm118, %v539, 0
    %543 = vmatprep.subr.mxu0 0.0
    %544 = vmatpush1.msra.mxu0 %v85
    %545 = vmatprep.subr.mxu0 0.0
    %546 = vmatpush1.msra.mxu0 %v84
    %547 = vmatprep.subr.mxu0 0.0
    %548 = vmatpush1.msra.mxu0 %v83
    %549 = vmatprep.subr.mxu0 0.0
    %550 = vmatpush1.msra.mxu0 %v82
    %551 = vmatprep.subr.mxu0 0.0
    %552 = vmatpush1.msra.mxu0 %v81
    %553 = vmatprep.subr.mxu0 0.0
    %554 = vmatpush1.msra.mxu0 %v80
    %555 = vmatprep.subr.mxu0 0.0
    %556 = vmatpush1.msra.mxu0 %v79
    %557 = vmatprep.subr.mxu0 0.0
    %558 = vmatpush1.msra.mxu0 %v78
    %559 = vmatprep.subr.mxu0 0.0
    %560 = vmatpush1.msra.mxu0 %v77
    %561 = vmatprep.subr.mxu0 0.0
    %562 = vmatpush1.msra.mxu0 %v76
    %563 = vmatprep.subr.mxu0 0.0
    %564 = vmatpush1.msra.mxu0 %v75
    %565 = vmatprep.subr.mxu0 0.0
    %566 = vmatpush1.msra.mxu0 %v74
    %567 = vmatprep.subr.mxu0 0.0
    %568 = vmatpush1.msra.mxu0 %v73
    %569 = vmatprep.subr.mxu0 0.0
    %570 = vmatpush1.msra.mxu0 %v72
    %571 = vmatprep.subr.mxu0 0.0
    %572 = vmatpush1.msra.mxu0 %v71
    %573 = vmatprep.subr.mxu0 0.0
    %574 = vmatpush1.msra.mxu0 %v70
    %575 = vmatprep.subr.mxu0 0.0
    %576 = vmatpush2.msra.mxu0 %v101
    %577 = vmatprep.subr.mxu0 0.0
    %578 = vmatpush2.msra.mxu0 %v100
    %579 = vmatprep.subr.mxu0 0.0
    %580 = vmatpush2.msra.mxu0 %v99
    %581 = vmatprep.subr.mxu0 0.0
    %582 = vmatpush2.msra.mxu0 %v98
    %583 = vmatprep.subr.mxu0 0.0
    %584 = vmatpush2.msra.mxu0 %v97
    %585 = vmatprep.subr.mxu0 0.0
    %586 = vmatpush2.msra.mxu0 %v96
    %587 = vmatprep.subr.mxu0 0.0
    %588 = vmatpush2.msra.mxu0 %v95
    %589 = vmatprep.subr.mxu0 0.0
    %590 = vmatpush2.msra.mxu0 %v94
    %591 = vmatprep.subr.mxu0 0.0
    %592 = vmatpush2.msra.mxu0 %v93
    %593 = vmatprep.subr.mxu0 0.0
    %594 = vmatpush2.msra.mxu0 %v92
    %595 = vmatprep.subr.mxu0 0.0
    %596 = vmatpush2.msra.mxu0 %v91
    %597 = vmatprep.subr.mxu0 0.0
    %598 = vmatpush2.msra.mxu0 %v90
    %599 = vmatprep.subr.mxu0 0.0
    %600 = vmatpush2.msra.mxu0 %v89
    %601 = vmatprep.subr.mxu0 0.0
    %602 = vmatpush2.msra.mxu0 %v88
    %603 = vmatprep.subr.mxu0 0.0
    %604 = vmatpush2.msra.mxu0 %v87
    %605 = vmatprep.subr.mxu0 0.0
    %606 = vmatpush2.msra.mxu0 %v86
    %607 = vmatprep.mubr.f32.mxu0 %v538
    %608 = vmatmul.mubr.f32.gmra.mxu0 %v537
    %v609 = vpop.f32.mrf.mxu0
    %v610 = vadd.f32 0.0, %v609
    %v611 = vpop.f32.mrf.mxu0
    %612 = vdwg.mxu0
    %613 = vmatprep.subr.mxu0 0.0
    %614 = vmatpush1.msra.mxu0 0.0
    %615 = vmatprep.subr.mxu0 0.0
    %616 = vmatpush1.msra.mxu0 0.0
    %617 = vmatprep.subr.mxu0 0.0
    %618 = vmatpush1.msra.mxu0 0.0
    %619 = vmatprep.subr.mxu0 0.0
    %620 = vmatpush1.msra.mxu0 0.0
    %621 = vmatprep.subr.mxu0 0.0
    %622 = vmatpush1.msra.mxu0 0.0
    %623 = vmatprep.subr.mxu0 0.0
    %624 = vmatpush1.msra.mxu0 0.0
    %625 = vmatprep.subr.mxu0 0.0
    %626 = vmatpush1.msra.mxu0 0.0
    %627 = vmatprep.subr.mxu0 0.0
    %628 = vmatpush1.msra.mxu0 0.0
    %629 = vmatprep.subr.mxu0 0.0
    %630 = vmatpush1.msra.mxu0 0.0
    %631 = vmatprep.subr.mxu0 0.0
    %632 = vmatpush1.msra.mxu0 0.0
    %633 = vmatprep.subr.mxu0 0.0
    %634 = vmatpush1.msra.mxu0 0.0
    %635 = vmatprep.subr.mxu0 0.0
    %636 = vmatpush1.msra.mxu0 0.0
    %637 = vmatprep.subr.mxu0 0.0
    %638 = vmatpush1.msra.mxu0 %v105
    %639 = vmatprep.subr.mxu0 0.0
    %640 = vmatpush1.msra.mxu0 %v104
    %641 = vmatprep.subr.mxu0 0.0
    %642 = vmatpush1.msra.mxu0 %v103
    %643 = vmatprep.subr.mxu0 0.0
    %644 = vmatpush1.msra.mxu0 %v102
    %645 = vmatprep.subr.mxu0 0.0
    %646 = vmatpush2.msra.mxu0 0.0
    %647 = vmatprep.subr.mxu0 0.0
    %648 = vmatpush2.msra.mxu0 0.0
    %649 = vmatprep.subr.mxu0 0.0
    %650 = vmatpush2.msra.mxu0 0.0
    %651 = vmatprep.subr.mxu0 0.0
    %652 = vmatpush2.msra.mxu0 0.0
    %653 = vmatprep.subr.mxu0 0.0
    %654 = vmatpush2.msra.mxu0 0.0
    %655 = vmatprep.subr.mxu0 0.0
    %656 = vmatpush2.msra.mxu0 0.0
    %657 = vmatprep.subr.mxu0 0.0
    %658 = vmatpush2.msra.mxu0 0.0
    %659 = vmatprep.subr.mxu0 0.0
    %660 = vmatpush2.msra.mxu0 0.0
    %661 = vmatprep.subr.mxu0 0.0
    %662 = vmatpush2.msra.mxu0 0.0
    %663 = vmatprep.subr.mxu0 0.0
    %664 = vmatpush2.msra.mxu0 0.0
    %665 = vmatprep.subr.mxu0 0.0
    %666 = vmatpush2.msra.mxu0 0.0
    %667 = vmatprep.subr.mxu0 0.0
    %668 = vmatpush2.msra.mxu0 0.0
    %669 = vmatprep.subr.mxu0 0.0
    %670 = vmatpush2.msra.mxu0 0.0
    %671 = vmatprep.subr.mxu0 0.0
    %672 = vmatpush2.msra.mxu0 0.0
    %673 = vmatprep.subr.mxu0 0.0
    %674 = vmatpush2.msra.mxu0 0.0
    %675 = vmatprep.subr.mxu0 0.0
    %676 = vmatpush2.msra.mxu0 0.0
    %677 = vmatprep.mubr.f32.mxu0 0.0
    %678 = vmatmul.mubr.f32.gmra.mxu0 %v541
    %v679 = vpop.f32.mrf.mxu0
    %v680 = vadd.f32 %v610, %v679
    %v681 = vpop.f32.mrf.mxu0
    %682 = vdwg.mxu0
    %v683 = vld [vmem:[%s8] sm:$0xff]
    %v684 = vld [vmem:[%s8 + $0x8] sm:$0xff]
    %v685 = vld [vmem:[%s8 + $0x10] sm:$0xff]
    %v686 = vld [vmem:[%s8 + $0x18] sm:$0xff]
    %v687 = vld [vmem:[%s8 + $0x20] sm:$0xff]
    %v688 = vld [vmem:[%s8 + $0x28] sm:$0xff]
    %v689 = vld [vmem:[%s9] sm:$0x1]
    %v690 = vld [vmem:[%s12] sm:$0xff]
    %v691 = vld [vmem:[%s12 + $0x8] sm:$0xff]
    %v692 = vld [vmem:[%s12 + $0x10] sm:$0xff]
    %v693 = vld [vmem:[%s12 + $0x18] sm:$0xff]
    %v694 = vld [vmem:[%s12 + $0x20] sm:$0xff]
    %v695 = vld [vmem:[%s12 + $0x28] sm:$0xff]
    %v696 = vld [vmem:[%s12 + $0x30] sm:$0x3]
    %v697 = vld [vmem:[%s12 + $0x38] sm:$0x3]
    %v698 = vld [vmem:[%s12 + $0x40] sm:$0x3]
    %v699 = vld [vmem:[%s13] sm:$0xff]
    %v700 = vld [vmem:[%s13 + $0x8] sm:$0xff]
    %v701 = vld [vmem:[%s13 + $0x10] sm:$0xff]
    %v702 = vld [vmem:[%s13 + $0x18] sm:$0xff]
    %v703 = vld [vmem:[%s13 + $0x20] sm:$0xff]
    %v704 = vld [vmem:[%s13 + $0x28] sm:$0xff]
    %v705 = vld [vmem:[%s13 + $0x30] sm:$0xff]
    %v706 = vld [vmem:[%s13 + $0x38] sm:$0xff]
    %v707 = vld [vmem:[%s13 + $0x40] sm:$0xff]
    %v708 = vld [vmem:[%s13 + $0x48] sm:$0xff]
    %v709 = vld [vmem:[%s13 + $0x50] sm:$0xff]
    %v710 = vld [vmem:[%s13 + $0x58] sm:$0xff]
    %v711 = vld [vmem:[%s13 + $0x60] sm:$0xff]
    %v712 = vld [vmem:[%s13 + $0x68] sm:$0xff]
    %v713 = vld [vmem:[%s13 + $0x70] sm:$0xff]
    %v714 = vld [vmem:[%s13 + $0x78] sm:$0xff]
    %v715 = vld [vmem:[%s13 + $0x80] sm:$0xff]
    %v716 = vld [vmem:[%s13 + $0x88] sm:$0xff]
    %v717 = vld [vmem:[%s13 + $0x90] sm:$0xff]
    %v718 = vld [vmem:[%s13 + $0x98] sm:$0xff]
    %v719 = vld [vmem:[%s13 + $0xa0] sm:$0xff]
    %v720 = vld [vmem:[%s13 + $0xa8] sm:$0xff]
    %v721 = vld [vmem:[%s13 + $0xb0] sm:$0xff]
    %v722 = vld [vmem:[%s13 + $0xb8] sm:$0xff]
    %v723 = vld [vmem:[%s13 + $0xc0] sm:$0xff]
    %v724 = vld [vmem:[%s13 + $0xc8] sm:$0xff]
    %v725 = vld [vmem:[%s13 + $0xd0] sm:$0xff]
    %v726 = vld [vmem:[%s13 + $0xd8] sm:$0xff]
    %v727 = vld [vmem:[%s13 + $0xe0] sm:$0xff]
    %v728 = vld [vmem:[%s13 + $0xe8] sm:$0xff]
    %v729 = vld [vmem:[%s13 + $0xf0] sm:$0xff]
    %v730 = vld [vmem:[%s13 + $0xf8] sm:$0xff]
    %v731 = vld [vmem:[%s13 + $0x100] sm:$0xff]
    %v732 = vld [vmem:[%s13 + $0x108] sm:$0xff]
    %v733 = vld [vmem:[%s13 + $0x110] sm:$0xff]
    %v734 = vld [vmem:[%s13 + $0x118] sm:$0xff]
    %v735 = vld [vmem:[%s14] sm:$0x1]
    %v737 = vlaneseq
    %v738 = vshrl.u32 %v737, 7
    %v739 = vsub.s32 0, %v738
    %v740 = vrot.slane %v689, %v739
    %vm742 = vcmask 392192
    %v744 = vsel %vm742, %v680, 0
    %746 = vmatprep.subr.mxu0 0.0
    %747 = vmatpush1.msra.mxu0 0.0
    %748 = vmatprep.subr.mxu0 0.0
    %749 = vmatpush1.msra.mxu0 0.0
    %750 = vmatprep.subr.mxu0 0.0
    %751 = vmatpush1.msra.mxu0 0.0
    %752 = vmatprep.subr.mxu0 0.0
    %753 = vmatpush1.msra.mxu0 0.0
    %754 = vmatprep.subr.mxu0 0.0
    %755 = vmatpush1.msra.mxu0 0.0
    %756 = vmatprep.subr.mxu0 0.0
    %757 = vmatpush1.msra.mxu0 0.0
    %758 = vmatprep.subr.mxu0 0.0
    %759 = vmatpush1.msra.mxu0 0.0
    %760 = vmatprep.subr.mxu0 0.0
    %761 = vmatpush1.msra.mxu0 0.0
    %762 = vmatprep.subr.mxu0 0.0
    %763 = vmatpush1.msra.mxu0 0.0
    %764 = vmatprep.subr.mxu0 0.0
    %765 = vmatpush1.msra.mxu0 0.0
    %766 = vmatprep.subr.mxu0 0.0
    %767 = vmatpush1.msra.mxu0 %v688
    %768 = vmatprep.subr.mxu0 0.0
    %769 = vmatpush1.msra.mxu0 %v687
    %770 = vmatprep.subr.mxu0 0.0
    %771 = vmatpush1.msra.mxu0 %v686
    %772 = vmatprep.subr.mxu0 0.0
    %773 = vmatpush1.msra.mxu0 %v685
    %774 = vmatprep.subr.mxu0 0.0
    %775 = vmatpush1.msra.mxu0 %v684
    %776 = vmatprep.subr.mxu0 0.0
    %777 = vmatpush1.msra.mxu0 %v683
    %778 = vmatprep.subr.mxu0 0.0
    %779 = vmatpush2.msra.mxu0 0.0
    %780 = vmatprep.subr.mxu0 0.0
    %781 = vmatpush2.msra.mxu0 0.0
    %782 = vmatprep.subr.mxu0 0.0
    %783 = vmatpush2.msra.mxu0 0.0
    %784 = vmatprep.subr.mxu0 0.0
    %785 = vmatpush2.msra.mxu0 0.0
    %786 = vmatprep.subr.mxu0 0.0
    %787 = vmatpush2.msra.mxu0 0.0
    %788 = vmatprep.subr.mxu0 0.0
    %789 = vmatpush2.msra.mxu0 0.0
    %790 = vmatprep.subr.mxu0 0.0
    %791 = vmatpush2.msra.mxu0 0.0
    %792 = vmatprep.subr.mxu0 0.0
    %793 = vmatpush2.msra.mxu0 0.0
    %794 = vmatprep.subr.mxu0 0.0
    %795 = vmatpush2.msra.mxu0 0.0
    %796 = vmatprep.subr.mxu0 0.0
    %797 = vmatpush2.msra.mxu0 0.0
    %798 = vmatprep.subr.mxu0 0.0
    %799 = vmatpush2.msra.mxu0 0.0
    %800 = vmatprep.subr.mxu0 0.0
    %801 = vmatpush2.msra.mxu0 0.0
    %802 = vmatprep.subr.mxu0 0.0
    %803 = vmatpush2.msra.mxu0 0.0
    %804 = vmatprep.subr.mxu0 0.0
    %805 = vmatpush2.msra.mxu0 0.0
    %806 = vmatprep.subr.mxu0 0.0
    %807 = vmatpush2.msra.mxu0 0.0
    %808 = vmatprep.subr.mxu0 0.0
    %809 = vmatpush2.msra.mxu0 0.0
    %810 = vmatprep.mubr.f32.mxu0 0.0
    %811 = vmatmul.mubr.f32.gmra.mxu0 %v744
    %v812 = vpop.f32.mrf.mxu0
    %v813 = vadd.f32 %v740, %v812
    %v814 = vpop.f32.mrf.mxu0
    %815 = vdwg.mxu0
    %v816 = vmax.f32 %v813, 0.0
    %v817 = vld [vmem:[%s10] sm:$0xff]
    %v818 = vld [vmem:[%s10 + $0x8] sm:$0xff]
    %v819 = vld [vmem:[%s10 + $0x10] sm:$0xff]
    %v820 = vld [vmem:[%s10 + $0x18] sm:$0xff]
    %v821 = vld [vmem:[%s10 + $0x20] sm:$0xff]
    %v822 = vld [vmem:[%s10 + $0x28] sm:$0xff]
    %v823 = vld [vmem:[%s10 + $0x30] sm:$0xff]
    %v824 = vld [vmem:[%s10 + $0x38] sm:$0xff]
    %v825 = vld [vmem:[%s10 + $0x40] sm:$0xff]
    %v826 = vld [vmem:[%s10 + $0x48] sm:$0xff]
    %v827 = vld [vmem:[%s10 + $0x50] sm:$0xff]
    %v828 = vld [vmem:[%s10 + $0x58] sm:$0xff]
    %v829 = vld [vmem:[%s11] sm:$0x1]
    %v831 = vlaneseq
    %v832 = vshrl.u32 %v831, 7
    %v833 = vsub.s32 0, %v832
    %v834 = vrot.slane %v829, %v833
    %v837 = vsel %vm534, %v816, 0
    %839 = vmatprep.subr.mxu0 0.0
    %840 = vmatpush1.msra.mxu0 0.0
    %841 = vmatprep.subr.mxu0 0.0
    %842 = vmatpush1.msra.mxu0 0.0
    %843 = vmatprep.subr.mxu0 0.0
    %844 = vmatpush1.msra.mxu0 0.0
    %845 = vmatprep.subr.mxu0 0.0
    %846 = vmatpush1.msra.mxu0 0.0
    %847 = vmatprep.subr.mxu0 0.0
    %848 = vmatpush1.msra.mxu0 %v828
    %849 = vmatprep.subr.mxu0 0.0
    %850 = vmatpush1.msra.mxu0 %v827
    %851 = vmatprep.subr.mxu0 0.0
    %852 = vmatpush1.msra.mxu0 %v826
    %853 = vmatprep.subr.mxu0 0.0
    %854 = vmatpush1.msra.mxu0 %v825
    %855 = vmatprep.subr.mxu0 0.0
    %856 = vmatpush1.msra.mxu0 %v824
    %857 = vmatprep.subr.mxu0 0.0
    %858 = vmatpush1.msra.mxu0 %v823
    %859 = vmatprep.subr.mxu0 0.0
    %860 = vmatpush1.msra.mxu0 %v822
    %861 = vmatprep.subr.mxu0 0.0
    %862 = vmatpush1.msra.mxu0 %v821
    %863 = vmatprep.subr.mxu0 0.0
    %864 = vmatpush1.msra.mxu0 %v820
    %865 = vmatprep.subr.mxu0 0.0
    %866 = vmatpush1.msra.mxu0 %v819
    %867 = vmatprep.subr.mxu0 0.0
    %868 = vmatpush1.msra.mxu0 %v818
    %869 = vmatprep.subr.mxu0 0.0
    %870 = vmatpush1.msra.mxu0 %v817
    %871 = vmatprep.subr.mxu0 0.0
    %872 = vmatpush2.msra.mxu0 0.0
    %873 = vmatprep.subr.mxu0 0.0
    %874 = vmatpush2.msra.mxu0 0.0
    %875 = vmatprep.subr.mxu0 0.0
    %876 = vmatpush2.msra.mxu0 0.0
    %877 = vmatprep.subr.mxu0 0.0
    %878 = vmatpush2.msra.mxu0 0.0
    %879 = vmatprep.subr.mxu0 0.0
    %880 = vmatpush2.msra.mxu0 0.0
    %881 = vmatprep.subr.mxu0 0.0
    %882 = vmatpush2.msra.mxu0 0.0
    %883 = vmatprep.subr.mxu0 0.0
    %884 = vmatpush2.msra.mxu0 0.0
    %885 = vmatprep.subr.mxu0 0.0
    %886 = vmatpush2.msra.mxu0 0.0
    %887 = vmatprep.subr.mxu0 0.0
    %888 = vmatpush2.msra.mxu0 0.0
    %889 = vmatprep.subr.mxu0 0.0
    %890 = vmatpush2.msra.mxu0 0.0
    %891 = vmatprep.subr.mxu0 0.0
    %892 = vmatpush2.msra.mxu0 0.0
    %893 = vmatprep.subr.mxu0 0.0
    %894 = vmatpush2.msra.mxu0 0.0
    %895 = vmatprep.subr.mxu0 0.0
    %896 = vmatpush2.msra.mxu0 0.0
    %897 = vmatprep.subr.mxu0 0.0
    %898 = vmatpush2.msra.mxu0 0.0
    %899 = vmatprep.subr.mxu0 0.0
    %900 = vmatpush2.msra.mxu0 0.0
    %901 = vmatprep.subr.mxu0 0.0
    %902 = vmatpush2.msra.mxu0 0.0
    %903 = vmatprep.mubr.f32.mxu0 0.0
    %904 = vmatmul.mubr.f32.gmra.mxu0 %v837
    %v905 = vpop.f32.mrf.mxu0
    %v906 = vadd.f32 %v834, %v905
    %v907 = vpop.f32.mrf.mxu0
    %908 = vdwg.mxu0
    %v909 = vmax.f32 %v906, 0.0
    %vm910 = vcmask 835328
    %v911 = vsel %vm910, %v813, -inf
    %912 = vmax.xlane.f32.xlu0 %v911
    %v913 = vpop.xlane.xlu0 %912
    %v914 = vsub.f32 %v813, %v913
    %v915 = vmul.f32 %v914, 1.442695
    %v916 = vpow.pop %v915
    %918 = vrot.lane.b32.xlu0 %v916, 32
    %v919 = vpop.permute.xlu0 %918
    %v921 = vsel %vm312, %v919, 0.0
    %922 = vadd.xlane.f32.xlu0 %v921
    %v923 = vpop.xlane.xlu0 %922
    %v924 = vrcp.pop %v923
    %v925 = vmul.f32 %v916, %v924
    %vm926 = vcmask 884528
    %v927 = vsel %vm926, %v813, -inf
    %928 = vmax.xlane.f32.xlu0 %v927
    %v929 = vpop.xlane.xlu0 %928
    %v930 = vsub.f32 %v813, %v929
    %v931 = vmul.f32 %v930, 1.442695
    %v932 = vpow.pop %v931
    %934 = vrot.lane.b32.xlu0 %v932, 26
    %v935 = vpop.permute.xlu0 %934
    %v937 = vsel %vm312, %v935, 0.0
    %938 = vadd.xlane.f32.xlu0 %v937
    %v939 = vpop.xlane.xlu0 %938
    %v940 = vrcp.pop %v939
    %v941 = vmul.f32 %v932, %v940
    %vm942 = vcmask 933728
    %v943 = vsel %vm942, %v813, -inf
    %944 = vmax.xlane.f32.xlu0 %v943
    %v945 = vpop.xlane.xlu0 %944
    %v946 = vsub.f32 %v813, %v945
    %v947 = vmul.f32 %v946, 1.442695
    %v948 = vpow.pop %v947
    %950 = vrot.lane.b32.xlu0 %v948, 20
    %v951 = vpop.permute.xlu0 %950
    %v953 = vsel %vm312, %v951, 0.0
    %954 = vadd.xlane.f32.xlu0 %v953
    %v955 = vpop.xlane.xlu0 %954
    %v956 = vrcp.pop %v955
    %v957 = vmul.f32 %v948, %v956
    %959 = vrot.lane.b32.xlu0 %v925, 32
    %v960 = vpop.permute.xlu0 %959
    %963 = vrot.lane.b32.xlu0 %v941, 32
    %v964 = vpop.permute.xlu0 %963
    %967 = vrot.lane.b32.xlu0 %v957, 32
    %v968 = vpop.permute.xlu0 %967
    %v970 = vsel %vm312, %v960, %v964
    %v971 = vsel %vm363, %v970, %v968
    %v973 = vlaneseq
    %v974 = vshrl.u32 %v973, 7
    %v975 = vsub.s32 0, %v974
    %v976 = vrot.slane %v735, %v975
    %v978 = vadd.f32 %v971, %v976
    %v980 = vsel %vm372, %v978, 0
    %v983 = vsel %vm376, %v696, 0
    %v986 = vsel %vm376, %v697, 0
    %v989 = vsel %vm376, %v698, 0
    %991 = vmatprep.subr.mxu0 0.0
    %992 = vmatpush1.msra.mxu0 0.0
    %993 = vmatprep.subr.mxu0 0.0
    %994 = vmatpush1.msra.mxu0 0.0
    %995 = vmatprep.subr.mxu0 0.0
    %996 = vmatpush1.msra.mxu0 0.0
    %997 = vmatprep.subr.mxu0 0.0
    %998 = vmatpush1.msra.mxu0 0.0
    %999 = vmatprep.subr.mxu0 0.0
    %1000 = vmatpush1.msra.mxu0 0.0
    %1001 = vmatprep.subr.mxu0 0.0
    %1002 = vmatpush1.msra.mxu0 0.0
    %1003 = vmatprep.subr.mxu0 0.0
    %1004 = vmatpush1.msra.mxu0 0.0
    %1005 = vmatprep.subr.mxu0 0.0
    %1006 = vmatpush1.msra.mxu0 0.0
    %1007 = vmatprep.subr.mxu0 0.0
    %1008 = vmatpush1.msra.mxu0 0.0
    %1009 = vmatprep.subr.mxu0 0.0
    %1010 = vmatpush1.msra.mxu0 0.0
    %1011 = vmatprep.subr.mxu0 0.0
    %1012 = vmatpush1.msra.mxu0 0.0
    %1013 = vmatprep.subr.mxu0 0.0
    %1014 = vmatpush1.msra.mxu0 0.0
    %1015 = vmatprep.subr.mxu0 0.0
    %1016 = vmatpush1.msra.mxu0 0.0
    %1017 = vmatprep.subr.mxu0 %v986
    %1018 = vmatpush1.msra.mxu0 %v983
    %1019 = vmatprep.subr.mxu0 %v694
    %1020 = vmatpush1.msra.mxu0 %v693
    %1021 = vmatprep.subr.mxu0 %v691
    %1022 = vmatpush1.msra.mxu0 %v690
    %1023 = vmatprep.subr.mxu0 0.0
    %1024 = vmatpush2.msra.mxu0 0.0
    %1025 = vmatprep.subr.mxu0 0.0
    %1026 = vmatpush2.msra.mxu0 0.0
    %1027 = vmatprep.subr.mxu0 0.0
    %1028 = vmatpush2.msra.mxu0 0.0
    %1029 = vmatprep.subr.mxu0 0.0
    %1030 = vmatpush2.msra.mxu0 0.0
    %1031 = vmatprep.subr.mxu0 0.0
    %1032 = vmatpush2.msra.mxu0 0.0
    %1033 = vmatprep.subr.mxu0 0.0
    %1034 = vmatpush2.msra.mxu0 0.0
    %1035 = vmatprep.subr.mxu0 0.0
    %1036 = vmatpush2.msra.mxu0 0.0
    %1037 = vmatprep.subr.mxu0 0.0
    %1038 = vmatpush2.msra.mxu0 0.0
    %1039 = vmatprep.subr.mxu0 0.0
    %1040 = vmatpush2.msra.mxu0 0.0
    %1041 = vmatprep.subr.mxu0 0.0
    %1042 = vmatpush2.msra.mxu0 0.0
    %1043 = vmatprep.subr.mxu0 0.0
    %1044 = vmatpush2.msra.mxu0 0.0
    %1045 = vmatprep.subr.mxu0 0.0
    %1046 = vmatpush2.msra.mxu0 0.0
    %1047 = vmatprep.subr.mxu0 0.0
    %1048 = vmatpush2.msra.mxu0 0.0
    %1049 = vmatprep.subr.mxu0 0.0
    %1050 = vmatpush2.msra.mxu0 0.0
    %1051 = vmatprep.subr.mxu0 0.0
    %1052 = vmatpush2.msra.mxu0 0.0
    %1053 = vmatprep.subr.mxu0 0.0
    %1054 = vmatpush2.msra.mxu0 0.0
    %1055 = vmatprep.mubr.f32.mxu0 0.0
    %1056 = vmatmul.mubr.f32.gmra.mxu0 %v980
    %v1057 = vpop.f32.mrf.mxu0
    %v1058 = vadd.f32 0.0, %v1057
    %v1059 = vpop.f32.mrf.mxu0
    %v1060 = vadd.f32 0.0, %v1059
    %1061 = vdwg.mxu0
    %1062 = vmatprep.subr.mxu0 0.0
    %1063 = vmatpush1.msra.mxu0 0.0
    %1064 = vmatprep.subr.mxu0 0.0
    %1065 = vmatpush1.msra.mxu0 0.0
    %1066 = vmatprep.subr.mxu0 0.0
    %1067 = vmatpush1.msra.mxu0 0.0
    %1068 = vmatprep.subr.mxu0 0.0
    %1069 = vmatpush1.msra.mxu0 0.0
    %1070 = vmatprep.subr.mxu0 0.0
    %1071 = vmatpush1.msra.mxu0 0.0
    %1072 = vmatprep.subr.mxu0 0.0
    %1073 = vmatpush1.msra.mxu0 0.0
    %1074 = vmatprep.subr.mxu0 0.0
    %1075 = vmatpush1.msra.mxu0 0.0
    %1076 = vmatprep.subr.mxu0 0.0
    %1077 = vmatpush1.msra.mxu0 0.0
    %1078 = vmatprep.subr.mxu0 0.0
    %1079 = vmatpush1.msra.mxu0 0.0
    %1080 = vmatprep.subr.mxu0 0.0
    %1081 = vmatpush1.msra.mxu0 0.0
    %1082 = vmatprep.subr.mxu0 0.0
    %1083 = vmatpush1.msra.mxu0 0.0
    %1084 = vmatprep.subr.mxu0 0.0
    %1085 = vmatpush1.msra.mxu0 0.0
    %1086 = vmatprep.subr.mxu0 0.0
    %1087 = vmatpush1.msra.mxu0 0.0
    %1088 = vmatprep.subr.mxu0 0.0
    %1089 = vmatpush1.msra.mxu0 %v989
    %1090 = vmatprep.subr.mxu0 0.0
    %1091 = vmatpush1.msra.mxu0 %v695
    %1092 = vmatprep.subr.mxu0 0.0
    %1093 = vmatpush1.msra.mxu0 %v692
    %1094 = vmatprep.subr.mxu0 0.0
    %1095 = vmatpush2.msra.mxu0 0.0
    %1096 = vmatprep.subr.mxu0 0.0
    %1097 = vmatpush2.msra.mxu0 0.0
    %1098 = vmatprep.subr.mxu0 0.0
    %1099 = vmatpush2.msra.mxu0 0.0
    %1100 = vmatprep.subr.mxu0 0.0
    %1101 = vmatpush2.msra.mxu0 0.0
    %1102 = vmatprep.subr.mxu0 0.0
    %1103 = vmatpush2.msra.mxu0 0.0
    %1104 = vmatprep.subr.mxu0 0.0
    %1105 = vmatpush2.msra.mxu0 0.0
    %1106 = vmatprep.subr.mxu0 0.0
    %1107 = vmatpush2.msra.mxu0 0.0
    %1108 = vmatprep.subr.mxu0 0.0
    %1109 = vmatpush2.msra.mxu0 0.0
    %1110 = vmatprep.subr.mxu0 0.0
    %1111 = vmatpush2.msra.mxu0 0.0
    %1112 = vmatprep.subr.mxu0 0.0
    %1113 = vmatpush2.msra.mxu0 0.0
    %1114 = vmatprep.subr.mxu0 0.0
    %1115 = vmatpush2.msra.mxu0 0.0
    %1116 = vmatprep.subr.mxu0 0.0
    %1117 = vmatpush2.msra.mxu0 0.0
    %1118 = vmatprep.subr.mxu0 0.0
    %1119 = vmatpush2.msra.mxu0 0.0
    %1120 = vmatprep.subr.mxu0 0.0
    %1121 = vmatpush2.msra.mxu0 0.0
    %1122 = vmatprep.subr.mxu0 0.0
    %1123 = vmatpush2.msra.mxu0 0.0
    %1124 = vmatprep.subr.mxu0 0.0
    %1125 = vmatpush2.msra.mxu0 0.0
    %1126 = vmatprep.mubr.f32.mxu0 0.0
    %1127 = vmatmul.mubr.f32.gmra.mxu0 %v980
    %v1128 = vpop.f32.mrf.mxu0
    %v1129 = vadd.f32 0.0, %v1128
    %v1130 = vpop.f32.mrf.mxu0
    %1131 = vdwg.mxu0
    %1133 = vrot.lane.b32.xlu0 %v909, 96
    %v1134 = vpop.permute.xlu0 %1133
    %1136 = vrot.lane.b32.xlu0 %v909, 64
    %v1137 = vpop.permute.xlu0 %1136
    %v1139 = vsel %vm534, %v909, %v1134
    %v1140 = vsel %vm226, %v1134, %v1137
    %v1141 = vmul.f32 %v1058, %v1139
    %v1142 = vmul.f32 %v1060, %v1140
    %v1143 = vmul.f32 %v1129, %v1137
    %v1145 = vsel %vm118, %v1143, 0
    %1147 = vmatprep.subr.mxu0 0.0
    %1148 = vmatpush1.msra.mxu0 %v714
    %1149 = vmatprep.subr.mxu0 0.0
    %1150 = vmatpush1.msra.mxu0 %v713
    %1151 = vmatprep.subr.mxu0 0.0
    %1152 = vmatpush1.msra.mxu0 %v712
    %1153 = vmatprep.subr.mxu0 0.0
    %1154 = vmatpush1.msra.mxu0 %v711
    %1155 = vmatprep.subr.mxu0 0.0
    %1156 = vmatpush1.msra.mxu0 %v710
    %1157 = vmatprep.subr.mxu0 0.0
    %1158 = vmatpush1.msra.mxu0 %v709
    %1159 = vmatprep.subr.mxu0 0.0
    %1160 = vmatpush1.msra.mxu0 %v708
    %1161 = vmatprep.subr.mxu0 0.0
    %1162 = vmatpush1.msra.mxu0 %v707
    %1163 = vmatprep.subr.mxu0 0.0
    %1164 = vmatpush1.msra.mxu0 %v706
    %1165 = vmatprep.subr.mxu0 0.0
    %1166 = vmatpush1.msra.mxu0 %v705
    %1167 = vmatprep.subr.mxu0 0.0
    %1168 = vmatpush1.msra.mxu0 %v704
    %1169 = vmatprep.subr.mxu0 0.0
    %1170 = vmatpush1.msra.mxu0 %v703
    %1171 = vmatprep.subr.mxu0 0.0
    %1172 = vmatpush1.msra.mxu0 %v702
    %1173 = vmatprep.subr.mxu0 0.0
    %1174 = vmatpush1.msra.mxu0 %v701
    %1175 = vmatprep.subr.mxu0 0.0
    %1176 = vmatpush1.msra.mxu0 %v700
    %1177 = vmatprep.subr.mxu0 0.0
    %1178 = vmatpush1.msra.mxu0 %v699
    %1179 = vmatprep.subr.mxu0 0.0
    %1180 = vmatpush2.msra.mxu0 %v730
    %1181 = vmatprep.subr.mxu0 0.0
    %1182 = vmatpush2.msra.mxu0 %v729
    %1183 = vmatprep.subr.mxu0 0.0
    %1184 = vmatpush2.msra.mxu0 %v728
    %1185 = vmatprep.subr.mxu0 0.0
    %1186 = vmatpush2.msra.mxu0 %v727
    %1187 = vmatprep.subr.mxu0 0.0
    %1188 = vmatpush2.msra.mxu0 %v726
    %1189 = vmatprep.subr.mxu0 0.0
    %1190 = vmatpush2.msra.mxu0 %v725
    %1191 = vmatprep.subr.mxu0 0.0
    %1192 = vmatpush2.msra.mxu0 %v724
    %1193 = vmatprep.subr.mxu0 0.0
    %1194 = vmatpush2.msra.mxu0 %v723
    %1195 = vmatprep.subr.mxu0 0.0
    %1196 = vmatpush2.msra.mxu0 %v722
    %1197 = vmatprep.subr.mxu0 0.0
    %1198 = vmatpush2.msra.mxu0 %v721
    %1199 = vmatprep.subr.mxu0 0.0
    %1200 = vmatpush2.msra.mxu0 %v720
    %1201 = vmatprep.subr.mxu0 0.0
    %1202 = vmatpush2.msra.mxu0 %v719
    %1203 = vmatprep.subr.mxu0 0.0
    %1204 = vmatpush2.msra.mxu0 %v718
    %1205 = vmatprep.subr.mxu0 0.0
    %1206 = vmatpush2.msra.mxu0 %v717
    %1207 = vmatprep.subr.mxu0 0.0
    %1208 = vmatpush2.msra.mxu0 %v716
    %1209 = vmatprep.subr.mxu0 0.0
    %1210 = vmatpush2.msra.mxu0 %v715
    %1211 = vmatprep.mubr.f32.mxu0 %v1142
    %1212 = vmatmul.mubr.f32.gmra.mxu0 %v1141
    %v1213 = vpop.f32.mrf.mxu0
    %v1214 = vadd.f32 0.0, %v1213
    %v1215 = vpop.f32.mrf.mxu0
    %1216 = vdwg.mxu0
    %1217 = vmatprep.subr.mxu0 0.0
    %1218 = vmatpush1.msra.mxu0 0.0
    %1219 = vmatprep.subr.mxu0 0.0
    %1220 = vmatpush1.msra.mxu0 0.0
    %1221 = vmatprep.subr.mxu0 0.0
    %1222 = vmatpush1.msra.mxu0 0.0
    %1223 = vmatprep.subr.mxu0 0.0
    %1224 = vmatpush1.msra.mxu0 0.0
    %1225 = vmatprep.subr.mxu0 0.0
    %1226 = vmatpush1.msra.mxu0 0.0
    %1227 = vmatprep.subr.mxu0 0.0
    %1228 = vmatpush1.msra.mxu0 0.0
    %1229 = vmatprep.subr.mxu0 0.0
    %1230 = vmatpush1.msra.mxu0 0.0
    %1231 = vmatprep.subr.mxu0 0.0
    %1232 = vmatpush1.msra.mxu0 0.0
    %1233 = vmatprep.subr.mxu0 0.0
    %1234 = vmatpush1.msra.mxu0 0.0
    %1235 = vmatprep.subr.mxu0 0.0
    %1236 = vmatpush1.msra.mxu0 0.0
    %1237 = vmatprep.subr.mxu0 0.0
    %1238 = vmatpush1.msra.mxu0 0.0
    %1239 = vmatprep.subr.mxu0 0.0
    %1240 = vmatpush1.msra.mxu0 0.0
    %1241 = vmatprep.subr.mxu0 0.0
    %1242 = vmatpush1.msra.mxu0 %v734
    %1243 = vmatprep.subr.mxu0 0.0
    %1244 = vmatpush1.msra.mxu0 %v733
    %1245 = vmatprep.subr.mxu0 0.0
    %1246 = vmatpush1.msra.mxu0 %v732
    %1247 = vmatprep.subr.mxu0 0.0
    %1248 = vmatpush1.msra.mxu0 %v731
    %1249 = vmatprep.subr.mxu0 0.0
    %1250 = vmatpush2.msra.mxu0 0.0
    %1251 = vmatprep.subr.mxu0 0.0
    %1252 = vmatpush2.msra.mxu0 0.0
    %1253 = vmatprep.subr.mxu0 0.0
    %1254 = vmatpush2.msra.mxu0 0.0
    %1255 = vmatprep.subr.mxu0 0.0
    %1256 = vmatpush2.msra.mxu0 0.0
    %1257 = vmatprep.subr.mxu0 0.0
    %1258 = vmatpush2.msra.mxu0 0.0
    %1259 = vmatprep.subr.mxu0 0.0
    %1260 = vmatpush2.msra.mxu0 0.0
    %1261 = vmatprep.subr.mxu0 0.0
    %1262 = vmatpush2.msra.mxu0 0.0
    %1263 = vmatprep.subr.mxu0 0.0
    %1264 = vmatpush2.msra.mxu0 0.0
    %1265 = vmatprep.subr.mxu0 0.0
    %1266 = vmatpush2.msra.mxu0 0.0
    %1267 = vmatprep.subr.mxu0 0.0
    %1268 = vmatpush2.msra.mxu0 0.0
    %1269 = vmatprep.subr.mxu0 0.0
    %1270 = vmatpush2.msra.mxu0 0.0
    %1271 = vmatprep.subr.mxu0 0.0
    %1272 = vmatpush2.msra.mxu0 0.0
    %1273 = vmatprep.subr.mxu0 0.0
    %1274 = vmatpush2.msra.mxu0 0.0
    %1275 = vmatprep.subr.mxu0 0.0
    %1276 = vmatpush2.msra.mxu0 0.0
    %1277 = vmatprep.subr.mxu0 0.0
    %1278 = vmatpush2.msra.mxu0 0.0
    %1279 = vmatprep.subr.mxu0 0.0
    %1280 = vmatpush2.msra.mxu0 0.0
    %1281 = vmatprep.mubr.f32.mxu0 0.0
    %1282 = vmatmul.mubr.f32.gmra.mxu0 %v1145
    %v1283 = vpop.f32.mrf.mxu0
    %v1284 = vadd.f32 %v1214, %v1283
    %v1285 = vpop.f32.mrf.mxu0
    %1286 = vdwg.mxu0
    %v1287 = vsel %vm742, %v1284, 0.0
    %1288 = vst [vmem:[#allocation2] sm:$0xff] %v1287
    // Predicated region
    $region62: #{tpu_custom_call.1} parent=1 // pred_check
      _
    $region63: #{tpu_custom_call.1} parent=1 // pred_check_branch
      %1290 = sbr.rel (0) target = $region65
    $region64: #{tpu_custom_call.1} parent=1 // pred_region
      %s1292 = ssub.s32 128, 128
      %1293 = vsyncadd [#allocation3], %s1292
      %s1295 = sshll.u32 [#allocation2], 4
      %s1296 = int_to_ptr.vmem [resolvable:$true] %s1295
      %1298 = dma.vmem_to_hbm [thread:$0]  %s1296, 128, %s15, [#allocation3]
    $region65: #{tpu_custom_call.1} parent=1 // pred_fallthru
      _
    // Predicated region
    $region66: #{tpu_custom_call.1} parent=1 // pred_check
      _
    $region67: #{tpu_custom_call.1} parent=1 // pred_check_branch
      %1300 = sbr.rel (0) target = $region69
    $region68: #{tpu_custom_call.1} parent=1 // pred_region
      %1301 = dma.done [#allocation3], 128
    $region69: #{tpu_custom_call.1} parent=1 // pred_fallthru
      _
    %1302 = vsyncpa [#allocation3], 1

</llo_original>
